<compile_context>
chip_gen: v7x
topology: tpu7x:2x2x1
jax: 0.10.0
libtpu: 0.0.40
codegen_flags: <defaults>
</compile_context>

<pallas_src>
import jax
import jax.numpy as jnp
from jax.experimental import pallas as pl
from jax.experimental.pallas import tpu as pltpu


# -----------------------------------------------------------------------------
# Pallas kernel
# -----------------------------------------------------------------------------
def bert_gnn_kernel(a_ref,       # (TM, TK)   binary adjacency (+self loops), int8
                    xw_ref,      # (TK, H)    precomputed dinv*(X@Wg) k-tile, bf16
                    dinv_i_ref,  # (TM, 1)    deg^-1/2 for the row tile, f32
                    mask_ref,    # (TM, H)    pre-scaled dropout mask, bf16
                    bg_ref,      # (1, H)     GCN bias, f32
                    w1_ref,      # (H, H2)    MLP layer-1 weight, bf16
                    b1_ref,      # (1, H2)    MLP layer-1 bias, f32
                    w2t_ref,     # (1, H2)    MLP layer-2 weight (transposed), f32
                    b2_ref,      # (1, 1)     MLP layer-2 bias, SMEM scalar
                    o_ref,       # (1, 1, TM) output row tile (lane-dense)
                    acc_ref):    # (TM, H)    f32 VMEM accumulator
    k = pl.program_id(1)

    @pl.when(k == 0)
    def _init():
        acc_ref[...] = jnp.zeros_like(acc_ref)

    # Reassociated GCN term for this (row-tile, k-tile):
    #   acc += A[i, k] @ (D^-1/2[k] * (X[k] @ Wg))       [XW precomputed, bf16]
    a_bf16 = a_ref[...].astype(jnp.bfloat16)              # cheap VPU upcast of int8
    acc_ref[...] += jnp.dot(a_bf16, xw_ref[...],
                            preferred_element_type=jnp.float32)

    @pl.when(k == pl.num_programs(1) - 1)
    def _finalize():
        # Row scaling finishes A_hat = D^-1/2 A D^-1/2, then bias + ReLU.
        h = acc_ref[...] * dinv_i_ref[...] + bg_ref[...]
        h = jnp.maximum(h, 0.0)
        h = h * mask_ref[...].astype(jnp.float32)          # dropout (pre-scaled mask)

        # MLP layer 1 on the MXU in bf16, f32 accumulation.
        m = jnp.dot(h.astype(jnp.bfloat16), w1_ref[...],
                    preferred_element_type=jnp.float32) + b1_ref[...]
        m = jnp.maximum(m, 0.0)

        # Linear(H2, 1) kept lane-dense: broadcast multiply + lane reduction,
        # stored as a (1, 1, TM) row instead of an (N, 1) masked-store column.
        out = jnp.sum(m * w2t_ref[...], axis=-1) + b2_ref[0, 0]
        o_ref[...] = out[None, None, :].astype(o_ref.dtype)


# -----------------------------------------------------------------------------
# One-time graph preprocessing (cache per graph: adjacency, degrees, padding)
# -----------------------------------------------------------------------------
def build_graph(edge_index, id_2_idx, n, tm=256, tk=256):
    """Builds the padded int8 adjacency (A + I) and D^-1/2 vector once."""
    n_pad = -(-n // tm) * tm
    assert n_pad % tk == 0, "row and K tile sizes must both divide the padded node count"

    src = id_2_idx[edge_index[0]]
    dst = id_2_idx[edge_index[1]]
    idx = jnp.arange(n)
    # Build directly in the padded shape and final dtype (single O(N^2) pass).
    a = jnp.zeros((n_pad, n_pad), jnp.int8).at[dst, src].set(1)
    a = a.at[idx, idx].set(1)                                   # A + I, no double self-loop
    deg = jnp.sum(a, axis=1, dtype=jnp.float32)                 # padded rows -> deg 0
    dinv = jnp.where(deg > 0, 1.0 / jnp.sqrt(deg), 0.0).reshape(n_pad, 1)
    return {"a": a, "dinv": dinv, "n": n, "n_pad": n_pad}


def _make_dropout_mask(seed, shape, p):
    keep = jax.random.bernoulli(jax.random.PRNGKey(seed), 1.0 - p, shape)
    return (keep.astype(jnp.float32) * (1.0 / (1.0 - p))).astype(jnp.bfloat16)


# -----------------------------------------------------------------------------
# Wrapper mirroring BERTGNNModel.forward(x, edge_index, id_2_idx, training)
# -----------------------------------------------------------------------------
def bert_gnn_forward(x, edge_index, id_2_idx, params, *,
                     training: bool = True, seed: int = 0, drop_p: float = 0.3,
                     tm: int = 256, tk: int = 256, graph=None):
    n, _ = x.shape
    h_dim = params["wg"].shape[1]
    h2_dim = params["w1"].shape[1]

    if graph is None:
        graph = build_graph(edge_index, id_2_idx, n, tm, tk)
    a_p, dinv_p, n_pad = graph["a"], graph["dinv"], graph["n_pad"]

    # Hoisted per-node term: XW = D^-1/2 * (X @ Wg), computed ONCE (not per row
    # tile) as a plain XLA matmul, then cast to bf16 for the N^2 aggregation.
    x_p = jnp.pad(x, ((0, n_pad - n), (0, 0)))
    xw = ((x_p @ params["wg"]) * dinv_p).astype(jnp.bfloat16)          # (n_pad, H)

    if training:
        mask = _make_dropout_mask(seed, (n_pad, h_dim), drop_p)
    else:
        mask = jnp.ones((n_pad, h_dim), jnp.bfloat16)
    # TODO(synk): generate the dropout mask in-kernel with pltpu.prng_seed /
    # prng_random_bits + threshold compare (seed offset by program_id) to remove
    # the N*H mask read entirely; host-built mask kept here so the pure-JAX
    # reference can reproduce it bit-exactly.

    gi, gk = n_pad // tm, n_pad // tk

    # Explicit VMEM budget for the chosen tiles (double-buffered inputs + f32
    # accumulator), kept v7x-safe (64 MiB physical, 32 MiB default scoped).
    vmem_bytes = (
        2 * tm * tk * 1                    # A tile, int8
        + 2 * tk * h_dim * 2               # XW tile, bf16
        + 2 * tm * 4                       # dinv rows
        + 2 * tm * h_dim * 2               # dropout mask tile, bf16
        + 2 * (h_dim * 4 + h_dim * h2_dim * 2 + 2 * h2_dim * 4)   # bg, W1(bf16), b1, W2^T
        + tm * h_dim * 4                   # accumulator scratch
        + 2 * tm * 4                       # output tile
    )
    vmem_limit = int(min(max(2 * vmem_bytes, 16 * 1024 * 1024), 48 * 1024 * 1024))

    out = pl.pallas_call(
        bert_gnn_kernel,
        out_shape=jax.ShapeDtypeStruct((gi, 1, tm), jnp.float32),
        grid_spec=pltpu.PrefetchScalarGridSpec(
            num_scalar_prefetch=0,
            grid=(gi, gk),
            in_specs=[
                # NOTE: if the trace shows the A DMA exposed, add
                # pipeline_mode=pl.Buffered(3) here (costs one extra A tile).
                pl.BlockSpec((tm, tk), lambda i, k: (i, k)),           # A (int8)
                pl.BlockSpec((tk, h_dim), lambda i, k: (k, 0)),        # XW (bf16)
                pl.BlockSpec((tm, 1), lambda i, k: (i, 0)),            # dinv (rows)
                pl.BlockSpec((tm, h_dim), lambda i, k: (i, 0)),        # dropout mask
                pl.BlockSpec((1, h_dim), lambda i, k: (0, 0)),         # bg
                pl.BlockSpec((h_dim, h2_dim), lambda i, k: (0, 0)),    # W1 (bf16)
                pl.BlockSpec((1, h2_dim), lambda i, k: (0, 0)),        # b1
                pl.BlockSpec((1, h2_dim), lambda i, k: (0, 0)),        # W2^T
                pl.BlockSpec(memory_space=pltpu.MemorySpace.SMEM),     # b2 scalar
            ],
            out_specs=pl.BlockSpec((1, 1, tm), lambda i, k: (i, 0, 0)),
            scratch_shapes=[pltpu.VMEM((tm, h_dim), jnp.float32)],
        ),
        compiler_params=pltpu.CompilerParams(
            dimension_semantics=("parallel", "arbitrary"),
            vmem_limit_bytes=vmem_limit,
        ),
    )(a_p, xw, dinv_p, mask,
      params["bg"],
      params["w1"].astype(jnp.bfloat16), params["b1"],
      params["w2"].reshape(1, h2_dim), params["b2"].reshape(1, 1))

    # Padded rows carry garbage (bias -> MLP); slice them off. Nothing should
    # ever read the padded tail of the output buffer.
    return out.reshape(-1)[:n]     # .view(-1)


# -----------------------------------------------------------------------------
# Deterministic parameter init + pure-JAX reference (mirrors kernel numerics)
# -----------------------------------------------------------------------------
def init_params(key, d_in, h_dim, h2_dim):
    ks = jax.random.split(key, 3)
    return {
        "wg": jax.random.normal(ks[0], (d_in, h_dim), jnp.float32) * 0.05,
        "bg": jnp.zeros((1, h_dim), jnp.float32),
        "w1": jax.random.normal(ks[1], (h_dim, h2_dim), jnp.float32) * 0.05,
        "b1": jnp.zeros((1, h2_dim), jnp.float32),
        "w2": jax.random.normal(ks[2], (h2_dim, 1), jnp.float32) * 0.05,
        "b2": jnp.zeros((1, 1), jnp.float32),
    }


def reference_forward(x, edge_index, id_2_idx, params, mask=None):
    """Pure-JAX reference with the same bf16 aggregation / f32 accumulation."""
    n = x.shape[0]
    src = id_2_idx[edge_index[0]]
    dst = id_2_idx[edge_index[1]]
    a = jnp.zeros((n, n), jnp.float32).at[dst, src].set(1.0)
    a = a.at[jnp.arange(n), jnp.arange(n)].set(1.0)
    deg = jnp.sum(a, axis=1)
    dinv = jnp.where(deg > 0, 1.0 / jnp.sqrt(deg), 0.0)

    xw = ((x @ params["wg"]) * dinv[:, None]).astype(jnp.bfloat16)
    agg = jnp.dot(a.astype(jnp.bfloat16), xw, preferred_element_type=jnp.float32)
    h = jnp.maximum(agg * dinv[:, None] + params["bg"], 0.0)
    if mask is not None:
        h = h * mask
    m = jnp.dot(h.astype(jnp.bfloat16), params["w1"].astype(jnp.bfloat16),
                preferred_element_type=jnp.float32) + params["b1"]
    m = jnp.maximum(m, 0.0)
    return (m @ params["w2"] + params["b2"]).reshape(-1)


if __name__ == "__main__":
    # Small but multi-tile shapes: n_pad = 512 -> grid (2, 2) exercises both the
    # parallel row axis and the accumulator init/finalize path.
    N, D_IN, H, H2 = 300, 128, 128, 128
    E = 900

    key = jax.random.PRNGKey(0)
    k_x, k_e, k_p = jax.random.split(key, 3)

    x = jax.random.normal(k_x, (N, D_IN), jnp.float32)      # precomputed BERT embeddings
    edge_index = jax.random.randint(k_e, (2, E), 0, N)      # raw node ids
    id_2_idx = jnp.arange(N, dtype=jnp.int32)               # id -> row index map
    params = init_params(k_p, D_IN, H, H2)

    # Build the padded int8 adjacency + degree normalization ONCE per graph.
    graph = build_graph(edge_index, id_2_idx, N, tm=256, tk=256)

    # --- eval mode (training=False): deterministic, compare against pure-JAX ref
    out_eval = bert_gnn_forward(x, edge_index, id_2_idx, params,
                                training=False, graph=graph)
    out_eval = jax.block_until_ready(out_eval)
    ref_eval = reference_forward(x, edge_index, id_2_idx, params)
    assert out_eval.shape == (N,)
    assert jnp.allclose(out_eval, ref_eval, atol=1e-2, rtol=1e-2), "eval mismatch vs reference"

    # --- training mode: exercise the dropout path; rebuild the identical mask for the ref
    seed = 1234
    out_train = bert_gnn_forward(x, edge_index, id_2_idx, params,
                                 training=True, seed=seed, graph=graph)
    out_train = jax.block_until_ready(out_train)
    mask = _make_dropout_mask(seed, (graph["n_pad"], H), 0.3)[:N].astype(jnp.float32)
    ref_train = reference_forward(x, edge_index, id_2_idx, params, mask=mask)
    assert out_train.shape == (N,)
    assert bool(jnp.all(jnp.isfinite(out_train)))
    assert jnp.allclose(out_train, ref_train, atol=1e-2, rtol=1e-2), "train mismatch vs reference"

    print("KERNEL_OK")
</pallas_src>

<mosaic_0001>
module attributes {stable_mosaic.version = 11 : i64} {
  func.func @bert_gnn_kernel(%arg0: i32, %arg1: i32, %arg2: memref<256x256xi8, #tpu.memory_space<vmem>>, %arg3: memref<256x128xbf16, #tpu.memory_space<vmem>>, %arg4: memref<256x1xf32, #tpu.memory_space<vmem>>, %arg5: memref<256x128xbf16, #tpu.memory_space<vmem>>, %arg6: memref<1x128xf32, #tpu.memory_space<vmem>>, %arg7: memref<128x128xbf16, #tpu.memory_space<vmem>>, %arg8: memref<1x128xf32, #tpu.memory_space<vmem>>, %arg9: memref<1x128xf32, #tpu.memory_space<vmem>>, %arg10: memref<1x1xf32, #tpu.memory_space<smem>>, %arg11: memref<1x1x256xf32, #tpu.memory_space<vmem>>, %arg12: memref<256x128xf32, #tpu.memory_space<vmem>>) attributes {dimension_semantics = [#tpu.dimension_semantics<parallel>, #tpu.dimension_semantics<arbitrary>], iteration_bounds = array<i64: 2, 2>, scalar_prefetch = 0 : i64, scratch_operands = 1 : i64, tpu.core_type = #tpu.core_type<tc>, window_params = [{transform_indices = @transform_0, window_bounds = array<i64: 256, 256>}, {transform_indices = @transform_1, window_bounds = array<i64: 256, 128>}, {transform_indices = @transform_2, window_bounds = array<i64: 256, 1>}, {transform_indices = @transform_3, window_bounds = array<i64: 256, 128>}, {pipeline_mode = #tpu.pipeline_mode<synchronous>, transform_indices = @transform_4, window_bounds = array<i64: 1, 128>}, {pipeline_mode = #tpu.pipeline_mode<synchronous>, transform_indices = @transform_5, window_bounds = array<i64: 128, 128>}, {pipeline_mode = #tpu.pipeline_mode<synchronous>, transform_indices = @transform_6, window_bounds = array<i64: 1, 128>}, {pipeline_mode = #tpu.pipeline_mode<synchronous>, transform_indices = @transform_7, window_bounds = array<i64: 1, 128>}, {transform_indices = @transform_8, window_bounds = array<i64: 1, 1>}, {transform_indices = @transform_9, window_bounds = array<i64: 1, 1, 256>}]} {
    %c0_i32 = arith.constant 0 : i32
    %0 = arith.cmpi eq, %arg1, %c0_i32 : i32
    %1 = arith.extui %0 : i1 to i32
    %c0_i32_0 = arith.constant 0 : i32
    %2 = arith.cmpi ne, %1, %c0_i32_0 : i32
    scf.if %2 {
      %cst_9 = arith.constant 0.000000e+00 : f32
      %13 = vector.broadcast %cst_9 : f32 to vector<256x128xf32>
      %c0_10 = arith.constant 0 : index
      %c0_11 = arith.constant 0 : index
      %14 = vector.load %arg12[%c0_10, %c0_11] : memref<256x128xf32, #tpu.memory_space<vmem>>, vector<256x128xf32>
      tpu.vector_store %arg12[%c0_10, %c0_11], %13 {strides = array<i32>} : memref<256x128xf32, #tpu.memory_space<vmem>>, vector<256x128xf32>,
    } else {
    }
    %c0 = arith.constant 0 : index
    %c0_1 = arith.constant 0 : index
    %3 = vector.load %arg2[%c0, %c0_1] : memref<256x256xi8, #tpu.memory_space<vmem>>, vector<256x256xi8>
    %4 = arith.sitofp %3 : vector<256x256xi8> to vector<256x256xbf16>
    %c0_2 = arith.constant 0 : index
    %c0_3 = arith.constant 0 : index
    %5 = vector.load %arg12[%c0_2, %c0_3] : memref<256x128xf32, #tpu.memory_space<vmem>>, vector<256x128xf32>
    %c0_4 = arith.constant 0 : index
    %c0_5 = arith.constant 0 : index
    %6 = vector.load %arg3[%c0_4, %c0_5] : memref<256x128xbf16, #tpu.memory_space<vmem>>, vector<256x128xbf16>
    %cst = arith.constant dense<0.000000e+00> : vector<256x128xf32>
    %7 = tpu.matmul %4, %6, %cst {dimension_numbers = #tpu.dot_dimension_numbers<[1], [0], [0], [1], [0, 0, 1, 1], [], []>} : vector<256x256xbf16>, vector<256x128xbf16>, vector<256x128xf32> -> vector<256x128xf32>
    %8 = arith.addf %5, %7 : vector<256x128xf32>
    %c0_6 = arith.constant 0 : index
    %c0_7 = arith.constant 0 : index
    %9 = vector.load %arg12[%c0_6, %c0_7] : memref<256x128xf32, #tpu.memory_space<vmem>>, vector<256x128xf32>
    tpu.vector_store %arg12[%c0_6, %c0_7], %8 {strides = array<i32>} : memref<256x128xf32, #tpu.memory_space<vmem>>, vector<256x128xf32>,
    %c1_i32 = arith.constant 1 : i32
    %10 = arith.cmpi eq, %arg1, %c1_i32 : i32
    %11 = arith.extui %10 : i1 to i32
    %c0_i32_8 = arith.constant 0 : i32
    %12 = arith.cmpi ne, %11, %c0_i32_8 : i32
    scf.if %12 {
      %c0_9 = arith.constant 0 : index
      %c0_10 = arith.constant 0 : index
      %13 = vector.load %arg12[%c0_9, %c0_10] : memref<256x128xf32, #tpu.memory_space<vmem>>, vector<256x128xf32>
      %c0_11 = arith.constant 0 : index
      %c0_12 = arith.constant 0 : index
      %14 = vector.load %arg4[%c0_11, %c0_12] : memref<256x1xf32, #tpu.memory_space<vmem>>, vector<256x1xf32>
      %15 = vector.broadcast %14 : vector<256x1xf32> to vector<256x128xf32>
      %16 = arith.mulf %13, %15 : vector<256x128xf32>
      %c0_13 = arith.constant 0 : index
      %c0_14 = arith.constant 0 : index
      %17 = vector.load %arg6[%c0_13, %c0_14] : memref<1x128xf32, #tpu.memory_space<vmem>>, vector<1x128xf32>
      %18 = vector.broadcast %17 : vector<1x128xf32> to vector<256x128xf32>
      %19 = arith.addf %16, %18 : vector<256x128xf32>
      %cst_15 = arith.constant 0.000000e+00 : f32
      %20 = vector.broadcast %cst_15 : f32 to vector<256x128xf32>
      %21 = arith.maximumf %19, %20 : vector<256x128xf32>
      %c0_16 = arith.constant 0 : index
      %c0_17 = arith.constant 0 : index
      %22 = vector.load %arg5[%c0_16, %c0_17] : memref<256x128xbf16, #tpu.memory_space<vmem>>, vector<256x128xbf16>
      %23 = arith.extf %22 : vector<256x128xbf16> to vector<256x128xf32>
      %24 = arith.mulf %21, %23 : vector<256x128xf32>
      %25 = arith.truncf %24 : vector<256x128xf32> to vector<256x128xbf16>
      %c0_18 = arith.constant 0 : index
      %c0_19 = arith.constant 0 : index
      %26 = vector.load %arg7[%c0_18, %c0_19] : memref<128x128xbf16, #tpu.memory_space<vmem>>, vector<128x128xbf16>
      %cst_20 = arith.constant dense<0.000000e+00> : vector<256x128xf32>
      %27 = tpu.matmul %25, %26, %cst_20 {dimension_numbers = #tpu.dot_dimension_numbers<[1], [0], [0], [1], [0, 0, 1, 1], [], []>} : vector<256x128xbf16>, vector<128x128xbf16>, vector<256x128xf32> -> vector<256x128xf32>
      %c0_21 = arith.constant 0 : index
      %c0_22 = arith.constant 0 : index
      %28 = vector.load %arg8[%c0_21, %c0_22] : memref<1x128xf32, #tpu.memory_space<vmem>>, vector<1x128xf32>
      %29 = vector.broadcast %28 : vector<1x128xf32> to vector<256x128xf32>
      %30 = arith.addf %27, %29 : vector<256x128xf32>
      %cst_23 = arith.constant 0.000000e+00 : f32
      %31 = vector.broadcast %cst_23 : f32 to vector<256x128xf32>
      %32 = arith.maximumf %30, %31 : vector<256x128xf32>
      %c0_24 = arith.constant 0 : index
      %c0_25 = arith.constant 0 : index
      %33 = vector.load %arg9[%c0_24, %c0_25] : memref<1x128xf32, #tpu.memory_space<vmem>>, vector<1x128xf32>
      %34 = vector.broadcast %33 : vector<1x128xf32> to vector<256x128xf32>
      %35 = arith.mulf %32, %34 : vector<256x128xf32>
      %cst_26 = arith.constant dense<0.000000e+00> : vector<256xf32>
      %36 = vector.multi_reduction <add>, %35, %cst_26 [1] : vector<256x128xf32> to vector<256xf32>
      %c0_27 = arith.constant 0 : index
      %c0_28 = arith.constant 0 : index
      %37 = memref.load %arg10[%c0_27, %c0_28] : memref<1x1xf32, #tpu.memory_space<smem>>
      %38 = vector.broadcast %37 : f32 to vector<256xf32>
      %39 = arith.addf %36, %38 : vector<256xf32>
      %40 = vector.shape_cast %39 : vector<256xf32> to vector<1x1x256xf32>
      %c0_29 = arith.constant 0 : index
      %c0_30 = arith.constant 0 : index
      %c0_31 = arith.constant 0 : index
      %41 = vector.load %arg11[%c0_29, %c0_30, %c0_31] : memref<1x1x256xf32, #tpu.memory_space<vmem>>, vector<1x1x256xf32>
      tpu.vector_store %arg11[%c0_29, %c0_30, %c0_31], %40 {strides = array<i32>} : memref<1x1x256xf32, #tpu.memory_space<vmem>>, vector<1x1x256xf32>,
    } else {
    }
    return
  }
  func.func @transform_0(%arg0: i32, %arg1: i32) -> (i32, i32) {
    %c0_i32 = arith.constant 0 : i32
    return %arg0, %arg1 : i32, i32
  }
  func.func @transform_1(%arg0: i32, %arg1: i32) -> (i32, i32) {
    %c0_i32 = arith.constant 0 : i32
    %c0_i32_0 = arith.constant 0 : i32
    return %arg1, %c0_i32 : i32, i32
  }
  func.func @transform_2(%arg0: i32, %arg1: i32) -> (i32, i32) {
    %c0_i32 = arith.constant 0 : i32
    %c0_i32_0 = arith.constant 0 : i32
    return %arg0, %c0_i32 : i32, i32
  }
  func.func @transform_3(%arg0: i32, %arg1: i32) -> (i32, i32) {
    %c0_i32 = arith.constant 0 : i32
    %c0_i32_0 = arith.constant 0 : i32
    return %arg0, %c0_i32 : i32, i32
  }
  func.func @transform_4(%arg0: i32, %arg1: i32) -> (i32, i32) {
    %c0_i32 = arith.constant 0 : i32
    %c0_i32_0 = arith.constant 0 : i32
    %c0_i32_1 = arith.constant 0 : i32
    return %c0_i32, %c0_i32_0 : i32, i32
  }
  func.func @transform_5(%arg0: i32, %arg1: i32) -> (i32, i32) {
    %c0_i32 = arith.constant 0 : i32
    %c0_i32_0 = arith.constant 0 : i32
    %c0_i32_1 = arith.constant 0 : i32
    return %c0_i32, %c0_i32_0 : i32, i32
  }
  func.func @transform_6(%arg0: i32, %arg1: i32) -> (i32, i32) {
    %c0_i32 = arith.constant 0 : i32
    %c0_i32_0 = arith.constant 0 : i32
    %c0_i32_1 = arith.constant 0 : i32
    return %c0_i32, %c0_i32_0 : i32, i32
  }
  func.func @transform_7(%arg0: i32, %arg1: i32) -> (i32, i32) {
    %c0_i32 = arith.constant 0 : i32
    %c0_i32_0 = arith.constant 0 : i32
    %c0_i32_1 = arith.constant 0 : i32
    return %c0_i32, %c0_i32_0 : i32, i32
  }
  func.func @transform_8(%arg0: i32, %arg1: i32) -> (i32, i32) {
    %c0_i32 = arith.constant 0 : i32
    %c0_i32_0 = arith.constant 0 : i32
    %c0_i32_1 = arith.constant 0 : i32
    return %c0_i32, %c0_i32_0 : i32, i32
  }
  func.func @transform_9(%arg0: i32, %arg1: i32) -> (i32, i32, i32) {
    %c0_i32 = arith.constant 0 : i32
    %c0_i32_0 = arith.constant 0 : i32
    %c0_i32_1 = arith.constant 0 : i32
    return %arg0, %c0_i32, %c0_i32_0 : i32, i32, i32
  }
}

</mosaic_0001>

<llo_original>
// kernel: tpu_custom_call.1
$region0: #{tpu_custom_call.1}
  #allocation0 [shape = 'u32[]', space=smem, size = 0x4, offset = 0x4, fixed_abs, tag = 'smem constant byte address 0x4 - core index']
  #allocation1 [shape = 'u32[144,128]{1,0:T(1,128)}', space=vmem, size = 0x12000, scoped, tag = 'internal scratch']
  #allocation2 [shape = 'f32[256,128]{1,0:T(8,128)}', space=vmem, size = 0x20000, scoped, tag = 'scratch operand']
  #allocation3 [shape = 'f32[1,1]{1,0:T(1,128)S(6)}', space=smem, size = 0x200, scoped, tag = 'scoped memory for tpu_custom_call.1']
  %s0 = inlined_call_operand.vmem [shape: s8[512,512], index: 0, kind: input, shape index: {}]
  %s1 = inlined_call_operand.hbm [shape: bf16[512,128], index: 1, kind: input, shape index: {}]
  %s2 = inlined_call_operand.vmem [shape: f32[512,1], index: 2, kind: input, shape index: {}]
  %s3 = inlined_call_operand.hbm [shape: bf16[512,128], index: 3, kind: input, shape index: {}]
  %s4 = inlined_call_operand.vmem [shape: f32[1,128], index: 4, kind: input, shape index: {}]
  %s5 = inlined_call_operand.hbm [shape: bf16[128,128], index: 5, kind: input, shape index: {}]
  %s6 = inlined_call_operand.vmem [shape: f32[1,128], index: 6, kind: input, shape index: {}]
  %s7 = inlined_call_operand.vmem [shape: f32[1,128], index: 7, kind: input, shape index: {}]
  %s8 = inlined_call_operand.<no memory space> [shape: f32[1,1], index: 8, kind: input, shape index: {}]
  %s9 = inlined_call_operand.hbm [shape: f32[2,1,256], index: 9, kind: output, shape index: {}]
  %s10 = sld [smem:[#allocation0]]
  $region112: #{tpu_custom_call.1} parent=0
    _
  %s12 = ssub.s32 1, %s10
  %s13 = scalar_select 0, %s12, %s10
  %14 = sst [smem:[#allocation3]] %s8
  $region1: #{tpu_custom_call.1} parent=0
    #allocation4 [shape = 'u8[131072]{0}', space=vmem, size = 0x20000, scoped, tag = 'input window, operand 0']
    #allocation5 [shape = 'u8[131072]{0}', space=vmem, size = 0x20000, scoped, tag = 'input window, operand 1']
    #allocation6 [shape = 's32[2]{0}', space=sflag, size = 0x8, scoped, tag = 'scoped memory for tpu_custom_call.1']
    #allocation7 [shape = 's32[2]{0}', space=sflag, size = 0x8, scoped, tag = 'scoped memory for tpu_custom_call.1']
    #allocation8 [shape = 'u8[131072]{0}', space=vmem, size = 0x20000, scoped, tag = 'input window, operand 3']
    #allocation9 [shape = 's32[2]{0}', space=sflag, size = 0x8, scoped, tag = 'scoped memory for tpu_custom_call.1']
    #allocation10 [shape = 'u8[32768]{0}', space=vmem, size = 0x8000, scoped, tag = 'input window, operand 5, single buffered']
    #allocation11 [shape = 'u8[2048]{0}', space=vmem, size = 0x800, scoped, tag = 'output window, operand 0']
    %15 = vsyncpa [#allocation6], 0
    %s16 = scalar_lea.sflag [#allocation6], 1
    %17 = vsyncpa %s16, 0
    %18 = vsyncpa [#allocation9], 0
    %s19 = scalar_lea.sflag [#allocation9], 1
    %20 = vsyncpa %s19, 0
    %21 = vsyncpa [#allocation7], 0
    %s22 = scalar_lea.sflag [#allocation7], 1
    %23 = vsyncpa %s22, 0
    loop: start=0, step=1, limit=6
    $region2: #{tpu_custom_call.1} parent=1 // loop_pre_header
      _
    $region3: #{tpu_custom_call.1} parent=1 // loop_header
      %s25 = sphi 0, %s29
      %p26 = scmp.ge.s32.totalorder %s25, 6
      %s32 = sphi 0, %s44
      %s33 = sphi 0, %s40
      %s34 = sphi 0, %s32
      %s35 = sphi 0, %s33
      %s36 = sphi 0, %s34
      %s37 = sphi 0, %s35
      %s49 = sphi 0, %s51
      %s52 = sphi 0, %s49
      %s53 = sphi 0, %s52
      %s69 = sphi 0, %s53
      %s75 = sphi 0, %s77
      %s78 = sphi 0, %s75
      %s79 = sphi 0, %s78
      %s95 = sphi 0, %s79
      %s101 = sphi 0, %s103
      %s104 = sphi 0, %s101
      %s105 = sphi 0, %s104
      %s121 = sphi 0, %s105
      %s127 = sphi 0, %s129
      %s130 = sphi 0, %s127
      %s131 = sphi 0, %s130
      %s147 = sphi 0, %s131
      %s151 = sphi 0, %s151
      %s153 = sphi 0, %s151
      %s154 = sphi 0, %s153
      %s168 = sphi 0, %s154
      %s172 = sphi 0, %s172
      %s174 = sphi 0, %s172
      %s175 = sphi 0, %s174
      %s189 = sphi 0, %s175
      %s193 = sphi 0, %s193
      %s195 = sphi 0, %s193
      %s196 = sphi 0, %s195
      %s210 = sphi 0, %s196
      %s214 = sphi 0, %s214
      %s216 = sphi 0, %s214
      %s217 = sphi 0, %s216
      %s231 = sphi 0, %s217
      %s235 = sphi 0, %s235
      %s237 = sphi 0, %s235
      %s238 = sphi 0, %s237
      %s252 = sphi 0, %s238
      %s258 = sphi 0, %s260
      %s261 = sphi 0, %s258
      %s262 = sphi 0, %s261
      %s278 = sphi 0, %s262
    $region4: #{tpu_custom_call.1} parent=1 // loop_header_branch
      %28 = sbr.rel (%p26) target = $region8
    $region5: #{tpu_custom_call.1} parent=1 // loop_body
      %s30 = ssub.s32 %s25, 1
      %s31 = ssub.s32 %s25, 2
      %s38 = sadd.s32 1, %s33
      %p39 = scmp.ge.s32.totalorder %s38, 2
      %s40 = scalar_select %p39, 0, %s38
      %s41 = sadd.s32 1, %s32
      %s42 = scalar_select %p39, %s41, %s32
      %p43 = scmp.ge.s32.totalorder %s42, 2
      %s44 = scalar_select %p43, 0, %s42
      %s45 = ssub.s32 %s32, %s44
      %s46 = ssub.s32 %s33, %s40
      %s47 = sor.u32 %s45, %s46
      %p48 = scmp.eq.s32.totalorder %s47, 0
      %s50 = sadd.s32 %s49, 1
      %s51 = scalar_select %p48, %s49, %s50
      %p54 = pneg %p48
      %p55 = scmp.eq.s32.totalorder %s25, 3
      %p56 = por %p54, %p55
      %p57 = scmp.ne.s32.totalorder %s49, %s52
      %p58 = scmp.eq.s32.totalorder %s25, 0
      %p59 = por %p57, %p58
      %p60 = scmp.ne.s32.totalorder %s49, %s52
      %p61 = scmp.eq.s32.totalorder %s30, 3
      %p62 = por %p60, %p61
      %p63 = scmp.ne.s32.totalorder %s52, %s53
      %p64 = scmp.eq.s32.totalorder %s30, 0
      %p65 = por %p63, %p64
      %p66 = scmp.ne.s32.totalorder %s52, %s53
      %p67 = scmp.eq.s32.totalorder %s31, 3
      %p68 = por %p66, %p67
      %p70 = scmp.ne.s32.totalorder %s53, %s69
      %p71 = scmp.eq.s32.totalorder %s31, 0
      %p72 = por %p70, %p71
      %s73 = ssub.s32 %s33, %s40
      %p74 = scmp.eq.s32.totalorder %s73, 0
      %s76 = sadd.s32 %s75, 1
      %s77 = scalar_select %p74, %s75, %s76
      %p80 = pneg %p74
      %p81 = scmp.eq.s32.totalorder %s25, 3
      %p82 = por %p80, %p81
      %p83 = scmp.ne.s32.totalorder %s75, %s78
      %p84 = scmp.eq.s32.totalorder %s25, 0
      %p85 = por %p83, %p84
      %p86 = scmp.ne.s32.totalorder %s75, %s78
      %p87 = scmp.eq.s32.totalorder %s30, 3
      %p88 = por %p86, %p87
      %p89 = scmp.ne.s32.totalorder %s78, %s79
      %p90 = scmp.eq.s32.totalorder %s30, 0
      %p91 = por %p89, %p90
      %p92 = scmp.ne.s32.totalorder %s78, %s79
      %p93 = scmp.eq.s32.totalorder %s31, 3
      %p94 = por %p92, %p93
      %p96 = scmp.ne.s32.totalorder %s79, %s95
      %p97 = scmp.eq.s32.totalorder %s31, 0
      %p98 = por %p96, %p97
      %s99 = ssub.s32 %s32, %s44
      %p100 = scmp.eq.s32.totalorder %s99, 0
      %s102 = sadd.s32 %s101, 1
      %s103 = scalar_select %p100, %s101, %s102
      %p106 = pneg %p100
      %p107 = scmp.eq.s32.totalorder %s25, 3
      %p108 = por %p106, %p107
      %p109 = scmp.ne.s32.totalorder %s101, %s104
      %p110 = scmp.eq.s32.totalorder %s25, 0
      %p111 = por %p109, %p110
      %p112 = scmp.ne.s32.totalorder %s101, %s104
      %p113 = scmp.eq.s32.totalorder %s30, 3
      %p114 = por %p112, %p113
      %p115 = scmp.ne.s32.totalorder %s104, %s105
      %p116 = scmp.eq.s32.totalorder %s30, 0
      %p117 = por %p115, %p116
      %p118 = scmp.ne.s32.totalorder %s104, %s105
      %p119 = scmp.eq.s32.totalorder %s31, 3
      %p120 = por %p118, %p119
      %p122 = scmp.ne.s32.totalorder %s105, %s121
      %p123 = scmp.eq.s32.totalorder %s31, 0
      %p124 = por %p122, %p123
      %s125 = ssub.s32 %s32, %s44
      %p126 = scmp.eq.s32.totalorder %s125, 0
      %s128 = sadd.s32 %s127, 1
      %s129 = scalar_select %p126, %s127, %s128
      %p132 = pneg %p126
      %p133 = scmp.eq.s32.totalorder %s25, 3
      %p134 = por %p132, %p133
      %p135 = scmp.ne.s32.totalorder %s127, %s130
      %p136 = scmp.eq.s32.totalorder %s25, 0
      %p137 = por %p135, %p136
      %p138 = scmp.ne.s32.totalorder %s127, %s130
      %p139 = scmp.eq.s32.totalorder %s30, 3
      %p140 = por %p138, %p139
      %p141 = scmp.ne.s32.totalorder %s130, %s131
      %p142 = scmp.eq.s32.totalorder %s30, 0
      %p143 = por %p141, %p142
      %p144 = scmp.ne.s32.totalorder %s130, %s131
      %p145 = scmp.eq.s32.totalorder %s31, 3
      %p146 = por %p144, %p145
      %p148 = scmp.ne.s32.totalorder %s131, %s147
      %p149 = scmp.eq.s32.totalorder %s31, 0
      %p150 = por %p148, %p149
      %s152 = sadd.s32 %s151, 1
      %p155 = scmp.eq.s32.totalorder %s25, 3
      %p156 = scmp.ne.s32.totalorder %s151, %s153
      %p157 = scmp.eq.s32.totalorder %s25, 0
      %p158 = por %p156, %p157
      %p159 = scmp.ne.s32.totalorder %s151, %s153
      %p160 = scmp.eq.s32.totalorder %s30, 3
      %p161 = por %p159, %p160
      %p162 = scmp.ne.s32.totalorder %s153, %s154
      %p163 = scmp.eq.s32.totalorder %s30, 0
      %p164 = por %p162, %p163
      %p165 = scmp.ne.s32.totalorder %s153, %s154
      %p166 = scmp.eq.s32.totalorder %s31, 3
      %p167 = por %p165, %p166
      %p169 = scmp.ne.s32.totalorder %s154, %s168
      %p170 = scmp.eq.s32.totalorder %s31, 0
      %p171 = por %p169, %p170
      %s173 = sadd.s32 %s172, 1
      %p176 = scmp.eq.s32.totalorder %s25, 3
      %p177 = scmp.ne.s32.totalorder %s172, %s174
      %p178 = scmp.eq.s32.totalorder %s25, 0
      %p179 = por %p177, %p178
      %p180 = scmp.ne.s32.totalorder %s172, %s174
      %p181 = scmp.eq.s32.totalorder %s30, 3
      %p182 = por %p180, %p181
      %p183 = scmp.ne.s32.totalorder %s174, %s175
      %p184 = scmp.eq.s32.totalorder %s30, 0
      %p185 = por %p183, %p184
      %p186 = scmp.ne.s32.totalorder %s174, %s175
      %p187 = scmp.eq.s32.totalorder %s31, 3
      %p188 = por %p186, %p187
      %p190 = scmp.ne.s32.totalorder %s175, %s189
      %p191 = scmp.eq.s32.totalorder %s31, 0
      %p192 = por %p190, %p191
      %s194 = sadd.s32 %s193, 1
      %p197 = scmp.eq.s32.totalorder %s25, 3
      %p198 = scmp.ne.s32.totalorder %s193, %s195
      %p199 = scmp.eq.s32.totalorder %s25, 0
      %p200 = por %p198, %p199
      %p201 = scmp.ne.s32.totalorder %s193, %s195
      %p202 = scmp.eq.s32.totalorder %s30, 3
      %p203 = por %p201, %p202
      %p204 = scmp.ne.s32.totalorder %s195, %s196
      %p205 = scmp.eq.s32.totalorder %s30, 0
      %p206 = por %p204, %p205
      %p207 = scmp.ne.s32.totalorder %s195, %s196
      %p208 = scmp.eq.s32.totalorder %s31, 3
      %p209 = por %p207, %p208
      %p211 = scmp.ne.s32.totalorder %s196, %s210
      %p212 = scmp.eq.s32.totalorder %s31, 0
      %p213 = por %p211, %p212
      %s215 = sadd.s32 %s214, 1
      %p218 = scmp.eq.s32.totalorder %s25, 3
      %p219 = scmp.ne.s32.totalorder %s214, %s216
      %p220 = scmp.eq.s32.totalorder %s25, 0
      %p221 = por %p219, %p220
      %p222 = scmp.ne.s32.totalorder %s214, %s216
      %p223 = scmp.eq.s32.totalorder %s30, 3
      %p224 = por %p222, %p223
      %p225 = scmp.ne.s32.totalorder %s216, %s217
      %p226 = scmp.eq.s32.totalorder %s30, 0
      %p227 = por %p225, %p226
      %p228 = scmp.ne.s32.totalorder %s216, %s217
      %p229 = scmp.eq.s32.totalorder %s31, 3
      %p230 = por %p228, %p229
      %p232 = scmp.ne.s32.totalorder %s217, %s231
      %p233 = scmp.eq.s32.totalorder %s31, 0
      %p234 = por %p232, %p233
      %s236 = sadd.s32 %s235, 1
      %p239 = scmp.eq.s32.totalorder %s25, 3
      %p240 = scmp.ne.s32.totalorder %s235, %s237
      %p241 = scmp.eq.s32.totalorder %s25, 0
      %p242 = por %p240, %p241
      %p243 = scmp.ne.s32.totalorder %s235, %s237
      %p244 = scmp.eq.s32.totalorder %s30, 3
      %p245 = por %p243, %p244
      %p246 = scmp.ne.s32.totalorder %s237, %s238
      %p247 = scmp.eq.s32.totalorder %s30, 0
      %p248 = por %p246, %p247
      %p249 = scmp.ne.s32.totalorder %s237, %s238
      %p250 = scmp.eq.s32.totalorder %s31, 3
      %p251 = por %p249, %p250
      %p253 = scmp.ne.s32.totalorder %s238, %s252
      %p254 = scmp.eq.s32.totalorder %s31, 0
      %p255 = por %p253, %p254
      %s256 = ssub.s32 %s32, %s44
      %p257 = scmp.eq.s32.totalorder %s256, 0
      %s259 = sadd.s32 %s258, 1
      %s260 = scalar_select %p257, %s258, %s259
      %p263 = pneg %p257
      %p264 = scmp.eq.s32.totalorder %s25, 3
      %p265 = por %p263, %p264
      %p266 = scmp.ne.s32.totalorder %s258, %s261
      %p267 = scmp.eq.s32.totalorder %s25, 0
      %p268 = por %p266, %p267
      %p269 = scmp.ne.s32.totalorder %s258, %s261
      %p270 = scmp.eq.s32.totalorder %s30, 3
      %p271 = por %p269, %p270
      %p272 = scmp.ne.s32.totalorder %s261, %s262
      %p273 = scmp.eq.s32.totalorder %s30, 0
      %p274 = por %p272, %p273
      %p275 = scmp.ne.s32.totalorder %s261, %s262
      %p276 = scmp.eq.s32.totalorder %s31, 3
      %p277 = por %p275, %p276
      %p279 = scmp.ne.s32.totalorder %s262, %s278
      %p280 = scmp.eq.s32.totalorder %s31, 0
      %p281 = por %p279, %p280
      %p282 = scmp.le.s32.totalorder 1, %s25
      %p283 = scmp.lt.s32.totalorder %s25, 5
      %p284 = pnand %p282, %p283
      %p285 = pneg %p284
      // Predicated region
      $region9: #{tpu_custom_call.1} parent=5 // pred_check
        _
      $region10: #{tpu_custom_call.1} parent=5 // pred_check_branch
        %287 = sbr.rel (%p284) target = $region12
      $region11: #{tpu_custom_call.1} parent=5 // pred_region
        %s288 = ssub.s32 %s25, 1
        // Predicated region
        $region13: #{tpu_custom_call.1} parent=11 // pred_check
          %p289 = pneg %p164
        $region14: #{tpu_custom_call.1} parent=11 // pred_check_branch
          %291 = sbr.rel (%p289) target = $region16
        $region15: #{tpu_custom_call.1} parent=11 // pred_region
          _
        $region16: #{tpu_custom_call.1} parent=11 // pred_fallthru
          _
        // Predicated region
        $region17: #{tpu_custom_call.1} parent=11 // pred_check
          %p292 = pneg %p185
        $region18: #{tpu_custom_call.1} parent=11 // pred_check_branch
          %294 = sbr.rel (%p292) target = $region20
        $region19: #{tpu_custom_call.1} parent=11 // pred_region
          %s296 = ssub.s32 1024, 1024
          %297 = vsyncadd [#allocation9], %s296
          %s298 = sshll.u32 [#allocation10], 4
          %s299 = int_to_ptr.vmem [resolvable:$true] %s298
          %304 = dma.hbm_to_vmem [thread:$0]  %s5, 1024, %s299, [#allocation9], 64, 64, 4
        $region20: #{tpu_custom_call.1} parent=11 // pred_fallthru
          _
        // Predicated region
        $region21: #{tpu_custom_call.1} parent=11 // pred_check
          %p305 = pneg %p206
        $region22: #{tpu_custom_call.1} parent=11 // pred_check_branch
          %307 = sbr.rel (%p305) target = $region24
        $region23: #{tpu_custom_call.1} parent=11 // pred_region
          _
        $region24: #{tpu_custom_call.1} parent=11 // pred_fallthru
          _
        // Predicated region
        $region25: #{tpu_custom_call.1} parent=11 // pred_check
          %p308 = pneg %p227
        $region26: #{tpu_custom_call.1} parent=11 // pred_check_branch
          %310 = sbr.rel (%p308) target = $region28
        $region27: #{tpu_custom_call.1} parent=11 // pred_region
          _
        $region28: #{tpu_custom_call.1} parent=11 // pred_fallthru
          _
        // Predicated region
        $region29: #{tpu_custom_call.1} parent=11 // pred_check
          %p311 = pneg %p248
        $region30: #{tpu_custom_call.1} parent=11 // pred_check_branch
          %313 = sbr.rel (%p311) target = $region32
        $region31: #{tpu_custom_call.1} parent=11 // pred_region
          _
        $region32: #{tpu_custom_call.1} parent=11 // pred_fallthru
          _
      $region12: #{tpu_custom_call.1} parent=5 // pred_fallthru
        _
      %p314 = scmp.lt.s32.totalorder %s25, 4
      // Predicated region
      $region33: #{tpu_custom_call.1} parent=5 // pred_check
        %p315 = pneg %p314
      $region34: #{tpu_custom_call.1} parent=5 // pred_check_branch
        %317 = sbr.rel (%p315) target = $region36
      $region35: #{tpu_custom_call.1} parent=5 // pred_region
        // Predicated region
        $region37: #{tpu_custom_call.1} parent=35 // pred_check
          %p318 = pneg %p59
        $region38: #{tpu_custom_call.1} parent=35 // pred_check_branch
          %320 = sbr.rel (%p318) target = $region40
        $region39: #{tpu_custom_call.1} parent=35 // pred_region
          %s321 = sand.u32 %s49, 1
          %s322 = sand.u32 %s49, 1
          %s323 = smul.addr %s322, 128
          %s324 = scalar_lea.vmem [#allocation4], %s323
          %s325 = smul.u32 8, %s32
          %s326 = smul.u32 2, %s33
          %s327 = smul.addr %s325, 4
          %s328 = sadd.s32 %s326, %s327
          %s329 = smul.addr %s328, 8
          %s330 = scalar_lea.vmem %s0, %s329
          // Predicated region
          $region41: #{tpu_custom_call.1} parent=39 // pred_check
            _
          $region42: #{tpu_custom_call.1} parent=39 // pred_check_branch
            %332 = sbr.rel (0) target = $region44
          $region43: #{tpu_custom_call.1} parent=39 // pred_region
            // Predicated region
            $region45: #{tpu_custom_call.1} parent=43 // pred_check
              _
            $region46: #{tpu_custom_call.1} parent=43 // pred_check_branch
              %334 = sbr.rel (0) target = $region48
            $region47: #{tpu_custom_call.1} parent=43 // pred_region
              loop: start=0, step=1, limit=1
              $region49: #{tpu_custom_call.1} parent=47 // loop_pre_header
                _
              $region50: #{tpu_custom_call.1} parent=47 // loop_header
                %s336 = sphi 0, %s340
                %p337 = scmp.ge.s32.totalorder %s336, 1
                %s341 = sphi %s330, %s330
                %s342 = sphi %s324, %s324
              $region51: #{tpu_custom_call.1} parent=47 // loop_header_branch
                %339 = sbr.rel (%p337) target = $region55
              $region52: #{tpu_custom_call.1} parent=47 // loop_body
                %v343 = vld [vmem:[%s341] sm:$0xff]
                %344 = vst [vmem:[%s342] sm:$0xff] %v343
                %v345 = vld [vmem:[%s341 + $0x8] sm:$0xff]
                %346 = vst [vmem:[%s342 + $0x8] sm:$0xff] %v345
                %v347 = vld [vmem:[%s341 + $0x20] sm:$0xff]
                %348 = vst [vmem:[%s342 + $0x10] sm:$0xff] %v347
                %v349 = vld [vmem:[%s341 + $0x28] sm:$0xff]
                %350 = vst [vmem:[%s342 + $0x18] sm:$0xff] %v349
                %v351 = vld [vmem:[%s341 + $0x40] sm:$0xff]
                %352 = vst [vmem:[%s342 + $0x20] sm:$0xff] %v351
                %v353 = vld [vmem:[%s341 + $0x48] sm:$0xff]
                %354 = vst [vmem:[%s342 + $0x28] sm:$0xff] %v353
                %v355 = vld [vmem:[%s341 + $0x60] sm:$0xff]
                %356 = vst [vmem:[%s342 + $0x30] sm:$0xff] %v355
                %v357 = vld [vmem:[%s341 + $0x68] sm:$0xff]
                %358 = vst [vmem:[%s342 + $0x38] sm:$0xff] %v357
                %v359 = vld [vmem:[%s341 + $0x80] sm:$0xff]
                %360 = vst [vmem:[%s342 + $0x40] sm:$0xff] %v359
                %v361 = vld [vmem:[%s341 + $0x88] sm:$0xff]
                %362 = vst [vmem:[%s342 + $0x48] sm:$0xff] %v361
                %v363 = vld [vmem:[%s341 + $0xa0] sm:$0xff]
                %364 = vst [vmem:[%s342 + $0x50] sm:$0xff] %v363
                %v365 = vld [vmem:[%s341 + $0xa8] sm:$0xff]
                %366 = vst [vmem:[%s342 + $0x58] sm:$0xff] %v365
                %v367 = vld [vmem:[%s341 + $0xc0] sm:$0xff]
                %368 = vst [vmem:[%s342 + $0x60] sm:$0xff] %v367
                %v369 = vld [vmem:[%s341 + $0xc8] sm:$0xff]
                %370 = vst [vmem:[%s342 + $0x68] sm:$0xff] %v369
                %v371 = vld [vmem:[%s341 + $0xe0] sm:$0xff]
                %372 = vst [vmem:[%s342 + $0x70] sm:$0xff] %v371
                %v373 = vld [vmem:[%s341 + $0xe8] sm:$0xff]
                %374 = vst [vmem:[%s342 + $0x78] sm:$0xff] %v373
              $region53: #{tpu_custom_call.1} parent=47 // loop_footer
                %s340 = sadd.s32 1, %s336
              $region54: #{tpu_custom_call.1} parent=47 // loop_footer_branch
                %335 = sbr.rel target = $region50
              $region55: #{tpu_custom_call.1} parent=47 // loop_exit
                _
            $region48: #{tpu_custom_call.1} parent=43 // pred_fallthru
              _
            // Predicated region
            $region56: #{tpu_custom_call.1} parent=43 // pred_check
              _
            $region57: #{tpu_custom_call.1} parent=43 // pred_check_branch
              %376 = sbr.rel target = $region59
            $region58: #{tpu_custom_call.1} parent=43 // pred_region
              _
            $region59: #{tpu_custom_call.1} parent=43 // pred_fallthru
              _
          $region44: #{tpu_custom_call.1} parent=39 // pred_fallthru
            _
          %377 = vnop
        $region40: #{tpu_custom_call.1} parent=35 // pred_fallthru
          _
        // Predicated region
        $region60: #{tpu_custom_call.1} parent=35 // pred_check
          %p378 = pneg %p85
        $region61: #{tpu_custom_call.1} parent=35 // pred_check_branch
          %380 = sbr.rel (%p378) target = $region63
        $region62: #{tpu_custom_call.1} parent=35 // pred_region
          %s381 = sand.u32 %s75, 1
          %s382 = scalar_lea.sflag [#allocation6], %s381
          %s383 = sand.u32 %s75, 1
          %s384 = smul.addr %s383, 128
          %s385 = scalar_lea.vmem [#allocation5], %s384
          %s386 = smul.u32 32, %s33
          %s388 = ssub.s32 2048, 2048
          %389 = vsyncadd %s382, %s388
          %s390 = smul.addr %s386, 64
          %s391 = scalar_lea.hbm %s1, %s390
          %s392 = sshll.u32 %s385, 4
          %s393 = int_to_ptr.vmem [resolvable:$true] %s392
          %398 = dma.hbm_to_vmem [thread:$0]  %s391, 2048, %s393, %s382, 64, 64, 4
        $region63: #{tpu_custom_call.1} parent=35 // pred_fallthru
          _
        // Predicated region
        $region64: #{tpu_custom_call.1} parent=35 // pred_check
          %p399 = pneg %p111
        $region65: #{tpu_custom_call.1} parent=35 // pred_check_branch
          %401 = sbr.rel (%p399) target = $region67
        $region66: #{tpu_custom_call.1} parent=35 // pred_region
          %s402 = smul.u32 32, %s32
          %p403 = scmp.lt.s32.totalorder %s402, 63
          %s404 = scalar_select %p403, %s402, 63
          %s405 = smul.addr %s404, 8
          %s406 = scalar_lea.vmem %s2, %s405
          %s407 = smul.u32 32, %s32
        $region67: #{tpu_custom_call.1} parent=35 // pred_fallthru
          _
        // Predicated region
        $region68: #{tpu_custom_call.1} parent=35 // pred_check
          %p408 = pneg %p137
        $region69: #{tpu_custom_call.1} parent=35 // pred_check_branch
          %410 = sbr.rel (%p408) target = $region71
        $region70: #{tpu_custom_call.1} parent=35 // pred_region
          %s411 = sand.u32 %s25, 1
          %s412 = scalar_lea.sflag [#allocation9], %s411
          %s413 = sand.u32 %s127, 1
          %s414 = smul.addr %s413, 128
          %s415 = scalar_lea.vmem [#allocation8], %s414
          %s416 = smul.u32 32, %s32
          %s418 = ssub.s32 2048, 2048
          %419 = vsyncadd %s412, %s418
          %s420 = smul.addr %s416, 64
          %s421 = scalar_lea.hbm %s3, %s420
          %s422 = sshll.u32 %s415, 4
          %s423 = int_to_ptr.vmem [resolvable:$true] %s422
          %428 = dma.hbm_to_vmem [thread:$0]  %s421, 2048, %s423, %s412, 64, 64, 4
        $region71: #{tpu_custom_call.1} parent=35 // pred_fallthru
          _
      $region36: #{tpu_custom_call.1} parent=5 // pred_fallthru
        _
      %p429 = scmp.le.s32.totalorder 1, %s25
      %p430 = scmp.lt.s32.totalorder %s25, 5
      %p431 = pnand %p429, %p430
      %p432 = pneg %p431
      // Predicated region
      $region72: #{tpu_custom_call.1} parent=5 // pred_check
        _
      $region73: #{tpu_custom_call.1} parent=5 // pred_check_branch
        %434 = sbr.rel (%p431) target = $region75
      $region74: #{tpu_custom_call.1} parent=5 // pred_region
        %s435 = ssub.s32 %s25, 1
        %s436 = sand.u32 %s52, 1
        %s437 = sand.u32 %s52, 1
        %s438 = smul.addr %s437, 128
        %s439 = scalar_lea.vmem [#allocation4], %s438
        // Predicated region
        $region76: #{tpu_custom_call.1} parent=74 // pred_check
          %p440 = pneg %p65
        $region77: #{tpu_custom_call.1} parent=74 // pred_check_branch
          %442 = sbr.rel (%p440) target = $region79
        $region78: #{tpu_custom_call.1} parent=74 // pred_region
          _
        $region79: #{tpu_custom_call.1} parent=74 // pred_fallthru
          _
        %s443 = sand.u32 %s78, 1
        %s444 = scalar_lea.sflag [#allocation6], %s443
        %s445 = sand.u32 %s78, 1
        %s446 = smul.addr %s445, 128
        %s447 = scalar_lea.vmem [#allocation5], %s446
        // Predicated region
        $region80: #{tpu_custom_call.1} parent=74 // pred_check
          %p448 = pneg %p91
        $region81: #{tpu_custom_call.1} parent=74 // pred_check_branch
          %450 = sbr.rel (%p448) target = $region83
        $region82: #{tpu_custom_call.1} parent=74 // pred_region
          %451 = dma.done %s444, 2048
        $region83: #{tpu_custom_call.1} parent=74 // pred_fallthru
          _
        %s452 = sand.u32 %s30, 1
        %s453 = scalar_lea.sflag [#allocation9], %s452
        %s454 = sand.u32 %s130, 1
        %s455 = smul.addr %s454, 128
        %s456 = scalar_lea.vmem [#allocation8], %s455
        // Predicated region
        $region84: #{tpu_custom_call.1} parent=74 // pred_check
          %p457 = pneg %p143
        $region85: #{tpu_custom_call.1} parent=74 // pred_check_branch
          %459 = sbr.rel (%p457) target = $region87
        $region86: #{tpu_custom_call.1} parent=74 // pred_region
          %460 = dma.done %s453, 2048
        $region87: #{tpu_custom_call.1} parent=74 // pred_fallthru
          _
        // Predicated region
        $region88: #{tpu_custom_call.1} parent=74 // pred_check
          %p461 = pneg %p185
        $region89: #{tpu_custom_call.1} parent=74 // pred_check_branch
          %463 = sbr.rel (%p461) target = $region91
        $region90: #{tpu_custom_call.1} parent=74 // pred_region
          %464 = dma.done [#allocation9], 1024
        $region91: #{tpu_custom_call.1} parent=74 // pred_fallthru
          _
        %s465 = sand.u32 %s52, 1
        %s466 = sand.u32 %s52, 1
        %s467 = smul.addr %s466, 128
        %s468 = scalar_lea.vmem [#allocation4], %s467
        %p469 = pneg %p65
        %p470 = pneg %p62
        %s471 = sand.u32 %s78, 1
        %s472 = scalar_lea.sflag [#allocation6], %s471
        %s473 = sand.u32 %s78, 1
        %s474 = smul.addr %s473, 128
        %s475 = scalar_lea.vmem [#allocation5], %s474
        %p476 = pneg %p91
        %p477 = pneg %p88
        %s478 = smul.u32 32, %s34
        %p479 = scmp.lt.s32.totalorder %s478, 63
        %s480 = scalar_select %p479, %s478, 63
        %s481 = smul.addr %s480, 8
        %s482 = scalar_lea.vmem %s2, %s481
        %p483 = pneg %p117
        %p484 = pneg %p114
        %s485 = sand.u32 %s30, 1
        %s486 = scalar_lea.sflag [#allocation9], %s485
        %s487 = sand.u32 %s130, 1
        %s488 = smul.addr %s487, 128
        %s489 = scalar_lea.vmem [#allocation8], %s488
        %p490 = pneg %p143
        %p491 = pneg %p140
        %p492 = pneg %p164
        %p493 = pneg %p161
        %p494 = pneg %p185
        %p495 = pneg %p182
        %p496 = pneg %p206
        %p497 = pneg %p203
        %p498 = pneg %p227
        %p499 = pneg %p224
        %p500 = pneg %p248
        %p501 = pneg %p245
        %p502 = pneg %p274
        %p503 = pneg %p271
        %s504 = sand.u32 %s261, 1
        %s505 = scalar_lea.sflag [#allocation7], %s504
        %s506 = sand.u32 %s261, 1
        %s507 = smul.addr %s506, 2
        %s508 = scalar_lea.vmem [#allocation11], %s507
        %s509 = smul.u32 8, %s34
        %s510 = smul.u32 2, %s35
        %s511 = smul.u32 32, %s35
        %s512 = smul.u32 32, %s34
        %p513 = scmp.lt.s32.totalorder %s512, 63
        %s514 = scalar_select %p513, %s512, 63
        %s515 = smul.addr %s514, 8
        %s516 = scalar_lea.vmem %s2, %s515
        %s517 = smul.u32 32, %s34
        %s518 = smul.u32 32, %s34
        %p520 = scmp.eq.s32.totalorder %s35, 0
        // Predicated region
        $region92: #{tpu_custom_call.1} parent=74 // pred_check
          %p521 = pneg %p520
        $region93: #{tpu_custom_call.1} parent=74 // pred_check_branch
          %523 = sbr.rel (%p521) target = $region95
        $region94: #{tpu_custom_call.1} parent=74 // pred_region
          %524 = vst [vmem:[#allocation2] sm:$0xff] 0.0
          %525 = vst [vmem:[#allocation2 + $0x8] sm:$0xff] 0.0
          %526 = vst [vmem:[#allocation2 + $0x10] sm:$0xff] 0.0
          %527 = vst [vmem:[#allocation2 + $0x18] sm:$0xff] 0.0
          %528 = vst [vmem:[#allocation2 + $0x20] sm:$0xff] 0.0
          %529 = vst [vmem:[#allocation2 + $0x28] sm:$0xff] 0.0
          %530 = vst [vmem:[#allocation2 + $0x30] sm:$0xff] 0.0
          %531 = vst [vmem:[#allocation2 + $0x38] sm:$0xff] 0.0
          %532 = vst [vmem:[#allocation2 + $0x40] sm:$0xff] 0.0
          %533 = vst [vmem:[#allocation2 + $0x48] sm:$0xff] 0.0
          %534 = vst [vmem:[#allocation2 + $0x50] sm:$0xff] 0.0
          %535 = vst [vmem:[#allocation2 + $0x58] sm:$0xff] 0.0
          %536 = vst [vmem:[#allocation2 + $0x60] sm:$0xff] 0.0
          %537 = vst [vmem:[#allocation2 + $0x68] sm:$0xff] 0.0
          %538 = vst [vmem:[#allocation2 + $0x70] sm:$0xff] 0.0
          %539 = vst [vmem:[#allocation2 + $0x78] sm:$0xff] 0.0
          %540 = vst [vmem:[#allocation2 + $0x80] sm:$0xff] 0.0
          %541 = vst [vmem:[#allocation2 + $0x88] sm:$0xff] 0.0
          %542 = vst [vmem:[#allocation2 + $0x90] sm:$0xff] 0.0
          %543 = vst [vmem:[#allocation2 + $0x98] sm:$0xff] 0.0
          %544 = vst [vmem:[#allocation2 + $0xa0] sm:$0xff] 0.0
          %545 = vst [vmem:[#allocation2 + $0xa8] sm:$0xff] 0.0
          %546 = vst [vmem:[#allocation2 + $0xb0] sm:$0xff] 0.0
          %547 = vst [vmem:[#allocation2 + $0xb8] sm:$0xff] 0.0
          %548 = vst [vmem:[#allocation2 + $0xc0] sm:$0xff] 0.0
          %549 = vst [vmem:[#allocation2 + $0xc8] sm:$0xff] 0.0
          %550 = vst [vmem:[#allocation2 + $0xd0] sm:$0xff] 0.0
          %551 = vst [vmem:[#allocation2 + $0xd8] sm:$0xff] 0.0
          %552 = vst [vmem:[#allocation2 + $0xe0] sm:$0xff] 0.0
          %553 = vst [vmem:[#allocation2 + $0xe8] sm:$0xff] 0.0
          %554 = vst [vmem:[#allocation2 + $0xf0] sm:$0xff] 0.0
          %555 = vst [vmem:[#allocation2 + $0xf8] sm:$0xff] 0.0
        $region95: #{tpu_custom_call.1} parent=74 // pred_fallthru
          _
        %v556 = vld [vmem:[%s439] sm:$0xff]
        %v557 = vld [vmem:[%s439 + $0x8] sm:$0xff]
        %v558 = vld [vmem:[%s439 + $0x10] sm:$0xff]
        %v559 = vld [vmem:[%s439 + $0x18] sm:$0xff]
        %v560 = vld [vmem:[%s439 + $0x20] sm:$0xff]
        %v561 = vld [vmem:[%s439 + $0x28] sm:$0xff]
        %v562 = vld [vmem:[%s439 + $0x30] sm:$0xff]
        %v563 = vld [vmem:[%s439 + $0x38] sm:$0xff]
        %v564 = vld [vmem:[%s439 + $0x40] sm:$0xff]
        %v565 = vld [vmem:[%s439 + $0x48] sm:$0xff]
        %v566 = vld [vmem:[%s439 + $0x50] sm:$0xff]
        %v567 = vld [vmem:[%s439 + $0x58] sm:$0xff]
        %v568 = vld [vmem:[%s439 + $0x60] sm:$0xff]
        %v569 = vld [vmem:[%s439 + $0x68] sm:$0xff]
        %v570 = vld [vmem:[%s439 + $0x70] sm:$0xff]
        %v571 = vld [vmem:[%s439 + $0x78] sm:$0xff]
        %v572 = vunpack.c.l.s8.bf16 %v556
        %v573 = vunpack.c.l.s8.bf16 %v557
        %v574 = vunpack.c.h.s8.bf16 %v556
        %v575 = vunpack.c.h.s8.bf16 %v557
        %v576 = vunpack.c.l.s8.bf16 %v558
        %v577 = vunpack.c.l.s8.bf16 %v559
        %v578 = vunpack.c.h.s8.bf16 %v558
        %v579 = vunpack.c.h.s8.bf16 %v559
        %v580 = vunpack.c.l.s8.bf16 %v560
        %v581 = vunpack.c.l.s8.bf16 %v561
        %v582 = vunpack.c.h.s8.bf16 %v560
        %v583 = vunpack.c.h.s8.bf16 %v561
        %v584 = vunpack.c.l.s8.bf16 %v562
        %v585 = vunpack.c.l.s8.bf16 %v563
        %v586 = vunpack.c.h.s8.bf16 %v562
        %v587 = vunpack.c.h.s8.bf16 %v563
        %v588 = vunpack.c.l.s8.bf16 %v564
        %v589 = vunpack.c.l.s8.bf16 %v565
        %v590 = vunpack.c.h.s8.bf16 %v564
        %v591 = vunpack.c.h.s8.bf16 %v565
        %v592 = vunpack.c.l.s8.bf16 %v566
        %v593 = vunpack.c.l.s8.bf16 %v567
        %v594 = vunpack.c.h.s8.bf16 %v566
        %v595 = vunpack.c.h.s8.bf16 %v567
        %v596 = vunpack.c.l.s8.bf16 %v568
        %v597 = vunpack.c.l.s8.bf16 %v569
        %v598 = vunpack.c.h.s8.bf16 %v568
        %v599 = vunpack.c.h.s8.bf16 %v569
        %v600 = vunpack.c.l.s8.bf16 %v570
        %v601 = vunpack.c.l.s8.bf16 %v571
        %v602 = vunpack.c.h.s8.bf16 %v570
        %v603 = vunpack.c.h.s8.bf16 %v571
        %v604 = vld [vmem:[#allocation2] sm:$0xff]
        %v605 = vld [vmem:[#allocation2 + $0x8] sm:$0xff]
        %v606 = vld [vmem:[#allocation2 + $0x10] sm:$0xff]
        %v607 = vld [vmem:[#allocation2 + $0x18] sm:$0xff]
        %v608 = vld [vmem:[#allocation2 + $0x20] sm:$0xff]
        %v609 = vld [vmem:[#allocation2 + $0x28] sm:$0xff]
        %v610 = vld [vmem:[#allocation2 + $0x30] sm:$0xff]
        %v611 = vld [vmem:[#allocation2 + $0x38] sm:$0xff]
        %v612 = vld [vmem:[#allocation2 + $0x40] sm:$0xff]
        %v613 = vld [vmem:[#allocation2 + $0x48] sm:$0xff]
        %v614 = vld [vmem:[#allocation2 + $0x50] sm:$0xff]
        %v615 = vld [vmem:[#allocation2 + $0x58] sm:$0xff]
        %v616 = vld [vmem:[#allocation2 + $0x60] sm:$0xff]
        %v617 = vld [vmem:[#allocation2 + $0x68] sm:$0xff]
        %v618 = vld [vmem:[#allocation2 + $0x70] sm:$0xff]
        %v619 = vld [vmem:[#allocation2 + $0x78] sm:$0xff]
        %v620 = vld [vmem:[#allocation2 + $0x80] sm:$0xff]
        %v621 = vld [vmem:[#allocation2 + $0x88] sm:$0xff]
        %v622 = vld [vmem:[#allocation2 + $0x90] sm:$0xff]
        %v623 = vld [vmem:[#allocation2 + $0x98] sm:$0xff]
        %v624 = vld [vmem:[#allocation2 + $0xa0] sm:$0xff]
        %v625 = vld [vmem:[#allocation2 + $0xa8] sm:$0xff]
        %v626 = vld [vmem:[#allocation2 + $0xb0] sm:$0xff]
        %v627 = vld [vmem:[#allocation2 + $0xb8] sm:$0xff]
        %v628 = vld [vmem:[#allocation2 + $0xc0] sm:$0xff]
        %v629 = vld [vmem:[#allocation2 + $0xc8] sm:$0xff]
        %v630 = vld [vmem:[#allocation2 + $0xd0] sm:$0xff]
        %v631 = vld [vmem:[#allocation2 + $0xd8] sm:$0xff]
        %v632 = vld [vmem:[#allocation2 + $0xe0] sm:$0xff]
        %v633 = vld [vmem:[#allocation2 + $0xe8] sm:$0xff]
        %v634 = vld [vmem:[#allocation2 + $0xf0] sm:$0xff]
        %v635 = vld [vmem:[#allocation2 + $0xf8] sm:$0xff]
        %v636 = vld [vmem:[%s447] sm:$0xf]
        %v637 = vld [vmem:[%s447 + $0x4] sm:$0xf]
        %v638 = vld [vmem:[%s447 + $0x8] sm:$0xf]
        %v639 = vld [vmem:[%s447 + $0xc] sm:$0xf]
        %v640 = vld [vmem:[%s447 + $0x10] sm:$0xf]
        %v641 = vld [vmem:[%s447 + $0x14] sm:$0xf]
        %v642 = vld [vmem:[%s447 + $0x18] sm:$0xf]
        %v643 = vld [vmem:[%s447 + $0x1c] sm:$0xf]
        %v644 = vld [vmem:[%s447 + $0x20] sm:$0xf]
        %v645 = vld [vmem:[%s447 + $0x24] sm:$0xf]
        %v646 = vld [vmem:[%s447 + $0x28] sm:$0xf]
        %v647 = vld [vmem:[%s447 + $0x2c] sm:$0xf]
        %v648 = vld [vmem:[%s447 + $0x30] sm:$0xf]
        %v649 = vld [vmem:[%s447 + $0x34] sm:$0xf]
        %v650 = vld [vmem:[%s447 + $0x38] sm:$0xf]
        %v651 = vld [vmem:[%s447 + $0x3c] sm:$0xf]
        %v652 = vld [vmem:[%s447 + $0x40] sm:$0xf]
        %v653 = vld [vmem:[%s447 + $0x44] sm:$0xf]
        %v654 = vld [vmem:[%s447 + $0x48] sm:$0xf]
        %v655 = vld [vmem:[%s447 + $0x4c] sm:$0xf]
        %v656 = vld [vmem:[%s447 + $0x50] sm:$0xf]
        %v657 = vld [vmem:[%s447 + $0x54] sm:$0xf]
        %v658 = vld [vmem:[%s447 + $0x58] sm:$0xf]
        %v659 = vld [vmem:[%s447 + $0x5c] sm:$0xf]
        %v660 = vld [vmem:[%s447 + $0x60] sm:$0xf]
        %v661 = vld [vmem:[%s447 + $0x64] sm:$0xf]
        %v662 = vld [vmem:[%s447 + $0x68] sm:$0xf]
        %v663 = vld [vmem:[%s447 + $0x6c] sm:$0xf]
        %v664 = vld [vmem:[%s447 + $0x70] sm:$0xf]
        %v665 = vld [vmem:[%s447 + $0x74] sm:$0xf]
        %v666 = vld [vmem:[%s447 + $0x78] sm:$0xf]
        %v667 = vld [vmem:[%s447 + $0x7c] sm:$0xf]
        %v700 = vunpack.c.l.b16 %v636
        %v701 = vunpack.c.l.b16 %v637
        %v702 = vunpack.c.l.b16 %v638
        %v703 = vunpack.c.l.b16 %v639
        %v704 = vunpack.c.l.b16 %v640
        %v705 = vunpack.c.l.b16 %v641
        %v706 = vunpack.c.l.b16 %v642
        %v707 = vunpack.c.l.b16 %v643
        %v708 = vunpack.c.l.b16 %v644
        %v709 = vunpack.c.l.b16 %v645
        %v710 = vunpack.c.l.b16 %v646
        %v711 = vunpack.c.l.b16 %v647
        %v712 = vunpack.c.l.b16 %v648
        %v713 = vunpack.c.l.b16 %v649
        %v714 = vunpack.c.l.b16 %v650
        %v715 = vunpack.c.l.b16 %v651
        %v716 = vunpack.c.l.b16 %v652
        %v717 = vunpack.c.l.b16 %v653
        %v718 = vunpack.c.l.b16 %v654
        %v719 = vunpack.c.l.b16 %v655
        %v720 = vunpack.c.l.b16 %v656
        %v721 = vunpack.c.l.b16 %v657
        %v722 = vunpack.c.l.b16 %v658
        %v723 = vunpack.c.l.b16 %v659
        %v724 = vunpack.c.l.b16 %v660
        %v725 = vunpack.c.l.b16 %v661
        %v726 = vunpack.c.l.b16 %v662
        %v727 = vunpack.c.l.b16 %v663
        %v728 = vunpack.c.l.b16 %v664
        %v729 = vunpack.c.l.b16 %v665
        %v730 = vunpack.c.l.b16 %v666
        %v731 = vunpack.c.l.b16 %v667
        %v732 = vpack.c.b16 %v701, %v700
        %v733 = vpack.c.b16 %v703, %v702
        %v734 = vpack.c.b16 %v705, %v704
        %v735 = vpack.c.b16 %v707, %v706
        %v736 = vpack.c.b16 %v709, %v708
        %v737 = vpack.c.b16 %v711, %v710
        %v738 = vpack.c.b16 %v713, %v712
        %v739 = vpack.c.b16 %v715, %v714
        %v740 = vpack.c.b16 %v717, %v716
        %v741 = vpack.c.b16 %v719, %v718
        %v742 = vpack.c.b16 %v721, %v720
        %v743 = vpack.c.b16 %v723, %v722
        %v744 = vpack.c.b16 %v725, %v724
        %v745 = vpack.c.b16 %v727, %v726
        %v746 = vpack.c.b16 %v729, %v728
        %v747 = vpack.c.b16 %v731, %v730
        %764 = vmatprep.subr.bf16.mxu0 0
        %765 = vmatpush1.bf16.msra.mxu0 %v732
        %766 = vmatprep.subr.bf16.mxu0 0
        %767 = vmatpush1.bf16.msra.mxu0 %v733
        %768 = vmatprep.subr.bf16.mxu0 0
        %769 = vmatpush1.bf16.msra.mxu0 %v734
        %770 = vmatprep.subr.bf16.mxu0 0
        %771 = vmatpush1.bf16.msra.mxu0 %v735
        %772 = vmatprep.subr.bf16.mxu0 0
        %773 = vmatpush1.bf16.msra.mxu0 %v736
        %774 = vmatprep.subr.bf16.mxu0 0
        %775 = vmatpush1.bf16.msra.mxu0 %v737
        %776 = vmatprep.subr.bf16.mxu0 0
        %777 = vmatpush1.bf16.msra.mxu0 %v738
        %778 = vmatprep.subr.bf16.mxu0 0
        %779 = vmatpush1.bf16.msra.mxu0 %v739
        %780 = vmatprep.subr.bf16.mxu0 0
        %781 = vmatpush1.bf16.msra.mxu0 %v740
        %782 = vmatprep.subr.bf16.mxu0 0
        %783 = vmatpush1.bf16.msra.mxu0 %v741
        %784 = vmatprep.subr.bf16.mxu0 0
        %785 = vmatpush1.bf16.msra.mxu0 %v742
        %786 = vmatprep.subr.bf16.mxu0 0
        %787 = vmatpush1.bf16.msra.mxu0 %v743
        %788 = vmatprep.subr.bf16.mxu0 0
        %789 = vmatpush1.bf16.msra.mxu0 %v744
        %790 = vmatprep.subr.bf16.mxu0 0
        %791 = vmatpush1.bf16.msra.mxu0 %v745
        %792 = vmatprep.subr.bf16.mxu0 0
        %793 = vmatpush1.bf16.msra.mxu0 %v746
        %794 = vmatprep.subr.bf16.mxu0 0
        %795 = vmatpush1.bf16.msra.mxu0 %v747
        %796 = vmatprep.mubr.bf16.mxu0 %v573
        %797 = vmatmul.mubr.bf16.gmra.mrb[0].mxu0 %v572
        %v798 = vpop.f32.mrb[0].mxu0
        %v799 = vadd.f32 0.0, %v798
        %v800 = vpop.f32.mrb[0].mxu0
        %v801 = vpop.f32.mrb[0].mxu0
        %v802 = vadd.f32 0.0, %v801
        %v803 = vpop.f32.mrb[0].mxu0
        %804 = vmatprep.mubr.bf16.mxu0 %v575
        %805 = vmatmul.mubr.bf16.gmra.mrb[0].mxu0 %v574
        %v806 = vpop.f32.mrb[0].mxu0
        %v807 = vadd.f32 0.0, %v806
        %v808 = vpop.f32.mrb[0].mxu0
        %v809 = vpop.f32.mrb[0].mxu0
        %v810 = vadd.f32 0.0, %v809
        %v811 = vpop.f32.mrb[0].mxu0
        %812 = vmatprep.mubr.bf16.mxu0 %v577
        %813 = vmatmul.mubr.bf16.gmra.mrb[0].mxu0 %v576
        %v814 = vpop.f32.mrb[0].mxu0
        %v815 = vadd.f32 0.0, %v814
        %v816 = vpop.f32.mrb[0].mxu0
        %v817 = vpop.f32.mrb[0].mxu0
        %v818 = vadd.f32 0.0, %v817
        %v819 = vpop.f32.mrb[0].mxu0
        %820 = vmatprep.mubr.bf16.mxu0 %v579
        %821 = vmatmul.mubr.bf16.gmra.mrb[0].mxu0 %v578
        %v822 = vpop.f32.mrb[0].mxu0
        %v823 = vadd.f32 0.0, %v822
        %v824 = vpop.f32.mrb[0].mxu0
        %v825 = vpop.f32.mrb[0].mxu0
        %v826 = vadd.f32 0.0, %v825
        %v827 = vpop.f32.mrb[0].mxu0
        %828 = vmatprep.mubr.bf16.mxu0 %v581
        %829 = vmatmul.mubr.bf16.gmra.mrb[0].mxu0 %v580
        %v830 = vpop.f32.mrb[0].mxu0
        %v831 = vadd.f32 0.0, %v830
        %v832 = vpop.f32.mrb[0].mxu0
        %v833 = vpop.f32.mrb[0].mxu0
        %v834 = vadd.f32 0.0, %v833
        %v835 = vpop.f32.mrb[0].mxu0
        %836 = vmatprep.mubr.bf16.mxu0 %v583
        %837 = vmatmul.mubr.bf16.gmra.mrb[0].mxu0 %v582
        %v838 = vpop.f32.mrb[0].mxu0
        %v839 = vadd.f32 0.0, %v838
        %v840 = vpop.f32.mrb[0].mxu0
        %v841 = vpop.f32.mrb[0].mxu0
        %v842 = vadd.f32 0.0, %v841
        %v843 = vpop.f32.mrb[0].mxu0
        %844 = vmatprep.mubr.bf16.mxu0 %v585
        %845 = vmatmul.mubr.bf16.gmra.mrb[0].mxu0 %v584
        %v846 = vpop.f32.mrb[0].mxu0
        %v847 = vadd.f32 0.0, %v846
        %v848 = vpop.f32.mrb[0].mxu0
        %v849 = vpop.f32.mrb[0].mxu0
        %v850 = vadd.f32 0.0, %v849
        %v851 = vpop.f32.mrb[0].mxu0
        %852 = vmatprep.mubr.bf16.mxu0 %v587
        %853 = vmatmul.mubr.bf16.gmra.mrb[0].mxu0 %v586
        %v854 = vpop.f32.mrb[0].mxu0
        %v855 = vadd.f32 0.0, %v854
        %v856 = vpop.f32.mrb[0].mxu0
        %v857 = vpop.f32.mrb[0].mxu0
        %v858 = vadd.f32 0.0, %v857
        %v859 = vpop.f32.mrb[0].mxu0
        %860 = vmatprep.mubr.bf16.mxu0 %v589
        %861 = vmatmul.mubr.bf16.gmra.mrb[0].mxu0 %v588
        %v862 = vpop.f32.mrb[0].mxu0
        %v863 = vadd.f32 0.0, %v862
        %v864 = vpop.f32.mrb[0].mxu0
        %v865 = vpop.f32.mrb[0].mxu0
        %v866 = vadd.f32 0.0, %v865
        %v867 = vpop.f32.mrb[0].mxu0
        %868 = vmatprep.mubr.bf16.mxu0 %v591
        %869 = vmatmul.mubr.bf16.gmra.mrb[0].mxu0 %v590
        %v870 = vpop.f32.mrb[0].mxu0
        %v871 = vadd.f32 0.0, %v870
        %v872 = vpop.f32.mrb[0].mxu0
        %v873 = vpop.f32.mrb[0].mxu0
        %v874 = vadd.f32 0.0, %v873
        %v875 = vpop.f32.mrb[0].mxu0
        %876 = vmatprep.mubr.bf16.mxu0 %v593
        %877 = vmatmul.mubr.bf16.gmra.mrb[0].mxu0 %v592
        %v878 = vpop.f32.mrb[0].mxu0
        %v879 = vadd.f32 0.0, %v878
        %v880 = vpop.f32.mrb[0].mxu0
        %v881 = vpop.f32.mrb[0].mxu0
        %v882 = vadd.f32 0.0, %v881
        %v883 = vpop.f32.mrb[0].mxu0
        %884 = vmatprep.mubr.bf16.mxu0 %v595
        %885 = vmatmul.mubr.bf16.gmra.mrb[0].mxu0 %v594
        %v886 = vpop.f32.mrb[0].mxu0
        %v887 = vadd.f32 0.0, %v886
        %v888 = vpop.f32.mrb[0].mxu0
        %v889 = vpop.f32.mrb[0].mxu0
        %v890 = vadd.f32 0.0, %v889
        %v891 = vpop.f32.mrb[0].mxu0
        %892 = vmatprep.mubr.bf16.mxu0 %v597
        %893 = vmatmul.mubr.bf16.gmra.mrb[0].mxu0 %v596
        %v894 = vpop.f32.mrb[0].mxu0
        %v895 = vadd.f32 0.0, %v894
        %v896 = vpop.f32.mrb[0].mxu0
        %v897 = vpop.f32.mrb[0].mxu0
        %v898 = vadd.f32 0.0, %v897
        %v899 = vpop.f32.mrb[0].mxu0
        %900 = vmatprep.mubr.bf16.mxu0 %v599
        %901 = vmatmul.mubr.bf16.gmra.mrb[0].mxu0 %v598
        %v902 = vpop.f32.mrb[0].mxu0
        %v903 = vadd.f32 0.0, %v902
        %v904 = vpop.f32.mrb[0].mxu0
        %v905 = vpop.f32.mrb[0].mxu0
        %v906 = vadd.f32 0.0, %v905
        %v907 = vpop.f32.mrb[0].mxu0
        %908 = vmatprep.mubr.bf16.mxu0 %v601
        %909 = vmatmul.mubr.bf16.gmra.mrb[0].mxu0 %v600
        %v910 = vpop.f32.mrb[0].mxu0
        %v911 = vadd.f32 0.0, %v910
        %v912 = vpop.f32.mrb[0].mxu0
        %v913 = vpop.f32.mrb[0].mxu0
        %v914 = vadd.f32 0.0, %v913
        %v915 = vpop.f32.mrb[0].mxu0
        %916 = vmatprep.mubr.bf16.mxu0 %v603
        %917 = vmatmul.mubr.bf16.gmra.mrb[0].mxu0 %v602
        %v918 = vpop.f32.mrb[0].mxu0
        %v919 = vadd.f32 0.0, %v918
        %v920 = vpop.f32.mrb[0].mxu0
        %v921 = vpop.f32.mrb[0].mxu0
        %v922 = vadd.f32 0.0, %v921
        %v923 = vpop.f32.mrb[0].mxu0
        %924 = vdwg.mxu0
        %v925 = vadd.f32 %v604, %v799
        %v926 = vadd.f32 %v605, %v802
        %v927 = vadd.f32 %v606, %v807
        %v928 = vadd.f32 %v607, %v810
        %v929 = vadd.f32 %v608, %v815
        %v930 = vadd.f32 %v609, %v818
        %v931 = vadd.f32 %v610, %v823
        %v932 = vadd.f32 %v611, %v826
        %v933 = vadd.f32 %v612, %v831
        %v934 = vadd.f32 %v613, %v834
        %v935 = vadd.f32 %v614, %v839
        %v936 = vadd.f32 %v615, %v842
        %v937 = vadd.f32 %v616, %v847
        %v938 = vadd.f32 %v617, %v850
        %v939 = vadd.f32 %v618, %v855
        %v940 = vadd.f32 %v619, %v858
        %v941 = vadd.f32 %v620, %v863
        %v942 = vadd.f32 %v621, %v866
        %v943 = vadd.f32 %v622, %v871
        %v944 = vadd.f32 %v623, %v874
        %v945 = vadd.f32 %v624, %v879
        %v946 = vadd.f32 %v625, %v882
        %v947 = vadd.f32 %v626, %v887
        %v948 = vadd.f32 %v627, %v890
        %v949 = vadd.f32 %v628, %v895
        %v950 = vadd.f32 %v629, %v898
        %v951 = vadd.f32 %v630, %v903
        %v952 = vadd.f32 %v631, %v906
        %v953 = vadd.f32 %v632, %v911
        %v954 = vadd.f32 %v633, %v914
        %v955 = vadd.f32 %v634, %v919
        %v956 = vadd.f32 %v635, %v922
        %957 = vst [vmem:[#allocation2] sm:$0xff] %v925
        %958 = vst [vmem:[#allocation2 + $0x8] sm:$0xff] %v926
        %959 = vst [vmem:[#allocation2 + $0x10] sm:$0xff] %v927
        %960 = vst [vmem:[#allocation2 + $0x18] sm:$0xff] %v928
        %961 = vst [vmem:[#allocation2 + $0x20] sm:$0xff] %v929
        %962 = vst [vmem:[#allocation2 + $0x28] sm:$0xff] %v930
        %963 = vst [vmem:[#allocation2 + $0x30] sm:$0xff] %v931
        %964 = vst [vmem:[#allocation2 + $0x38] sm:$0xff] %v932
        %965 = vst [vmem:[#allocation2 + $0x40] sm:$0xff] %v933
        %966 = vst [vmem:[#allocation2 + $0x48] sm:$0xff] %v934
        %967 = vst [vmem:[#allocation2 + $0x50] sm:$0xff] %v935
        %968 = vst [vmem:[#allocation2 + $0x58] sm:$0xff] %v936
        %969 = vst [vmem:[#allocation2 + $0x60] sm:$0xff] %v937
        %970 = vst [vmem:[#allocation2 + $0x68] sm:$0xff] %v938
        %971 = vst [vmem:[#allocation2 + $0x70] sm:$0xff] %v939
        %972 = vst [vmem:[#allocation2 + $0x78] sm:$0xff] %v940
        %973 = vst [vmem:[#allocation2 + $0x80] sm:$0xff] %v941
        %974 = vst [vmem:[#allocation2 + $0x88] sm:$0xff] %v942
        %975 = vst [vmem:[#allocation2 + $0x90] sm:$0xff] %v943
        %976 = vst [vmem:[#allocation2 + $0x98] sm:$0xff] %v944
        %977 = vst [vmem:[#allocation2 + $0xa0] sm:$0xff] %v945
        %978 = vst [vmem:[#allocation2 + $0xa8] sm:$0xff] %v946
        %979 = vst [vmem:[#allocation2 + $0xb0] sm:$0xff] %v947
        %980 = vst [vmem:[#allocation2 + $0xb8] sm:$0xff] %v948
        %981 = vst [vmem:[#allocation2 + $0xc0] sm:$0xff] %v949
        %982 = vst [vmem:[#allocation2 + $0xc8] sm:$0xff] %v950
        %983 = vst [vmem:[#allocation2 + $0xd0] sm:$0xff] %v951
        %984 = vst [vmem:[#allocation2 + $0xd8] sm:$0xff] %v952
        %985 = vst [vmem:[#allocation2 + $0xe0] sm:$0xff] %v953
        %986 = vst [vmem:[#allocation2 + $0xe8] sm:$0xff] %v954
        %987 = vst [vmem:[#allocation2 + $0xf0] sm:$0xff] %v955
        %988 = vst [vmem:[#allocation2 + $0xf8] sm:$0xff] %v956
        %p989 = scmp.eq.s32.totalorder %s35, 1
        // Predicated region
        $region96: #{tpu_custom_call.1} parent=74 // pred_check
          %p990 = pneg %p989
        $region97: #{tpu_custom_call.1} parent=74 // pred_check_branch
          %992 = sbr.rel (%p990) target = $region99
        $region98: #{tpu_custom_call.1} parent=74 // pred_region
          %v993 = vld [vmem:[#allocation2] sm:$0xff]
          %v994 = vld [vmem:[#allocation2 + $0x8] sm:$0xff]
          %v995 = vld [vmem:[#allocation2 + $0x10] sm:$0xff]
          %v996 = vld [vmem:[#allocation2 + $0x18] sm:$0xff]
          %v997 = vld [vmem:[#allocation2 + $0x20] sm:$0xff]
          %v998 = vld [vmem:[#allocation2 + $0x28] sm:$0xff]
          %v999 = vld [vmem:[#allocation2 + $0x30] sm:$0xff]
          %v1000 = vld [vmem:[#allocation2 + $0x38] sm:$0xff]
          %v1001 = vld [vmem:[#allocation2 + $0x40] sm:$0xff]
          %v1002 = vld [vmem:[#allocation2 + $0x48] sm:$0xff]
          %v1003 = vld [vmem:[#allocation2 + $0x50] sm:$0xff]
          %v1004 = vld [vmem:[#allocation2 + $0x58] sm:$0xff]
          %v1005 = vld [vmem:[#allocation2 + $0x60] sm:$0xff]
          %v1006 = vld [vmem:[#allocation2 + $0x68] sm:$0xff]
          %v1007 = vld [vmem:[#allocation2 + $0x70] sm:$0xff]
          %v1008 = vld [vmem:[#allocation2 + $0x78] sm:$0xff]
          %v1009 = vld [vmem:[#allocation2 + $0x80] sm:$0xff]
          %v1010 = vld [vmem:[#allocation2 + $0x88] sm:$0xff]
          %v1011 = vld [vmem:[#allocation2 + $0x90] sm:$0xff]
          %v1012 = vld [vmem:[#allocation2 + $0x98] sm:$0xff]
          %v1013 = vld [vmem:[#allocation2 + $0xa0] sm:$0xff]
          %v1014 = vld [vmem:[#allocation2 + $0xa8] sm:$0xff]
          %v1015 = vld [vmem:[#allocation2 + $0xb0] sm:$0xff]
          %v1016 = vld [vmem:[#allocation2 + $0xb8] sm:$0xff]
          %v1017 = vld [vmem:[#allocation2 + $0xc0] sm:$0xff]
          %v1018 = vld [vmem:[#allocation2 + $0xc8] sm:$0xff]
          %v1019 = vld [vmem:[#allocation2 + $0xd0] sm:$0xff]
          %v1020 = vld [vmem:[#allocation2 + $0xd8] sm:$0xff]
          %v1021 = vld [vmem:[#allocation2 + $0xe0] sm:$0xff]
          %v1022 = vld [vmem:[#allocation2 + $0xe8] sm:$0xff]
          %v1023 = vld [vmem:[#allocation2 + $0xf0] sm:$0xff]
          %v1024 = vld [vmem:[#allocation2 + $0xf8] sm:$0xff]
          %v1025 = vld [vmem:[%s516] sm:$0xff]
          %v1026 = vld [vmem:[%s516 + $0x8] sm:$0xff]
          %v1027 = vld [vmem:[%s516 + $0x10] sm:$0xff]
          %v1028 = vld [vmem:[%s516 + $0x18] sm:$0xff]
          %v1029 = vld [vmem:[%s516 + $0x20] sm:$0xff]
          %v1030 = vld [vmem:[%s516 + $0x28] sm:$0xff]
          %v1031 = vld [vmem:[%s516 + $0x30] sm:$0xff]
          %v1032 = vld [vmem:[%s516 + $0x38] sm:$0xff]
          %v1033 = vld [vmem:[%s516 + $0x40] sm:$0xff]
          %v1034 = vld [vmem:[%s516 + $0x48] sm:$0xff]
          %v1035 = vld [vmem:[%s516 + $0x50] sm:$0xff]
          %v1036 = vld [vmem:[%s516 + $0x58] sm:$0xff]
          %v1037 = vld [vmem:[%s516 + $0x60] sm:$0xff]
          %v1038 = vld [vmem:[%s516 + $0x68] sm:$0xff]
          %v1039 = vld [vmem:[%s516 + $0x70] sm:$0xff]
          %v1040 = vld [vmem:[%s516 + $0x78] sm:$0xff]
          %v1041 = vld [vmem:[%s516 + $0x80] sm:$0xff]
          %v1042 = vld [vmem:[%s516 + $0x88] sm:$0xff]
          %v1043 = vld [vmem:[%s516 + $0x90] sm:$0xff]
          %v1044 = vld [vmem:[%s516 + $0x98] sm:$0xff]
          %v1045 = vld [vmem:[%s516 + $0xa0] sm:$0xff]
          %v1046 = vld [vmem:[%s516 + $0xa8] sm:$0xff]
          %v1047 = vld [vmem:[%s516 + $0xb0] sm:$0xff]
          %v1048 = vld [vmem:[%s516 + $0xb8] sm:$0xff]
          %v1049 = vld [vmem:[%s516 + $0xc0] sm:$0xff]
          %v1050 = vld [vmem:[%s516 + $0xc8] sm:$0xff]
          %v1051 = vld [vmem:[%s516 + $0xd0] sm:$0xff]
          %v1052 = vld [vmem:[%s516 + $0xd8] sm:$0xff]
          %v1053 = vld [vmem:[%s516 + $0xe0] sm:$0xff]
          %v1054 = vld [vmem:[%s516 + $0xe8] sm:$0xff]
          %v1055 = vld [vmem:[%s516 + $0xf0] sm:$0xff]
          %v1056 = vld [vmem:[%s516 + $0xf8] sm:$0xff]
          %1058 = vset.pattern.permute.xlu0 0
          %1059 = vperm.xlu0 %1058, %v1025
          %v1060 = vpop.permute.xlu0 %1059
          %1063 = vset.pattern.permute.xlu0 0
          %1064 = vperm.xlu0 %1063, %v1026
          %v1065 = vpop.permute.xlu0 %1064
          %1068 = vset.pattern.permute.xlu0 0
          %1069 = vperm.xlu0 %1068, %v1027
          %v1070 = vpop.permute.xlu0 %1069
          %1073 = vset.pattern.permute.xlu0 0
          %1074 = vperm.xlu0 %1073, %v1028
          %v1075 = vpop.permute.xlu0 %1074
          %1078 = vset.pattern.permute.xlu0 0
          %1079 = vperm.xlu0 %1078, %v1029
          %v1080 = vpop.permute.xlu0 %1079
          %1083 = vset.pattern.permute.xlu0 0
          %1084 = vperm.xlu0 %1083, %v1030
          %v1085 = vpop.permute.xlu0 %1084
          %1088 = vset.pattern.permute.xlu0 0
          %1089 = vperm.xlu0 %1088, %v1031
          %v1090 = vpop.permute.xlu0 %1089
          %1093 = vset.pattern.permute.xlu0 0
          %1094 = vperm.xlu0 %1093, %v1032
          %v1095 = vpop.permute.xlu0 %1094
          %1098 = vset.pattern.permute.xlu0 0
          %1099 = vperm.xlu0 %1098, %v1033
          %v1100 = vpop.permute.xlu0 %1099
          %1103 = vset.pattern.permute.xlu0 0
          %1104 = vperm.xlu0 %1103, %v1034
          %v1105 = vpop.permute.xlu0 %1104
          %1108 = vset.pattern.permute.xlu0 0
          %1109 = vperm.xlu0 %1108, %v1035
          %v1110 = vpop.permute.xlu0 %1109
          %1113 = vset.pattern.permute.xlu0 0
          %1114 = vperm.xlu0 %1113, %v1036
          %v1115 = vpop.permute.xlu0 %1114
          %1118 = vset.pattern.permute.xlu0 0
          %1119 = vperm.xlu0 %1118, %v1037
          %v1120 = vpop.permute.xlu0 %1119
          %1123 = vset.pattern.permute.xlu0 0
          %1124 = vperm.xlu0 %1123, %v1038
          %v1125 = vpop.permute.xlu0 %1124
          %1128 = vset.pattern.permute.xlu0 0
          %1129 = vperm.xlu0 %1128, %v1039
          %v1130 = vpop.permute.xlu0 %1129
          %1133 = vset.pattern.permute.xlu0 0
          %1134 = vperm.xlu0 %1133, %v1040
          %v1135 = vpop.permute.xlu0 %1134
          %1138 = vset.pattern.permute.xlu0 0
          %1139 = vperm.xlu0 %1138, %v1041
          %v1140 = vpop.permute.xlu0 %1139
          %1143 = vset.pattern.permute.xlu0 0
          %1144 = vperm.xlu0 %1143, %v1042
          %v1145 = vpop.permute.xlu0 %1144
          %1148 = vset.pattern.permute.xlu0 0
          %1149 = vperm.xlu0 %1148, %v1043
          %v1150 = vpop.permute.xlu0 %1149
          %1153 = vset.pattern.permute.xlu0 0
          %1154 = vperm.xlu0 %1153, %v1044
          %v1155 = vpop.permute.xlu0 %1154
          %1158 = vset.pattern.permute.xlu0 0
          %1159 = vperm.xlu0 %1158, %v1045
          %v1160 = vpop.permute.xlu0 %1159
          %1163 = vset.pattern.permute.xlu0 0
          %1164 = vperm.xlu0 %1163, %v1046
          %v1165 = vpop.permute.xlu0 %1164
          %1168 = vset.pattern.permute.xlu0 0
          %1169 = vperm.xlu0 %1168, %v1047
          %v1170 = vpop.permute.xlu0 %1169
          %1173 = vset.pattern.permute.xlu0 0
          %1174 = vperm.xlu0 %1173, %v1048
          %v1175 = vpop.permute.xlu0 %1174
          %1178 = vset.pattern.permute.xlu0 0
          %1179 = vperm.xlu0 %1178, %v1049
          %v1180 = vpop.permute.xlu0 %1179
          %1183 = vset.pattern.permute.xlu0 0
          %1184 = vperm.xlu0 %1183, %v1050
          %v1185 = vpop.permute.xlu0 %1184
          %1188 = vset.pattern.permute.xlu0 0
          %1189 = vperm.xlu0 %1188, %v1051
          %v1190 = vpop.permute.xlu0 %1189
          %1193 = vset.pattern.permute.xlu0 0
          %1194 = vperm.xlu0 %1193, %v1052
          %v1195 = vpop.permute.xlu0 %1194
          %1198 = vset.pattern.permute.xlu0 0
          %1199 = vperm.xlu0 %1198, %v1053
          %v1200 = vpop.permute.xlu0 %1199
          %1203 = vset.pattern.permute.xlu0 0
          %1204 = vperm.xlu0 %1203, %v1054
          %v1205 = vpop.permute.xlu0 %1204
          %1208 = vset.pattern.permute.xlu0 0
          %1209 = vperm.xlu0 %1208, %v1055
          %v1210 = vpop.permute.xlu0 %1209
          %1213 = vset.pattern.permute.xlu0 0
          %1214 = vperm.xlu0 %1213, %v1056
          %v1215 = vpop.permute.xlu0 %1214
          %v1217 = vmul.f32 %v993, %v1060
          %v1218 = vmul.f32 %v994, %v1065
          %v1219 = vmul.f32 %v995, %v1070
          %v1220 = vmul.f32 %v996, %v1075
          %v1221 = vmul.f32 %v997, %v1080
          %v1222 = vmul.f32 %v998, %v1085
          %v1223 = vmul.f32 %v999, %v1090
          %v1224 = vmul.f32 %v1000, %v1095
          %v1225 = vmul.f32 %v1001, %v1100
          %v1226 = vmul.f32 %v1002, %v1105
          %v1227 = vmul.f32 %v1003, %v1110
          %v1228 = vmul.f32 %v1004, %v1115
          %v1229 = vmul.f32 %v1005, %v1120
          %v1230 = vmul.f32 %v1006, %v1125
          %v1231 = vmul.f32 %v1007, %v1130
          %v1232 = vmul.f32 %v1008, %v1135
          %v1233 = vmul.f32 %v1009, %v1140
          %v1234 = vmul.f32 %v1010, %v1145
          %v1235 = vmul.f32 %v1011, %v1150
          %v1236 = vmul.f32 %v1012, %v1155
          %v1237 = vmul.f32 %v1013, %v1160
          %v1238 = vmul.f32 %v1014, %v1165
          %v1239 = vmul.f32 %v1015, %v1170
          %v1240 = vmul.f32 %v1016, %v1175
          %v1241 = vmul.f32 %v1017, %v1180
          %v1242 = vmul.f32 %v1018, %v1185
          %v1243 = vmul.f32 %v1019, %v1190
          %v1244 = vmul.f32 %v1020, %v1195
          %v1245 = vmul.f32 %v1021, %v1200
          %v1246 = vmul.f32 %v1022, %v1205
          %v1247 = vmul.f32 %v1023, %v1210
          %v1248 = vmul.f32 %v1024, %v1215
          %v1249 = vld [vmem:[%s4] sm:$0x1]
          %v1251 = vlaneseq
          %v1252 = vshrl.u32 %v1251, 7
          %v1253 = vsub.s32 0, %v1252
          %v1254 = vrot.slane %v1249, %v1253
          %v1256 = vadd.f32 %v1217, %v1254
          %v1257 = vadd.f32 %v1218, %v1254
          %v1258 = vadd.f32 %v1219, %v1254
          %v1259 = vadd.f32 %v1220, %v1254
          %v1260 = vadd.f32 %v1221, %v1254
          %v1261 = vadd.f32 %v1222, %v1254
          %v1262 = vadd.f32 %v1223, %v1254
          %v1263 = vadd.f32 %v1224, %v1254
          %v1264 = vadd.f32 %v1225, %v1254
          %v1265 = vadd.f32 %v1226, %v1254
          %v1266 = vadd.f32 %v1227, %v1254
          %v1267 = vadd.f32 %v1228, %v1254
          %v1268 = vadd.f32 %v1229, %v1254
          %v1269 = vadd.f32 %v1230, %v1254
          %v1270 = vadd.f32 %v1231, %v1254
          %v1271 = vadd.f32 %v1232, %v1254
          %v1272 = vadd.f32 %v1233, %v1254
          %v1273 = vadd.f32 %v1234, %v1254
          %v1274 = vadd.f32 %v1235, %v1254
          %v1275 = vadd.f32 %v1236, %v1254
          %v1276 = vadd.f32 %v1237, %v1254
          %v1277 = vadd.f32 %v1238, %v1254
          %v1278 = vadd.f32 %v1239, %v1254
          %v1279 = vadd.f32 %v1240, %v1254
          %v1280 = vadd.f32 %v1241, %v1254
          %v1281 = vadd.f32 %v1242, %v1254
          %v1282 = vadd.f32 %v1243, %v1254
          %v1283 = vadd.f32 %v1244, %v1254
          %v1284 = vadd.f32 %v1245, %v1254
          %v1285 = vadd.f32 %v1246, %v1254
          %v1286 = vadd.f32 %v1247, %v1254
          %v1287 = vadd.f32 %v1248, %v1254
          %v1288 = vmax.f32 %v1256, 0.0
          %v1289 = vmax.f32 %v1257, 0.0
          %v1290 = vmax.f32 %v1258, 0.0
          %v1291 = vmax.f32 %v1259, 0.0
          %v1292 = vmax.f32 %v1260, 0.0
          %v1293 = vmax.f32 %v1261, 0.0
          %v1294 = vmax.f32 %v1262, 0.0
          %v1295 = vmax.f32 %v1263, 0.0
          %v1296 = vmax.f32 %v1264, 0.0
          %v1297 = vmax.f32 %v1265, 0.0
          %v1298 = vmax.f32 %v1266, 0.0
          %v1299 = vmax.f32 %v1267, 0.0
          %v1300 = vmax.f32 %v1268, 0.0
          %v1301 = vmax.f32 %v1269, 0.0
          %v1302 = vmax.f32 %v1270, 0.0
          %v1303 = vmax.f32 %v1271, 0.0
          %v1304 = vmax.f32 %v1272, 0.0
          %v1305 = vmax.f32 %v1273, 0.0
          %v1306 = vmax.f32 %v1274, 0.0
          %v1307 = vmax.f32 %v1275, 0.0
          %v1308 = vmax.f32 %v1276, 0.0
          %v1309 = vmax.f32 %v1277, 0.0
          %v1310 = vmax.f32 %v1278, 0.0
          %v1311 = vmax.f32 %v1279, 0.0
          %v1312 = vmax.f32 %v1280, 0.0
          %v1313 = vmax.f32 %v1281, 0.0
          %v1314 = vmax.f32 %v1282, 0.0
          %v1315 = vmax.f32 %v1283, 0.0
          %v1316 = vmax.f32 %v1284, 0.0
          %v1317 = vmax.f32 %v1285, 0.0
          %v1318 = vmax.f32 %v1286, 0.0
          %v1319 = vmax.f32 %v1287, 0.0
          %v1320 = vld [vmem:[%s456] sm:$0xf]
          %v1321 = vld [vmem:[%s456 + $0x4] sm:$0xf]
          %v1322 = vld [vmem:[%s456 + $0x8] sm:$0xf]
          %v1323 = vld [vmem:[%s456 + $0xc] sm:$0xf]
          %v1324 = vld [vmem:[%s456 + $0x10] sm:$0xf]
          %v1325 = vld [vmem:[%s456 + $0x14] sm:$0xf]
          %v1326 = vld [vmem:[%s456 + $0x18] sm:$0xf]
          %v1327 = vld [vmem:[%s456 + $0x1c] sm:$0xf]
          %v1328 = vld [vmem:[%s456 + $0x20] sm:$0xf]
          %v1329 = vld [vmem:[%s456 + $0x24] sm:$0xf]
          %v1330 = vld [vmem:[%s456 + $0x28] sm:$0xf]
          %v1331 = vld [vmem:[%s456 + $0x2c] sm:$0xf]
          %v1332 = vld [vmem:[%s456 + $0x30] sm:$0xf]
          %v1333 = vld [vmem:[%s456 + $0x34] sm:$0xf]
          %v1334 = vld [vmem:[%s456 + $0x38] sm:$0xf]
          %v1335 = vld [vmem:[%s456 + $0x3c] sm:$0xf]
          %v1336 = vld [vmem:[%s456 + $0x40] sm:$0xf]
          %v1337 = vld [vmem:[%s456 + $0x44] sm:$0xf]
          %v1338 = vld [vmem:[%s456 + $0x48] sm:$0xf]
          %v1339 = vld [vmem:[%s456 + $0x4c] sm:$0xf]
          %v1340 = vld [vmem:[%s456 + $0x50] sm:$0xf]
          %v1341 = vld [vmem:[%s456 + $0x54] sm:$0xf]
          %v1342 = vld [vmem:[%s456 + $0x58] sm:$0xf]
          %v1343 = vld [vmem:[%s456 + $0x5c] sm:$0xf]
          %v1344 = vld [vmem:[%s456 + $0x60] sm:$0xf]
          %v1345 = vld [vmem:[%s456 + $0x64] sm:$0xf]
          %v1346 = vld [vmem:[%s456 + $0x68] sm:$0xf]
          %v1347 = vld [vmem:[%s456 + $0x6c] sm:$0xf]
          %v1348 = vld [vmem:[%s456 + $0x70] sm:$0xf]
          %v1349 = vld [vmem:[%s456 + $0x74] sm:$0xf]
          %v1350 = vld [vmem:[%s456 + $0x78] sm:$0xf]
          %v1351 = vld [vmem:[%s456 + $0x7c] sm:$0xf]
          %v1352 = vunpack.c.l.bf16 %v1320
          %v1353 = vunpack.c.l.bf16 %v1321
          %v1354 = vunpack.c.l.bf16 %v1322
          %v1355 = vunpack.c.l.bf16 %v1323
          %v1356 = vunpack.c.l.bf16 %v1324
          %v1357 = vunpack.c.l.bf16 %v1325
          %v1358 = vunpack.c.l.bf16 %v1326
          %v1359 = vunpack.c.l.bf16 %v1327
          %v1360 = vunpack.c.l.bf16 %v1328
          %v1361 = vunpack.c.l.bf16 %v1329
          %v1362 = vunpack.c.l.bf16 %v1330
          %v1363 = vunpack.c.l.bf16 %v1331
          %v1364 = vunpack.c.l.bf16 %v1332
          %v1365 = vunpack.c.l.bf16 %v1333
          %v1366 = vunpack.c.l.bf16 %v1334
          %v1367 = vunpack.c.l.bf16 %v1335
          %v1368 = vunpack.c.l.bf16 %v1336
          %v1369 = vunpack.c.l.bf16 %v1337
          %v1370 = vunpack.c.l.bf16 %v1338
          %v1371 = vunpack.c.l.bf16 %v1339
          %v1372 = vunpack.c.l.bf16 %v1340
          %v1373 = vunpack.c.l.bf16 %v1341
          %v1374 = vunpack.c.l.bf16 %v1342
          %v1375 = vunpack.c.l.bf16 %v1343
          %v1376 = vunpack.c.l.bf16 %v1344
          %v1377 = vunpack.c.l.bf16 %v1345
          %v1378 = vunpack.c.l.bf16 %v1346
          %v1379 = vunpack.c.l.bf16 %v1347
          %v1380 = vunpack.c.l.bf16 %v1348
          %v1381 = vunpack.c.l.bf16 %v1349
          %v1382 = vunpack.c.l.bf16 %v1350
          %v1383 = vunpack.c.l.bf16 %v1351
          %v1384 = vmul.f32 %v1288, %v1352
          %v1385 = vmul.f32 %v1289, %v1353
          %v1386 = vmul.f32 %v1290, %v1354
          %v1387 = vmul.f32 %v1291, %v1355
          %v1388 = vmul.f32 %v1292, %v1356
          %v1389 = vmul.f32 %v1293, %v1357
          %v1390 = vmul.f32 %v1294, %v1358
          %v1391 = vmul.f32 %v1295, %v1359
          %v1392 = vmul.f32 %v1296, %v1360
          %v1393 = vmul.f32 %v1297, %v1361
          %v1394 = vmul.f32 %v1298, %v1362
          %v1395 = vmul.f32 %v1299, %v1363
          %v1396 = vmul.f32 %v1300, %v1364
          %v1397 = vmul.f32 %v1301, %v1365
          %v1398 = vmul.f32 %v1302, %v1366
          %v1399 = vmul.f32 %v1303, %v1367
          %v1400 = vmul.f32 %v1304, %v1368
          %v1401 = vmul.f32 %v1305, %v1369
          %v1402 = vmul.f32 %v1306, %v1370
          %v1403 = vmul.f32 %v1307, %v1371
          %v1404 = vmul.f32 %v1308, %v1372
          %v1405 = vmul.f32 %v1309, %v1373
          %v1406 = vmul.f32 %v1310, %v1374
          %v1407 = vmul.f32 %v1311, %v1375
          %v1408 = vmul.f32 %v1312, %v1376
          %v1409 = vmul.f32 %v1313, %v1377
          %v1410 = vmul.f32 %v1314, %v1378
          %v1411 = vmul.f32 %v1315, %v1379
          %v1412 = vmul.f32 %v1316, %v1380
          %v1413 = vmul.f32 %v1317, %v1381
          %v1414 = vmul.f32 %v1318, %v1382
          %v1415 = vmul.f32 %v1319, %v1383
          %v1416 = vpack.c.bf16 %v1385, %v1384
          %v1417 = vpack.c.bf16 %v1387, %v1386
          %v1418 = vpack.c.bf16 %v1389, %v1388
          %v1419 = vpack.c.bf16 %v1391, %v1390
          %v1420 = vpack.c.bf16 %v1393, %v1392
          %v1421 = vpack.c.bf16 %v1395, %v1394
          %v1422 = vpack.c.bf16 %v1397, %v1396
          %v1423 = vpack.c.bf16 %v1399, %v1398
          %v1424 = vpack.c.bf16 %v1401, %v1400
          %v1425 = vpack.c.bf16 %v1403, %v1402
          %v1426 = vpack.c.bf16 %v1405, %v1404
          %v1427 = vpack.c.bf16 %v1407, %v1406
          %v1428 = vpack.c.bf16 %v1409, %v1408
          %v1429 = vpack.c.bf16 %v1411, %v1410
          %v1430 = vpack.c.bf16 %v1413, %v1412
          %v1431 = vpack.c.bf16 %v1415, %v1414
          %v1432 = vld [vmem:[#allocation10] sm:$0xf]
          %v1433 = vld [vmem:[#allocation10 + $0x4] sm:$0xf]
          %v1434 = vld [vmem:[#allocation10 + $0x8] sm:$0xf]
          %v1435 = vld [vmem:[#allocation10 + $0xc] sm:$0xf]
          %v1436 = vld [vmem:[#allocation10 + $0x10] sm:$0xf]
          %v1437 = vld [vmem:[#allocation10 + $0x14] sm:$0xf]
          %v1438 = vld [vmem:[#allocation10 + $0x18] sm:$0xf]
          %v1439 = vld [vmem:[#allocation10 + $0x1c] sm:$0xf]
          %v1440 = vld [vmem:[#allocation10 + $0x20] sm:$0xf]
          %v1441 = vld [vmem:[#allocation10 + $0x24] sm:$0xf]
          %v1442 = vld [vmem:[#allocation10 + $0x28] sm:$0xf]
          %v1443 = vld [vmem:[#allocation10 + $0x2c] sm:$0xf]
          %v1444 = vld [vmem:[#allocation10 + $0x30] sm:$0xf]
          %v1445 = vld [vmem:[#allocation10 + $0x34] sm:$0xf]
          %v1446 = vld [vmem:[#allocation10 + $0x38] sm:$0xf]
          %v1447 = vld [vmem:[#allocation10 + $0x3c] sm:$0xf]
          %v1448 = vld [vmem:[%s6] sm:$0x1]
          %v1450 = vlaneseq
          %v1451 = vshrl.u32 %v1450, 7
          %v1452 = vsub.s32 0, %v1451
          %v1453 = vrot.slane %v1448, %v1452
          %v1471 = vunpack.c.l.b16 %v1432
          %v1472 = vunpack.c.l.b16 %v1433
          %v1473 = vunpack.c.l.b16 %v1434
          %v1474 = vunpack.c.l.b16 %v1435
          %v1475 = vunpack.c.l.b16 %v1436
          %v1476 = vunpack.c.l.b16 %v1437
          %v1477 = vunpack.c.l.b16 %v1438
          %v1478 = vunpack.c.l.b16 %v1439
          %v1479 = vunpack.c.l.b16 %v1440
          %v1480 = vunpack.c.l.b16 %v1441
          %v1481 = vunpack.c.l.b16 %v1442
          %v1482 = vunpack.c.l.b16 %v1443
          %v1483 = vunpack.c.l.b16 %v1444
          %v1484 = vunpack.c.l.b16 %v1445
          %v1485 = vunpack.c.l.b16 %v1446
          %v1486 = vunpack.c.l.b16 %v1447
          %v1487 = vpack.c.b16 %v1472, %v1471
          %v1488 = vpack.c.b16 %v1474, %v1473
          %v1489 = vpack.c.b16 %v1476, %v1475
          %v1490 = vpack.c.b16 %v1478, %v1477
          %v1491 = vpack.c.b16 %v1480, %v1479
          %v1492 = vpack.c.b16 %v1482, %v1481
          %v1493 = vpack.c.b16 %v1484, %v1483
          %v1494 = vpack.c.b16 %v1486, %v1485
          %1503 = vmatprep.subr.bf16.mxu0 0
          %1504 = vmatpush1.bf16.msra.mxu0 %v1487
          %1505 = vmatprep.subr.bf16.mxu0 0
          %1506 = vmatpush1.bf16.msra.mxu0 %v1488
          %1507 = vmatprep.subr.bf16.mxu0 0
          %1508 = vmatpush1.bf16.msra.mxu0 %v1489
          %1509 = vmatprep.subr.bf16.mxu0 0
          %1510 = vmatpush1.bf16.msra.mxu0 %v1490
          %1511 = vmatprep.subr.bf16.mxu0 0
          %1512 = vmatpush1.bf16.msra.mxu0 %v1491
          %1513 = vmatprep.subr.bf16.mxu0 0
          %1514 = vmatpush1.bf16.msra.mxu0 %v1492
          %1515 = vmatprep.subr.bf16.mxu0 0
          %1516 = vmatpush1.bf16.msra.mxu0 %v1493
          %1517 = vmatprep.subr.bf16.mxu0 0
          %1518 = vmatpush1.bf16.msra.mxu0 %v1494
          %1519 = vmatprep.subr.bf16.mxu0 0
          %1520 = vmatpush1.bf16.msra.mxu0 0
          %1521 = vmatprep.subr.bf16.mxu0 0
          %1522 = vmatpush1.bf16.msra.mxu0 0
          %1523 = vmatprep.subr.bf16.mxu0 0
          %1524 = vmatpush1.bf16.msra.mxu0 0
          %1525 = vmatprep.subr.bf16.mxu0 0
          %1526 = vmatpush1.bf16.msra.mxu0 0
          %1527 = vmatprep.subr.bf16.mxu0 0
          %1528 = vmatpush1.bf16.msra.mxu0 0
          %1529 = vmatprep.subr.bf16.mxu0 0
          %1530 = vmatpush1.bf16.msra.mxu0 0
          %1531 = vmatprep.subr.bf16.mxu0 0
          %1532 = vmatpush1.bf16.msra.mxu0 0
          %1533 = vmatprep.subr.bf16.mxu0 0
          %1534 = vmatpush1.bf16.msra.mxu0 0
          %1535 = vmatprep.mubr.bf16.mxu0 0
          %1536 = vmatmul.mubr.bf16.gmra.mrb[0].mxu0 %v1416
          %v1537 = vpop.f32.mrb[0].mxu0
          %v1538 = vadd.f32 %v1453, %v1537
          %v1539 = vpop.f32.mrb[0].mxu0
          %v1540 = vpop.f32.mrb[0].mxu0
          %v1541 = vadd.f32 %v1453, %v1540
          %v1542 = vpop.f32.mrb[0].mxu0
          %1543 = vmatprep.mubr.bf16.mxu0 0
          %1544 = vmatmul.mubr.bf16.gmra.mrb[0].mxu0 %v1417
          %v1545 = vpop.f32.mrb[0].mxu0
          %v1546 = vadd.f32 %v1453, %v1545
          %v1547 = vpop.f32.mrb[0].mxu0
          %v1548 = vpop.f32.mrb[0].mxu0
          %v1549 = vadd.f32 %v1453, %v1548
          %v1550 = vpop.f32.mrb[0].mxu0
          %1551 = vmatprep.mubr.bf16.mxu0 0
          %1552 = vmatmul.mubr.bf16.gmra.mrb[0].mxu0 %v1418
          %v1553 = vpop.f32.mrb[0].mxu0
          %v1554 = vadd.f32 %v1453, %v1553
          %v1555 = vpop.f32.mrb[0].mxu0
          %v1556 = vpop.f32.mrb[0].mxu0
          %v1557 = vadd.f32 %v1453, %v1556
          %v1558 = vpop.f32.mrb[0].mxu0
          %1559 = vmatprep.mubr.bf16.mxu0 0
          %1560 = vmatmul.mubr.bf16.gmra.mrb[0].mxu0 %v1419
          %v1561 = vpop.f32.mrb[0].mxu0
          %v1562 = vadd.f32 %v1453, %v1561
          %v1563 = vpop.f32.mrb[0].mxu0
          %v1564 = vpop.f32.mrb[0].mxu0
          %v1565 = vadd.f32 %v1453, %v1564
          %v1566 = vpop.f32.mrb[0].mxu0
          %1567 = vmatprep.mubr.bf16.mxu0 0
          %1568 = vmatmul.mubr.bf16.gmra.mrb[0].mxu0 %v1420
          %v1569 = vpop.f32.mrb[0].mxu0
          %v1570 = vadd.f32 %v1453, %v1569
          %v1571 = vpop.f32.mrb[0].mxu0
          %v1572 = vpop.f32.mrb[0].mxu0
          %v1573 = vadd.f32 %v1453, %v1572
          %v1574 = vpop.f32.mrb[0].mxu0
          %1575 = vmatprep.mubr.bf16.mxu0 0
          %1576 = vmatmul.mubr.bf16.gmra.mrb[0].mxu0 %v1421
          %v1577 = vpop.f32.mrb[0].mxu0
          %v1578 = vadd.f32 %v1453, %v1577
          %v1579 = vpop.f32.mrb[0].mxu0
          %v1580 = vpop.f32.mrb[0].mxu0
          %v1581 = vadd.f32 %v1453, %v1580
          %v1582 = vpop.f32.mrb[0].mxu0
          %1583 = vmatprep.mubr.bf16.mxu0 0
          %1584 = vmatmul.mubr.bf16.gmra.mrb[0].mxu0 %v1422
          %v1585 = vpop.f32.mrb[0].mxu0
          %v1586 = vadd.f32 %v1453, %v1585
          %v1587 = vpop.f32.mrb[0].mxu0
          %v1588 = vpop.f32.mrb[0].mxu0
          %v1589 = vadd.f32 %v1453, %v1588
          %v1590 = vpop.f32.mrb[0].mxu0
          %1591 = vmatprep.mubr.bf16.mxu0 0
          %1592 = vmatmul.mubr.bf16.gmra.mrb[0].mxu0 %v1423
          %v1593 = vpop.f32.mrb[0].mxu0
          %v1594 = vadd.f32 %v1453, %v1593
          %v1595 = vpop.f32.mrb[0].mxu0
          %v1596 = vpop.f32.mrb[0].mxu0
          %v1597 = vadd.f32 %v1453, %v1596
          %v1598 = vpop.f32.mrb[0].mxu0
          %1599 = vmatprep.mubr.bf16.mxu0 0
          %1600 = vmatmul.mubr.bf16.gmra.mrb[0].mxu0 %v1424
          %v1601 = vpop.f32.mrb[0].mxu0
          %v1602 = vadd.f32 %v1453, %v1601
          %v1603 = vpop.f32.mrb[0].mxu0
          %v1604 = vpop.f32.mrb[0].mxu0
          %v1605 = vadd.f32 %v1453, %v1604
          %v1606 = vpop.f32.mrb[0].mxu0
          %1607 = vmatprep.mubr.bf16.mxu0 0
          %1608 = vmatmul.mubr.bf16.gmra.mrb[0].mxu0 %v1425
          %v1609 = vpop.f32.mrb[0].mxu0
          %v1610 = vadd.f32 %v1453, %v1609
          %v1611 = vpop.f32.mrb[0].mxu0
          %v1612 = vpop.f32.mrb[0].mxu0
          %v1613 = vadd.f32 %v1453, %v1612
          %v1614 = vpop.f32.mrb[0].mxu0
          %1615 = vmatprep.mubr.bf16.mxu0 0
          %1616 = vmatmul.mubr.bf16.gmra.mrb[0].mxu0 %v1426
          %v1617 = vpop.f32.mrb[0].mxu0
          %v1618 = vadd.f32 %v1453, %v1617
          %v1619 = vpop.f32.mrb[0].mxu0
          %v1620 = vpop.f32.mrb[0].mxu0
          %v1621 = vadd.f32 %v1453, %v1620
          %v1622 = vpop.f32.mrb[0].mxu0
          %1623 = vmatprep.mubr.bf16.mxu0 0
          %1624 = vmatmul.mubr.bf16.gmra.mrb[0].mxu0 %v1427
          %v1625 = vpop.f32.mrb[0].mxu0
          %v1626 = vadd.f32 %v1453, %v1625
          %v1627 = vpop.f32.mrb[0].mxu0
          %v1628 = vpop.f32.mrb[0].mxu0
          %v1629 = vadd.f32 %v1453, %v1628
          %v1630 = vpop.f32.mrb[0].mxu0
          %1631 = vmatprep.mubr.bf16.mxu0 0
          %1632 = vmatmul.mubr.bf16.gmra.mrb[0].mxu0 %v1428
          %v1633 = vpop.f32.mrb[0].mxu0
          %v1634 = vadd.f32 %v1453, %v1633
          %v1635 = vpop.f32.mrb[0].mxu0
          %v1636 = vpop.f32.mrb[0].mxu0
          %v1637 = vadd.f32 %v1453, %v1636
          %v1638 = vpop.f32.mrb[0].mxu0
          %1639 = vmatprep.mubr.bf16.mxu0 0
          %1640 = vmatmul.mubr.bf16.gmra.mrb[0].mxu0 %v1429
          %v1641 = vpop.f32.mrb[0].mxu0
          %v1642 = vadd.f32 %v1453, %v1641
          %v1643 = vpop.f32.mrb[0].mxu0
          %v1644 = vpop.f32.mrb[0].mxu0
          %v1645 = vadd.f32 %v1453, %v1644
          %v1646 = vpop.f32.mrb[0].mxu0
          %1647 = vmatprep.mubr.bf16.mxu0 0
          %1648 = vmatmul.mubr.bf16.gmra.mrb[0].mxu0 %v1430
          %v1649 = vpop.f32.mrb[0].mxu0
          %v1650 = vadd.f32 %v1453, %v1649
          %v1651 = vpop.f32.mrb[0].mxu0
          %v1652 = vpop.f32.mrb[0].mxu0
          %v1653 = vadd.f32 %v1453, %v1652
          %v1654 = vpop.f32.mrb[0].mxu0
          %1655 = vmatprep.mubr.bf16.mxu0 0
          %1656 = vmatmul.mubr.bf16.gmra.mrb[0].mxu0 %v1431
          %v1657 = vpop.f32.mrb[0].mxu0
          %v1658 = vadd.f32 %v1453, %v1657
          %v1659 = vpop.f32.mrb[0].mxu0
          %v1660 = vpop.f32.mrb[0].mxu0
          %v1661 = vadd.f32 %v1453, %v1660
          %v1662 = vpop.f32.mrb[0].mxu0
          %1663 = vdwg.mxu0
          %v1664 = vmax.f32 %v1538, 0.0
          %v1665 = vmax.f32 %v1541, 0.0
          %v1666 = vmax.f32 %v1546, 0.0
          %v1667 = vmax.f32 %v1549, 0.0
          %v1668 = vmax.f32 %v1554, 0.0
          %v1669 = vmax.f32 %v1557, 0.0
          %v1670 = vmax.f32 %v1562, 0.0
          %v1671 = vmax.f32 %v1565, 0.0
          %v1672 = vmax.f32 %v1570, 0.0
          %v1673 = vmax.f32 %v1573, 0.0
          %v1674 = vmax.f32 %v1578, 0.0
          %v1675 = vmax.f32 %v1581, 0.0
          %v1676 = vmax.f32 %v1586, 0.0
          %v1677 = vmax.f32 %v1589, 0.0
          %v1678 = vmax.f32 %v1594, 0.0
          %v1679 = vmax.f32 %v1597, 0.0
          %v1680 = vmax.f32 %v1602, 0.0
          %v1681 = vmax.f32 %v1605, 0.0
          %v1682 = vmax.f32 %v1610, 0.0
          %v1683 = vmax.f32 %v1613, 0.0
          %v1684 = vmax.f32 %v1618, 0.0
          %v1685 = vmax.f32 %v1621, 0.0
          %v1686 = vmax.f32 %v1626, 0.0
          %v1687 = vmax.f32 %v1629, 0.0
          %v1688 = vmax.f32 %v1634, 0.0
          %v1689 = vmax.f32 %v1637, 0.0
          %v1690 = vmax.f32 %v1642, 0.0
          %v1691 = vmax.f32 %v1645, 0.0
          %v1692 = vmax.f32 %v1650, 0.0
          %v1693 = vmax.f32 %v1653, 0.0
          %v1694 = vmax.f32 %v1658, 0.0
          %v1695 = vmax.f32 %v1661, 0.0
          %v1696 = vld [vmem:[%s7] sm:$0x1]
          %v1698 = vlaneseq
          %v1699 = vshrl.u32 %v1698, 7
          %v1700 = vsub.s32 0, %v1699
          %v1701 = vrot.slane %v1696, %v1700
          %v1703 = vmul.f32 %v1664, %v1701
          %v1704 = vmul.f32 %v1665, %v1701
          %v1705 = vmul.f32 %v1666, %v1701
          %v1706 = vmul.f32 %v1667, %v1701
          %v1707 = vmul.f32 %v1668, %v1701
          %v1708 = vmul.f32 %v1669, %v1701
          %v1709 = vmul.f32 %v1670, %v1701
          %v1710 = vmul.f32 %v1671, %v1701
          %v1711 = vmul.f32 %v1672, %v1701
          %v1712 = vmul.f32 %v1673, %v1701
          %v1713 = vmul.f32 %v1674, %v1701
          %v1714 = vmul.f32 %v1675, %v1701
          %v1715 = vmul.f32 %v1676, %v1701
          %v1716 = vmul.f32 %v1677, %v1701
          %v1717 = vmul.f32 %v1678, %v1701
          %v1718 = vmul.f32 %v1679, %v1701
          %v1719 = vmul.f32 %v1680, %v1701
          %v1720 = vmul.f32 %v1681, %v1701
          %v1721 = vmul.f32 %v1682, %v1701
          %v1722 = vmul.f32 %v1683, %v1701
          %v1723 = vmul.f32 %v1684, %v1701
          %v1724 = vmul.f32 %v1685, %v1701
          %v1725 = vmul.f32 %v1686, %v1701
          %v1726 = vmul.f32 %v1687, %v1701
          %v1727 = vmul.f32 %v1688, %v1701
          %v1728 = vmul.f32 %v1689, %v1701
          %v1729 = vmul.f32 %v1690, %v1701
          %v1730 = vmul.f32 %v1691, %v1701
          %v1731 = vmul.f32 %v1692, %v1701
          %v1732 = vmul.f32 %v1693, %v1701
          %v1733 = vmul.f32 %v1694, %v1701
          %v1734 = vmul.f32 %v1695, %v1701
          %1735 = vadd.xlane.f32.xlu0 %v1703
          %v1736 = vpop.xlane.xlu0 %1735
          %1737 = vadd.xlane.f32.xlu0 %v1704
          %v1738 = vpop.xlane.xlu0 %1737
          %1739 = vadd.xlane.f32.xlu0 %v1705
          %v1740 = vpop.xlane.xlu0 %1739
          %1741 = vadd.xlane.f32.xlu0 %v1706
          %v1742 = vpop.xlane.xlu0 %1741
          %1743 = vadd.xlane.f32.xlu0 %v1707
          %v1744 = vpop.xlane.xlu0 %1743
          %1745 = vadd.xlane.f32.xlu0 %v1708
          %v1746 = vpop.xlane.xlu0 %1745
          %1747 = vadd.xlane.f32.xlu0 %v1709
          %v1748 = vpop.xlane.xlu0 %1747
          %1749 = vadd.xlane.f32.xlu0 %v1710
          %v1750 = vpop.xlane.xlu0 %1749
          %1751 = vadd.xlane.f32.xlu0 %v1711
          %v1752 = vpop.xlane.xlu0 %1751
          %1753 = vadd.xlane.f32.xlu0 %v1712
          %v1754 = vpop.xlane.xlu0 %1753
          %1755 = vadd.xlane.f32.xlu0 %v1713
          %v1756 = vpop.xlane.xlu0 %1755
          %1757 = vadd.xlane.f32.xlu0 %v1714
          %v1758 = vpop.xlane.xlu0 %1757
          %1759 = vadd.xlane.f32.xlu0 %v1715
          %v1760 = vpop.xlane.xlu0 %1759
          %1761 = vadd.xlane.f32.xlu0 %v1716
          %v1762 = vpop.xlane.xlu0 %1761
          %1763 = vadd.xlane.f32.xlu0 %v1717
          %v1764 = vpop.xlane.xlu0 %1763
          %1765 = vadd.xlane.f32.xlu0 %v1718
          %v1766 = vpop.xlane.xlu0 %1765
          %1767 = vadd.xlane.f32.xlu0 %v1719
          %v1768 = vpop.xlane.xlu0 %1767
          %1769 = vadd.xlane.f32.xlu0 %v1720
          %v1770 = vpop.xlane.xlu0 %1769
          %1771 = vadd.xlane.f32.xlu0 %v1721
          %v1772 = vpop.xlane.xlu0 %1771
          %1773 = vadd.xlane.f32.xlu0 %v1722
          %v1774 = vpop.xlane.xlu0 %1773
          %1775 = vadd.xlane.f32.xlu0 %v1723
          %v1776 = vpop.xlane.xlu0 %1775
          %1777 = vadd.xlane.f32.xlu0 %v1724
          %v1778 = vpop.xlane.xlu0 %1777
          %1779 = vadd.xlane.f32.xlu0 %v1725
          %v1780 = vpop.xlane.xlu0 %1779
          %1781 = vadd.xlane.f32.xlu0 %v1726
          %v1782 = vpop.xlane.xlu0 %1781
          %1783 = vadd.xlane.f32.xlu0 %v1727
          %v1784 = vpop.xlane.xlu0 %1783
          %1785 = vadd.xlane.f32.xlu0 %v1728
          %v1786 = vpop.xlane.xlu0 %1785
          %1787 = vadd.xlane.f32.xlu0 %v1729
          %v1788 = vpop.xlane.xlu0 %1787
          %1789 = vadd.xlane.f32.xlu0 %v1730
          %v1790 = vpop.xlane.xlu0 %1789
          %1791 = vadd.xlane.f32.xlu0 %v1731
          %v1792 = vpop.xlane.xlu0 %1791
          %1793 = vadd.xlane.f32.xlu0 %v1732
          %v1794 = vpop.xlane.xlu0 %1793
          %1795 = vadd.xlane.f32.xlu0 %v1733
          %v1796 = vpop.xlane.xlu0 %1795
          %1797 = vadd.xlane.f32.xlu0 %v1734
          %v1798 = vpop.xlane.xlu0 %1797
          %s1799 = sld [smem:[#allocation3]]
          %v1800 = vstv %s1799
          %v1801 = vadd.f32 %v1736, %v1800
          %v1802 = vadd.f32 %v1738, %v1800
          %v1803 = vadd.f32 %v1740, %v1800
          %v1804 = vadd.f32 %v1742, %v1800
          %v1805 = vadd.f32 %v1744, %v1800
          %v1806 = vadd.f32 %v1746, %v1800
          %v1807 = vadd.f32 %v1748, %v1800
          %v1808 = vadd.f32 %v1750, %v1800
          %v1809 = vadd.f32 %v1752, %v1800
          %v1810 = vadd.f32 %v1754, %v1800
          %v1811 = vadd.f32 %v1756, %v1800
          %v1812 = vadd.f32 %v1758, %v1800
          %v1813 = vadd.f32 %v1760, %v1800
          %v1814 = vadd.f32 %v1762, %v1800
          %v1815 = vadd.f32 %v1764, %v1800
          %v1816 = vadd.f32 %v1766, %v1800
          %v1817 = vadd.f32 %v1768, %v1800
          %v1818 = vadd.f32 %v1770, %v1800
          %v1819 = vadd.f32 %v1772, %v1800
          %v1820 = vadd.f32 %v1774, %v1800
          %v1821 = vadd.f32 %v1776, %v1800
          %v1822 = vadd.f32 %v1778, %v1800
          %v1823 = vadd.f32 %v1780, %v1800
          %v1824 = vadd.f32 %v1782, %v1800
          %v1825 = vadd.f32 %v1784, %v1800
          %v1826 = vadd.f32 %v1786, %v1800
          %v1827 = vadd.f32 %v1788, %v1800
          %v1828 = vadd.f32 %v1790, %v1800
          %v1829 = vadd.f32 %v1792, %v1800
          %v1830 = vadd.f32 %v1794, %v1800
          %v1831 = vadd.f32 %v1796, %v1800
          %v1832 = vadd.f32 %v1798, %v1800
          %v1865 = vlaneseq
          %v1866 = vshrl.u32 %v1865, 7
          %v1867 = vsub.s32 0, %v1866
          %v1868 = vrot.slane %v1801, %v1867
          %v1869 = vlaneseq
          %v1870 = vshrl.u32 %v1869, 7
          %v1871 = vsub.s32 1, %v1870
          %v1872 = vrot.slane %v1801, %v1871
          %v1873 = vlaneseq
          %v1874 = vshrl.u32 %v1873, 7
          %v1875 = vsub.s32 2, %v1874
          %v1876 = vrot.slane %v1801, %v1875
          %v1877 = vlaneseq
          %v1878 = vshrl.u32 %v1877, 7
          %v1879 = vsub.s32 3, %v1878
          %v1880 = vrot.slane %v1801, %v1879
          %v1881 = vlaneseq
          %v1882 = vshrl.u32 %v1881, 7
          %v1883 = vsub.s32 4, %v1882
          %v1884 = vrot.slane %v1801, %v1883
          %v1885 = vlaneseq
          %v1886 = vshrl.u32 %v1885, 7
          %v1887 = vsub.s32 5, %v1886
          %v1888 = vrot.slane %v1801, %v1887
          %v1889 = vlaneseq
          %v1890 = vshrl.u32 %v1889, 7
          %v1891 = vsub.s32 6, %v1890
          %v1892 = vrot.slane %v1801, %v1891
          %v1893 = vlaneseq
          %v1894 = vshrl.u32 %v1893, 7
          %v1895 = vsub.s32 7, %v1894
          %v1896 = vrot.slane %v1801, %v1895
          %v1897 = vlaneseq
          %v1898 = vshrl.u32 %v1897, 7
          %v1899 = vsub.s32 0, %v1898
          %v1900 = vrot.slane %v1802, %v1899
          %v1901 = vlaneseq
          %v1902 = vshrl.u32 %v1901, 7
          %v1903 = vsub.s32 1, %v1902
          %v1904 = vrot.slane %v1802, %v1903
          %v1905 = vlaneseq
          %v1906 = vshrl.u32 %v1905, 7
          %v1907 = vsub.s32 2, %v1906
          %v1908 = vrot.slane %v1802, %v1907
          %v1909 = vlaneseq
          %v1910 = vshrl.u32 %v1909, 7
          %v1911 = vsub.s32 3, %v1910
          %v1912 = vrot.slane %v1802, %v1911
          %v1913 = vlaneseq
          %v1914 = vshrl.u32 %v1913, 7
          %v1915 = vsub.s32 4, %v1914
          %v1916 = vrot.slane %v1802, %v1915
          %v1917 = vlaneseq
          %v1918 = vshrl.u32 %v1917, 7
          %v1919 = vsub.s32 5, %v1918
          %v1920 = vrot.slane %v1802, %v1919
          %v1921 = vlaneseq
          %v1922 = vshrl.u32 %v1921, 7
          %v1923 = vsub.s32 6, %v1922
          %v1924 = vrot.slane %v1802, %v1923
          %v1925 = vlaneseq
          %v1926 = vshrl.u32 %v1925, 7
          %v1927 = vsub.s32 7, %v1926
          %v1928 = vrot.slane %v1802, %v1927
          %v1929 = vlaneseq
          %v1930 = vshrl.u32 %v1929, 7
          %v1931 = vsub.s32 0, %v1930
          %v1932 = vrot.slane %v1803, %v1931
          %v1933 = vlaneseq
          %v1934 = vshrl.u32 %v1933, 7
          %v1935 = vsub.s32 1, %v1934
          %v1936 = vrot.slane %v1803, %v1935
          %v1937 = vlaneseq
          %v1938 = vshrl.u32 %v1937, 7
          %v1939 = vsub.s32 2, %v1938
          %v1940 = vrot.slane %v1803, %v1939
          %v1941 = vlaneseq
          %v1942 = vshrl.u32 %v1941, 7
          %v1943 = vsub.s32 3, %v1942
          %v1944 = vrot.slane %v1803, %v1943
          %v1945 = vlaneseq
          %v1946 = vshrl.u32 %v1945, 7
          %v1947 = vsub.s32 4, %v1946
          %v1948 = vrot.slane %v1803, %v1947
          %v1949 = vlaneseq
          %v1950 = vshrl.u32 %v1949, 7
          %v1951 = vsub.s32 5, %v1950
          %v1952 = vrot.slane %v1803, %v1951
          %v1953 = vlaneseq
          %v1954 = vshrl.u32 %v1953, 7
          %v1955 = vsub.s32 6, %v1954
          %v1956 = vrot.slane %v1803, %v1955
          %v1957 = vlaneseq
          %v1958 = vshrl.u32 %v1957, 7
          %v1959 = vsub.s32 7, %v1958
          %v1960 = vrot.slane %v1803, %v1959
          %v1961 = vlaneseq
          %v1962 = vshrl.u32 %v1961, 7
          %v1963 = vsub.s32 0, %v1962
          %v1964 = vrot.slane %v1804, %v1963
          %v1965 = vlaneseq
          %v1966 = vshrl.u32 %v1965, 7
          %v1967 = vsub.s32 1, %v1966
          %v1968 = vrot.slane %v1804, %v1967
          %v1969 = vlaneseq
          %v1970 = vshrl.u32 %v1969, 7
          %v1971 = vsub.s32 2, %v1970
          %v1972 = vrot.slane %v1804, %v1971
          %v1973 = vlaneseq
          %v1974 = vshrl.u32 %v1973, 7
          %v1975 = vsub.s32 3, %v1974
          %v1976 = vrot.slane %v1804, %v1975
          %v1977 = vlaneseq
          %v1978 = vshrl.u32 %v1977, 7
          %v1979 = vsub.s32 4, %v1978
          %v1980 = vrot.slane %v1804, %v1979
          %v1981 = vlaneseq
          %v1982 = vshrl.u32 %v1981, 7
          %v1983 = vsub.s32 5, %v1982
          %v1984 = vrot.slane %v1804, %v1983
          %v1985 = vlaneseq
          %v1986 = vshrl.u32 %v1985, 7
          %v1987 = vsub.s32 6, %v1986
          %v1988 = vrot.slane %v1804, %v1987
          %v1989 = vlaneseq
          %v1990 = vshrl.u32 %v1989, 7
          %v1991 = vsub.s32 7, %v1990
          %v1992 = vrot.slane %v1804, %v1991
          %v1993 = vlaneseq
          %v1994 = vshrl.u32 %v1993, 7
          %v1995 = vsub.s32 0, %v1994
          %v1996 = vrot.slane %v1805, %v1995
          %v1997 = vlaneseq
          %v1998 = vshrl.u32 %v1997, 7
          %v1999 = vsub.s32 1, %v1998
          %v2000 = vrot.slane %v1805, %v1999
          %v2001 = vlaneseq
          %v2002 = vshrl.u32 %v2001, 7
          %v2003 = vsub.s32 2, %v2002
          %v2004 = vrot.slane %v1805, %v2003
          %v2005 = vlaneseq
          %v2006 = vshrl.u32 %v2005, 7
          %v2007 = vsub.s32 3, %v2006
          %v2008 = vrot.slane %v1805, %v2007
          %v2009 = vlaneseq
          %v2010 = vshrl.u32 %v2009, 7
          %v2011 = vsub.s32 4, %v2010
          %v2012 = vrot.slane %v1805, %v2011
          %v2013 = vlaneseq
          %v2014 = vshrl.u32 %v2013, 7
          %v2015 = vsub.s32 5, %v2014
          %v2016 = vrot.slane %v1805, %v2015
          %v2017 = vlaneseq
          %v2018 = vshrl.u32 %v2017, 7
          %v2019 = vsub.s32 6, %v2018
          %v2020 = vrot.slane %v1805, %v2019
          %v2021 = vlaneseq
          %v2022 = vshrl.u32 %v2021, 7
          %v2023 = vsub.s32 7, %v2022
          %v2024 = vrot.slane %v1805, %v2023
          %v2025 = vlaneseq
          %v2026 = vshrl.u32 %v2025, 7
          %v2027 = vsub.s32 0, %v2026
          %v2028 = vrot.slane %v1806, %v2027
          %v2029 = vlaneseq
          %v2030 = vshrl.u32 %v2029, 7
          %v2031 = vsub.s32 1, %v2030
          %v2032 = vrot.slane %v1806, %v2031
          %v2033 = vlaneseq
          %v2034 = vshrl.u32 %v2033, 7
          %v2035 = vsub.s32 2, %v2034
          %v2036 = vrot.slane %v1806, %v2035
          %v2037 = vlaneseq
          %v2038 = vshrl.u32 %v2037, 7
          %v2039 = vsub.s32 3, %v2038
          %v2040 = vrot.slane %v1806, %v2039
          %v2041 = vlaneseq
          %v2042 = vshrl.u32 %v2041, 7
          %v2043 = vsub.s32 4, %v2042
          %v2044 = vrot.slane %v1806, %v2043
          %v2045 = vlaneseq
          %v2046 = vshrl.u32 %v2045, 7
          %v2047 = vsub.s32 5, %v2046
          %v2048 = vrot.slane %v1806, %v2047
          %v2049 = vlaneseq
          %v2050 = vshrl.u32 %v2049, 7
          %v2051 = vsub.s32 6, %v2050
          %v2052 = vrot.slane %v1806, %v2051
          %v2053 = vlaneseq
          %v2054 = vshrl.u32 %v2053, 7
          %v2055 = vsub.s32 7, %v2054
          %v2056 = vrot.slane %v1806, %v2055
          %v2057 = vlaneseq
          %v2058 = vshrl.u32 %v2057, 7
          %v2059 = vsub.s32 0, %v2058
          %v2060 = vrot.slane %v1807, %v2059
          %v2061 = vlaneseq
          %v2062 = vshrl.u32 %v2061, 7
          %v2063 = vsub.s32 1, %v2062
          %v2064 = vrot.slane %v1807, %v2063
          %v2065 = vlaneseq
          %v2066 = vshrl.u32 %v2065, 7
          %v2067 = vsub.s32 2, %v2066
          %v2068 = vrot.slane %v1807, %v2067
          %v2069 = vlaneseq
          %v2070 = vshrl.u32 %v2069, 7
          %v2071 = vsub.s32 3, %v2070
          %v2072 = vrot.slane %v1807, %v2071
          %v2073 = vlaneseq
          %v2074 = vshrl.u32 %v2073, 7
          %v2075 = vsub.s32 4, %v2074
          %v2076 = vrot.slane %v1807, %v2075
          %v2077 = vlaneseq
          %v2078 = vshrl.u32 %v2077, 7
          %v2079 = vsub.s32 5, %v2078
          %v2080 = vrot.slane %v1807, %v2079
          %v2081 = vlaneseq
          %v2082 = vshrl.u32 %v2081, 7
          %v2083 = vsub.s32 6, %v2082
          %v2084 = vrot.slane %v1807, %v2083
          %v2085 = vlaneseq
          %v2086 = vshrl.u32 %v2085, 7
          %v2087 = vsub.s32 7, %v2086
          %v2088 = vrot.slane %v1807, %v2087
          %v2089 = vlaneseq
          %v2090 = vshrl.u32 %v2089, 7
          %v2091 = vsub.s32 0, %v2090
          %v2092 = vrot.slane %v1808, %v2091
          %v2093 = vlaneseq
          %v2094 = vshrl.u32 %v2093, 7
          %v2095 = vsub.s32 1, %v2094
          %v2096 = vrot.slane %v1808, %v2095
          %v2097 = vlaneseq
          %v2098 = vshrl.u32 %v2097, 7
          %v2099 = vsub.s32 2, %v2098
          %v2100 = vrot.slane %v1808, %v2099
          %v2101 = vlaneseq
          %v2102 = vshrl.u32 %v2101, 7
          %v2103 = vsub.s32 3, %v2102
          %v2104 = vrot.slane %v1808, %v2103
          %v2105 = vlaneseq
          %v2106 = vshrl.u32 %v2105, 7
          %v2107 = vsub.s32 4, %v2106
          %v2108 = vrot.slane %v1808, %v2107
          %v2109 = vlaneseq
          %v2110 = vshrl.u32 %v2109, 7
          %v2111 = vsub.s32 5, %v2110
          %v2112 = vrot.slane %v1808, %v2111
          %v2113 = vlaneseq
          %v2114 = vshrl.u32 %v2113, 7
          %v2115 = vsub.s32 6, %v2114
          %v2116 = vrot.slane %v1808, %v2115
          %v2117 = vlaneseq
          %v2118 = vshrl.u32 %v2117, 7
          %v2119 = vsub.s32 7, %v2118
          %v2120 = vrot.slane %v1808, %v2119
          %v2121 = vlaneseq
          %v2122 = vshrl.u32 %v2121, 7
          %v2123 = vsub.s32 0, %v2122
          %v2124 = vrot.slane %v1809, %v2123
          %v2125 = vlaneseq
          %v2126 = vshrl.u32 %v2125, 7
          %v2127 = vsub.s32 1, %v2126
          %v2128 = vrot.slane %v1809, %v2127
          %v2129 = vlaneseq
          %v2130 = vshrl.u32 %v2129, 7
          %v2131 = vsub.s32 2, %v2130
          %v2132 = vrot.slane %v1809, %v2131
          %v2133 = vlaneseq
          %v2134 = vshrl.u32 %v2133, 7
          %v2135 = vsub.s32 3, %v2134
          %v2136 = vrot.slane %v1809, %v2135
          %v2137 = vlaneseq
          %v2138 = vshrl.u32 %v2137, 7
          %v2139 = vsub.s32 4, %v2138
          %v2140 = vrot.slane %v1809, %v2139
          %v2141 = vlaneseq
          %v2142 = vshrl.u32 %v2141, 7
          %v2143 = vsub.s32 5, %v2142
          %v2144 = vrot.slane %v1809, %v2143
          %v2145 = vlaneseq
          %v2146 = vshrl.u32 %v2145, 7
          %v2147 = vsub.s32 6, %v2146
          %v2148 = vrot.slane %v1809, %v2147
          %v2149 = vlaneseq
          %v2150 = vshrl.u32 %v2149, 7
          %v2151 = vsub.s32 7, %v2150
          %v2152 = vrot.slane %v1809, %v2151
          %v2153 = vlaneseq
          %v2154 = vshrl.u32 %v2153, 7
          %v2155 = vsub.s32 0, %v2154
          %v2156 = vrot.slane %v1810, %v2155
          %v2157 = vlaneseq
          %v2158 = vshrl.u32 %v2157, 7
          %v2159 = vsub.s32 1, %v2158
          %v2160 = vrot.slane %v1810, %v2159
          %v2161 = vlaneseq
          %v2162 = vshrl.u32 %v2161, 7
          %v2163 = vsub.s32 2, %v2162
          %v2164 = vrot.slane %v1810, %v2163
          %v2165 = vlaneseq
          %v2166 = vshrl.u32 %v2165, 7
          %v2167 = vsub.s32 3, %v2166
          %v2168 = vrot.slane %v1810, %v2167
          %v2169 = vlaneseq
          %v2170 = vshrl.u32 %v2169, 7
          %v2171 = vsub.s32 4, %v2170
          %v2172 = vrot.slane %v1810, %v2171
          %v2173 = vlaneseq
          %v2174 = vshrl.u32 %v2173, 7
          %v2175 = vsub.s32 5, %v2174
          %v2176 = vrot.slane %v1810, %v2175
          %v2177 = vlaneseq
          %v2178 = vshrl.u32 %v2177, 7
          %v2179 = vsub.s32 6, %v2178
          %v2180 = vrot.slane %v1810, %v2179
          %v2181 = vlaneseq
          %v2182 = vshrl.u32 %v2181, 7
          %v2183 = vsub.s32 7, %v2182
          %v2184 = vrot.slane %v1810, %v2183
          %v2185 = vlaneseq
          %v2186 = vshrl.u32 %v2185, 7
          %v2187 = vsub.s32 0, %v2186
          %v2188 = vrot.slane %v1811, %v2187
          %v2189 = vlaneseq
          %v2190 = vshrl.u32 %v2189, 7
          %v2191 = vsub.s32 1, %v2190
          %v2192 = vrot.slane %v1811, %v2191
          %v2193 = vlaneseq
          %v2194 = vshrl.u32 %v2193, 7
          %v2195 = vsub.s32 2, %v2194
          %v2196 = vrot.slane %v1811, %v2195
          %v2197 = vlaneseq
          %v2198 = vshrl.u32 %v2197, 7
          %v2199 = vsub.s32 3, %v2198
          %v2200 = vrot.slane %v1811, %v2199
          %v2201 = vlaneseq
          %v2202 = vshrl.u32 %v2201, 7
          %v2203 = vsub.s32 4, %v2202
          %v2204 = vrot.slane %v1811, %v2203
          %v2205 = vlaneseq
          %v2206 = vshrl.u32 %v2205, 7
          %v2207 = vsub.s32 5, %v2206
          %v2208 = vrot.slane %v1811, %v2207
          %v2209 = vlaneseq
          %v2210 = vshrl.u32 %v2209, 7
          %v2211 = vsub.s32 6, %v2210
          %v2212 = vrot.slane %v1811, %v2211
          %v2213 = vlaneseq
          %v2214 = vshrl.u32 %v2213, 7
          %v2215 = vsub.s32 7, %v2214
          %v2216 = vrot.slane %v1811, %v2215
          %v2217 = vlaneseq
          %v2218 = vshrl.u32 %v2217, 7
          %v2219 = vsub.s32 0, %v2218
          %v2220 = vrot.slane %v1812, %v2219
          %v2221 = vlaneseq
          %v2222 = vshrl.u32 %v2221, 7
          %v2223 = vsub.s32 1, %v2222
          %v2224 = vrot.slane %v1812, %v2223
          %v2225 = vlaneseq
          %v2226 = vshrl.u32 %v2225, 7
          %v2227 = vsub.s32 2, %v2226
          %v2228 = vrot.slane %v1812, %v2227
          %v2229 = vlaneseq
          %v2230 = vshrl.u32 %v2229, 7
          %v2231 = vsub.s32 3, %v2230
          %v2232 = vrot.slane %v1812, %v2231
          %v2233 = vlaneseq
          %v2234 = vshrl.u32 %v2233, 7
          %v2235 = vsub.s32 4, %v2234
          %v2236 = vrot.slane %v1812, %v2235
          %v2237 = vlaneseq
          %v2238 = vshrl.u32 %v2237, 7
          %v2239 = vsub.s32 5, %v2238
          %v2240 = vrot.slane %v1812, %v2239
          %v2241 = vlaneseq
          %v2242 = vshrl.u32 %v2241, 7
          %v2243 = vsub.s32 6, %v2242
          %v2244 = vrot.slane %v1812, %v2243
          %v2245 = vlaneseq
          %v2246 = vshrl.u32 %v2245, 7
          %v2247 = vsub.s32 7, %v2246
          %v2248 = vrot.slane %v1812, %v2247
          %v2249 = vlaneseq
          %v2250 = vshrl.u32 %v2249, 7
          %v2251 = vsub.s32 0, %v2250
          %v2252 = vrot.slane %v1813, %v2251
          %v2253 = vlaneseq
          %v2254 = vshrl.u32 %v2253, 7
          %v2255 = vsub.s32 1, %v2254
          %v2256 = vrot.slane %v1813, %v2255
          %v2257 = vlaneseq
          %v2258 = vshrl.u32 %v2257, 7
          %v2259 = vsub.s32 2, %v2258
          %v2260 = vrot.slane %v1813, %v2259
          %v2261 = vlaneseq
          %v2262 = vshrl.u32 %v2261, 7
          %v2263 = vsub.s32 3, %v2262
          %v2264 = vrot.slane %v1813, %v2263
          %v2265 = vlaneseq
          %v2266 = vshrl.u32 %v2265, 7
          %v2267 = vsub.s32 4, %v2266
          %v2268 = vrot.slane %v1813, %v2267
          %v2269 = vlaneseq
          %v2270 = vshrl.u32 %v2269, 7
          %v2271 = vsub.s32 5, %v2270
          %v2272 = vrot.slane %v1813, %v2271
          %v2273 = vlaneseq
          %v2274 = vshrl.u32 %v2273, 7
          %v2275 = vsub.s32 6, %v2274
          %v2276 = vrot.slane %v1813, %v2275
          %v2277 = vlaneseq
          %v2278 = vshrl.u32 %v2277, 7
          %v2279 = vsub.s32 7, %v2278
          %v2280 = vrot.slane %v1813, %v2279
          %v2281 = vlaneseq
          %v2282 = vshrl.u32 %v2281, 7
          %v2283 = vsub.s32 0, %v2282
          %v2284 = vrot.slane %v1814, %v2283
          %v2285 = vlaneseq
          %v2286 = vshrl.u32 %v2285, 7
          %v2287 = vsub.s32 1, %v2286
          %v2288 = vrot.slane %v1814, %v2287
          %v2289 = vlaneseq
          %v2290 = vshrl.u32 %v2289, 7
          %v2291 = vsub.s32 2, %v2290
          %v2292 = vrot.slane %v1814, %v2291
          %v2293 = vlaneseq
          %v2294 = vshrl.u32 %v2293, 7
          %v2295 = vsub.s32 3, %v2294
          %v2296 = vrot.slane %v1814, %v2295
          %v2297 = vlaneseq
          %v2298 = vshrl.u32 %v2297, 7
          %v2299 = vsub.s32 4, %v2298
          %v2300 = vrot.slane %v1814, %v2299
          %v2301 = vlaneseq
          %v2302 = vshrl.u32 %v2301, 7
          %v2303 = vsub.s32 5, %v2302
          %v2304 = vrot.slane %v1814, %v2303
          %v2305 = vlaneseq
          %v2306 = vshrl.u32 %v2305, 7
          %v2307 = vsub.s32 6, %v2306
          %v2308 = vrot.slane %v1814, %v2307
          %v2309 = vlaneseq
          %v2310 = vshrl.u32 %v2309, 7
          %v2311 = vsub.s32 7, %v2310
          %v2312 = vrot.slane %v1814, %v2311
          %v2313 = vlaneseq
          %v2314 = vshrl.u32 %v2313, 7
          %v2315 = vsub.s32 0, %v2314
          %v2316 = vrot.slane %v1815, %v2315
          %v2317 = vlaneseq
          %v2318 = vshrl.u32 %v2317, 7
          %v2319 = vsub.s32 1, %v2318
          %v2320 = vrot.slane %v1815, %v2319
          %v2321 = vlaneseq
          %v2322 = vshrl.u32 %v2321, 7
          %v2323 = vsub.s32 2, %v2322
          %v2324 = vrot.slane %v1815, %v2323
          %v2325 = vlaneseq
          %v2326 = vshrl.u32 %v2325, 7
          %v2327 = vsub.s32 3, %v2326
          %v2328 = vrot.slane %v1815, %v2327
          %v2329 = vlaneseq
          %v2330 = vshrl.u32 %v2329, 7
          %v2331 = vsub.s32 4, %v2330
          %v2332 = vrot.slane %v1815, %v2331
          %v2333 = vlaneseq
          %v2334 = vshrl.u32 %v2333, 7
          %v2335 = vsub.s32 5, %v2334
          %v2336 = vrot.slane %v1815, %v2335
          %v2337 = vlaneseq
          %v2338 = vshrl.u32 %v2337, 7
          %v2339 = vsub.s32 6, %v2338
          %v2340 = vrot.slane %v1815, %v2339
          %v2341 = vlaneseq
          %v2342 = vshrl.u32 %v2341, 7
          %v2343 = vsub.s32 7, %v2342
          %v2344 = vrot.slane %v1815, %v2343
          %v2345 = vlaneseq
          %v2346 = vshrl.u32 %v2345, 7
          %v2347 = vsub.s32 0, %v2346
          %v2348 = vrot.slane %v1816, %v2347
          %v2349 = vlaneseq
          %v2350 = vshrl.u32 %v2349, 7
          %v2351 = vsub.s32 1, %v2350
          %v2352 = vrot.slane %v1816, %v2351
          %v2353 = vlaneseq
          %v2354 = vshrl.u32 %v2353, 7
          %v2355 = vsub.s32 2, %v2354
          %v2356 = vrot.slane %v1816, %v2355
          %v2357 = vlaneseq
          %v2358 = vshrl.u32 %v2357, 7
          %v2359 = vsub.s32 3, %v2358
          %v2360 = vrot.slane %v1816, %v2359
          %v2361 = vlaneseq
          %v2362 = vshrl.u32 %v2361, 7
          %v2363 = vsub.s32 4, %v2362
          %v2364 = vrot.slane %v1816, %v2363
          %v2365 = vlaneseq
          %v2366 = vshrl.u32 %v2365, 7
          %v2367 = vsub.s32 5, %v2366
          %v2368 = vrot.slane %v1816, %v2367
          %v2369 = vlaneseq
          %v2370 = vshrl.u32 %v2369, 7
          %v2371 = vsub.s32 6, %v2370
          %v2372 = vrot.slane %v1816, %v2371
          %v2373 = vlaneseq
          %v2374 = vshrl.u32 %v2373, 7
          %v2375 = vsub.s32 7, %v2374
          %v2376 = vrot.slane %v1816, %v2375
          %v2377 = vlaneseq
          %v2378 = vshrl.u32 %v2377, 7
          %v2379 = vsub.s32 0, %v2378
          %v2380 = vrot.slane %v1817, %v2379
          %v2381 = vlaneseq
          %v2382 = vshrl.u32 %v2381, 7
          %v2383 = vsub.s32 1, %v2382
          %v2384 = vrot.slane %v1817, %v2383
          %v2385 = vlaneseq
          %v2386 = vshrl.u32 %v2385, 7
          %v2387 = vsub.s32 2, %v2386
          %v2388 = vrot.slane %v1817, %v2387
          %v2389 = vlaneseq
          %v2390 = vshrl.u32 %v2389, 7
          %v2391 = vsub.s32 3, %v2390
          %v2392 = vrot.slane %v1817, %v2391
          %v2393 = vlaneseq
          %v2394 = vshrl.u32 %v2393, 7
          %v2395 = vsub.s32 4, %v2394
          %v2396 = vrot.slane %v1817, %v2395
          %v2397 = vlaneseq
          %v2398 = vshrl.u32 %v2397, 7
          %v2399 = vsub.s32 5, %v2398
          %v2400 = vrot.slane %v1817, %v2399
          %v2401 = vlaneseq
          %v2402 = vshrl.u32 %v2401, 7
          %v2403 = vsub.s32 6, %v2402
          %v2404 = vrot.slane %v1817, %v2403
          %v2405 = vlaneseq
          %v2406 = vshrl.u32 %v2405, 7
          %v2407 = vsub.s32 7, %v2406
          %v2408 = vrot.slane %v1817, %v2407
          %v2409 = vlaneseq
          %v2410 = vshrl.u32 %v2409, 7
          %v2411 = vsub.s32 0, %v2410
          %v2412 = vrot.slane %v1818, %v2411
          %v2413 = vlaneseq
          %v2414 = vshrl.u32 %v2413, 7
          %v2415 = vsub.s32 1, %v2414
          %v2416 = vrot.slane %v1818, %v2415
          %v2417 = vlaneseq
          %v2418 = vshrl.u32 %v2417, 7
          %v2419 = vsub.s32 2, %v2418
          %v2420 = vrot.slane %v1818, %v2419
          %v2421 = vlaneseq
          %v2422 = vshrl.u32 %v2421, 7
          %v2423 = vsub.s32 3, %v2422
          %v2424 = vrot.slane %v1818, %v2423
          %v2425 = vlaneseq
          %v2426 = vshrl.u32 %v2425, 7
          %v2427 = vsub.s32 4, %v2426
          %v2428 = vrot.slane %v1818, %v2427
          %v2429 = vlaneseq
          %v2430 = vshrl.u32 %v2429, 7
          %v2431 = vsub.s32 5, %v2430
          %v2432 = vrot.slane %v1818, %v2431
          %v2433 = vlaneseq
          %v2434 = vshrl.u32 %v2433, 7
          %v2435 = vsub.s32 6, %v2434
          %v2436 = vrot.slane %v1818, %v2435
          %v2437 = vlaneseq
          %v2438 = vshrl.u32 %v2437, 7
          %v2439 = vsub.s32 7, %v2438
          %v2440 = vrot.slane %v1818, %v2439
          %v2441 = vlaneseq
          %v2442 = vshrl.u32 %v2441, 7
          %v2443 = vsub.s32 0, %v2442
          %v2444 = vrot.slane %v1819, %v2443
          %v2445 = vlaneseq
          %v2446 = vshrl.u32 %v2445, 7
          %v2447 = vsub.s32 1, %v2446
          %v2448 = vrot.slane %v1819, %v2447
          %v2449 = vlaneseq
          %v2450 = vshrl.u32 %v2449, 7
          %v2451 = vsub.s32 2, %v2450
          %v2452 = vrot.slane %v1819, %v2451
          %v2453 = vlaneseq
          %v2454 = vshrl.u32 %v2453, 7
          %v2455 = vsub.s32 3, %v2454
          %v2456 = vrot.slane %v1819, %v2455
          %v2457 = vlaneseq
          %v2458 = vshrl.u32 %v2457, 7
          %v2459 = vsub.s32 4, %v2458
          %v2460 = vrot.slane %v1819, %v2459
          %v2461 = vlaneseq
          %v2462 = vshrl.u32 %v2461, 7
          %v2463 = vsub.s32 5, %v2462
          %v2464 = vrot.slane %v1819, %v2463
          %v2465 = vlaneseq
          %v2466 = vshrl.u32 %v2465, 7
          %v2467 = vsub.s32 6, %v2466
          %v2468 = vrot.slane %v1819, %v2467
          %v2469 = vlaneseq
          %v2470 = vshrl.u32 %v2469, 7
          %v2471 = vsub.s32 7, %v2470
          %v2472 = vrot.slane %v1819, %v2471
          %v2473 = vlaneseq
          %v2474 = vshrl.u32 %v2473, 7
          %v2475 = vsub.s32 0, %v2474
          %v2476 = vrot.slane %v1820, %v2475
          %v2477 = vlaneseq
          %v2478 = vshrl.u32 %v2477, 7
          %v2479 = vsub.s32 1, %v2478
          %v2480 = vrot.slane %v1820, %v2479
          %v2481 = vlaneseq
          %v2482 = vshrl.u32 %v2481, 7
          %v2483 = vsub.s32 2, %v2482
          %v2484 = vrot.slane %v1820, %v2483
          %v2485 = vlaneseq
          %v2486 = vshrl.u32 %v2485, 7
          %v2487 = vsub.s32 3, %v2486
          %v2488 = vrot.slane %v1820, %v2487
          %v2489 = vlaneseq
          %v2490 = vshrl.u32 %v2489, 7
          %v2491 = vsub.s32 4, %v2490
          %v2492 = vrot.slane %v1820, %v2491
          %v2493 = vlaneseq
          %v2494 = vshrl.u32 %v2493, 7
          %v2495 = vsub.s32 5, %v2494
          %v2496 = vrot.slane %v1820, %v2495
          %v2497 = vlaneseq
          %v2498 = vshrl.u32 %v2497, 7
          %v2499 = vsub.s32 6, %v2498
          %v2500 = vrot.slane %v1820, %v2499
          %v2501 = vlaneseq
          %v2502 = vshrl.u32 %v2501, 7
          %v2503 = vsub.s32 7, %v2502
          %v2504 = vrot.slane %v1820, %v2503
          %v2505 = vlaneseq
          %v2506 = vshrl.u32 %v2505, 7
          %v2507 = vsub.s32 0, %v2506
          %v2508 = vrot.slane %v1821, %v2507
          %v2509 = vlaneseq
          %v2510 = vshrl.u32 %v2509, 7
          %v2511 = vsub.s32 1, %v2510
          %v2512 = vrot.slane %v1821, %v2511
          %v2513 = vlaneseq
          %v2514 = vshrl.u32 %v2513, 7
          %v2515 = vsub.s32 2, %v2514
          %v2516 = vrot.slane %v1821, %v2515
          %v2517 = vlaneseq
          %v2518 = vshrl.u32 %v2517, 7
          %v2519 = vsub.s32 3, %v2518
          %v2520 = vrot.slane %v1821, %v2519
          %v2521 = vlaneseq
          %v2522 = vshrl.u32 %v2521, 7
          %v2523 = vsub.s32 4, %v2522
          %v2524 = vrot.slane %v1821, %v2523
          %v2525 = vlaneseq
          %v2526 = vshrl.u32 %v2525, 7
          %v2527 = vsub.s32 5, %v2526
          %v2528 = vrot.slane %v1821, %v2527
          %v2529 = vlaneseq
          %v2530 = vshrl.u32 %v2529, 7
          %v2531 = vsub.s32 6, %v2530
          %v2532 = vrot.slane %v1821, %v2531
          %v2533 = vlaneseq
          %v2534 = vshrl.u32 %v2533, 7
          %v2535 = vsub.s32 7, %v2534
          %v2536 = vrot.slane %v1821, %v2535
          %v2537 = vlaneseq
          %v2538 = vshrl.u32 %v2537, 7
          %v2539 = vsub.s32 0, %v2538
          %v2540 = vrot.slane %v1822, %v2539
          %v2541 = vlaneseq
          %v2542 = vshrl.u32 %v2541, 7
          %v2543 = vsub.s32 1, %v2542
          %v2544 = vrot.slane %v1822, %v2543
          %v2545 = vlaneseq
          %v2546 = vshrl.u32 %v2545, 7
          %v2547 = vsub.s32 2, %v2546
          %v2548 = vrot.slane %v1822, %v2547
          %v2549 = vlaneseq
          %v2550 = vshrl.u32 %v2549, 7
          %v2551 = vsub.s32 3, %v2550
          %v2552 = vrot.slane %v1822, %v2551
          %v2553 = vlaneseq
          %v2554 = vshrl.u32 %v2553, 7
          %v2555 = vsub.s32 4, %v2554
          %v2556 = vrot.slane %v1822, %v2555
          %v2557 = vlaneseq
          %v2558 = vshrl.u32 %v2557, 7
          %v2559 = vsub.s32 5, %v2558
          %v2560 = vrot.slane %v1822, %v2559
          %v2561 = vlaneseq
          %v2562 = vshrl.u32 %v2561, 7
          %v2563 = vsub.s32 6, %v2562
          %v2564 = vrot.slane %v1822, %v2563
          %v2565 = vlaneseq
          %v2566 = vshrl.u32 %v2565, 7
          %v2567 = vsub.s32 7, %v2566
          %v2568 = vrot.slane %v1822, %v2567
          %v2569 = vlaneseq
          %v2570 = vshrl.u32 %v2569, 7
          %v2571 = vsub.s32 0, %v2570
          %v2572 = vrot.slane %v1823, %v2571
          %v2573 = vlaneseq
          %v2574 = vshrl.u32 %v2573, 7
          %v2575 = vsub.s32 1, %v2574
          %v2576 = vrot.slane %v1823, %v2575
          %v2577 = vlaneseq
          %v2578 = vshrl.u32 %v2577, 7
          %v2579 = vsub.s32 2, %v2578
          %v2580 = vrot.slane %v1823, %v2579
          %v2581 = vlaneseq
          %v2582 = vshrl.u32 %v2581, 7
          %v2583 = vsub.s32 3, %v2582
          %v2584 = vrot.slane %v1823, %v2583
          %v2585 = vlaneseq
          %v2586 = vshrl.u32 %v2585, 7
          %v2587 = vsub.s32 4, %v2586
          %v2588 = vrot.slane %v1823, %v2587
          %v2589 = vlaneseq
          %v2590 = vshrl.u32 %v2589, 7
          %v2591 = vsub.s32 5, %v2590
          %v2592 = vrot.slane %v1823, %v2591
          %v2593 = vlaneseq
          %v2594 = vshrl.u32 %v2593, 7
          %v2595 = vsub.s32 6, %v2594
          %v2596 = vrot.slane %v1823, %v2595
          %v2597 = vlaneseq
          %v2598 = vshrl.u32 %v2597, 7
          %v2599 = vsub.s32 7, %v2598
          %v2600 = vrot.slane %v1823, %v2599
          %v2601 = vlaneseq
          %v2602 = vshrl.u32 %v2601, 7
          %v2603 = vsub.s32 0, %v2602
          %v2604 = vrot.slane %v1824, %v2603
          %v2605 = vlaneseq
          %v2606 = vshrl.u32 %v2605, 7
          %v2607 = vsub.s32 1, %v2606
          %v2608 = vrot.slane %v1824, %v2607
          %v2609 = vlaneseq
          %v2610 = vshrl.u32 %v2609, 7
          %v2611 = vsub.s32 2, %v2610
          %v2612 = vrot.slane %v1824, %v2611
          %v2613 = vlaneseq
          %v2614 = vshrl.u32 %v2613, 7
          %v2615 = vsub.s32 3, %v2614
          %v2616 = vrot.slane %v1824, %v2615
          %v2617 = vlaneseq
          %v2618 = vshrl.u32 %v2617, 7
          %v2619 = vsub.s32 4, %v2618
          %v2620 = vrot.slane %v1824, %v2619
          %v2621 = vlaneseq
          %v2622 = vshrl.u32 %v2621, 7
          %v2623 = vsub.s32 5, %v2622
          %v2624 = vrot.slane %v1824, %v2623
          %v2625 = vlaneseq
          %v2626 = vshrl.u32 %v2625, 7
          %v2627 = vsub.s32 6, %v2626
          %v2628 = vrot.slane %v1824, %v2627
          %v2629 = vlaneseq
          %v2630 = vshrl.u32 %v2629, 7
          %v2631 = vsub.s32 7, %v2630
          %v2632 = vrot.slane %v1824, %v2631
          %v2633 = vlaneseq
          %v2634 = vshrl.u32 %v2633, 7
          %v2635 = vsub.s32 0, %v2634
          %v2636 = vrot.slane %v1825, %v2635
          %v2637 = vlaneseq
          %v2638 = vshrl.u32 %v2637, 7
          %v2639 = vsub.s32 1, %v2638
          %v2640 = vrot.slane %v1825, %v2639
          %v2641 = vlaneseq
          %v2642 = vshrl.u32 %v2641, 7
          %v2643 = vsub.s32 2, %v2642
          %v2644 = vrot.slane %v1825, %v2643
          %v2645 = vlaneseq
          %v2646 = vshrl.u32 %v2645, 7
          %v2647 = vsub.s32 3, %v2646
          %v2648 = vrot.slane %v1825, %v2647
          %v2649 = vlaneseq
          %v2650 = vshrl.u32 %v2649, 7
          %v2651 = vsub.s32 4, %v2650
          %v2652 = vrot.slane %v1825, %v2651
          %v2653 = vlaneseq
          %v2654 = vshrl.u32 %v2653, 7
          %v2655 = vsub.s32 5, %v2654
          %v2656 = vrot.slane %v1825, %v2655
          %v2657 = vlaneseq
          %v2658 = vshrl.u32 %v2657, 7
          %v2659 = vsub.s32 6, %v2658
          %v2660 = vrot.slane %v1825, %v2659
          %v2661 = vlaneseq
          %v2662 = vshrl.u32 %v2661, 7
          %v2663 = vsub.s32 7, %v2662
          %v2664 = vrot.slane %v1825, %v2663
          %v2665 = vlaneseq
          %v2666 = vshrl.u32 %v2665, 7
          %v2667 = vsub.s32 0, %v2666
          %v2668 = vrot.slane %v1826, %v2667
          %v2669 = vlaneseq
          %v2670 = vshrl.u32 %v2669, 7
          %v2671 = vsub.s32 1, %v2670
          %v2672 = vrot.slane %v1826, %v2671
          %v2673 = vlaneseq
          %v2674 = vshrl.u32 %v2673, 7
          %v2675 = vsub.s32 2, %v2674
          %v2676 = vrot.slane %v1826, %v2675
          %v2677 = vlaneseq
          %v2678 = vshrl.u32 %v2677, 7
          %v2679 = vsub.s32 3, %v2678
          %v2680 = vrot.slane %v1826, %v2679
          %v2681 = vlaneseq
          %v2682 = vshrl.u32 %v2681, 7
          %v2683 = vsub.s32 4, %v2682
          %v2684 = vrot.slane %v1826, %v2683
          %v2685 = vlaneseq
          %v2686 = vshrl.u32 %v2685, 7
          %v2687 = vsub.s32 5, %v2686
          %v2688 = vrot.slane %v1826, %v2687
          %v2689 = vlaneseq
          %v2690 = vshrl.u32 %v2689, 7
          %v2691 = vsub.s32 6, %v2690
          %v2692 = vrot.slane %v1826, %v2691
          %v2693 = vlaneseq
          %v2694 = vshrl.u32 %v2693, 7
          %v2695 = vsub.s32 7, %v2694
          %v2696 = vrot.slane %v1826, %v2695
          %v2697 = vlaneseq
          %v2698 = vshrl.u32 %v2697, 7
          %v2699 = vsub.s32 0, %v2698
          %v2700 = vrot.slane %v1827, %v2699
          %v2701 = vlaneseq
          %v2702 = vshrl.u32 %v2701, 7
          %v2703 = vsub.s32 1, %v2702
          %v2704 = vrot.slane %v1827, %v2703
          %v2705 = vlaneseq
          %v2706 = vshrl.u32 %v2705, 7
          %v2707 = vsub.s32 2, %v2706
          %v2708 = vrot.slane %v1827, %v2707
          %v2709 = vlaneseq
          %v2710 = vshrl.u32 %v2709, 7
          %v2711 = vsub.s32 3, %v2710
          %v2712 = vrot.slane %v1827, %v2711
          %v2713 = vlaneseq
          %v2714 = vshrl.u32 %v2713, 7
          %v2715 = vsub.s32 4, %v2714
          %v2716 = vrot.slane %v1827, %v2715
          %v2717 = vlaneseq
          %v2718 = vshrl.u32 %v2717, 7
          %v2719 = vsub.s32 5, %v2718
          %v2720 = vrot.slane %v1827, %v2719
          %v2721 = vlaneseq
          %v2722 = vshrl.u32 %v2721, 7
          %v2723 = vsub.s32 6, %v2722
          %v2724 = vrot.slane %v1827, %v2723
          %v2725 = vlaneseq
          %v2726 = vshrl.u32 %v2725, 7
          %v2727 = vsub.s32 7, %v2726
          %v2728 = vrot.slane %v1827, %v2727
          %v2729 = vlaneseq
          %v2730 = vshrl.u32 %v2729, 7
          %v2731 = vsub.s32 0, %v2730
          %v2732 = vrot.slane %v1828, %v2731
          %v2733 = vlaneseq
          %v2734 = vshrl.u32 %v2733, 7
          %v2735 = vsub.s32 1, %v2734
          %v2736 = vrot.slane %v1828, %v2735
          %v2737 = vlaneseq
          %v2738 = vshrl.u32 %v2737, 7
          %v2739 = vsub.s32 2, %v2738
          %v2740 = vrot.slane %v1828, %v2739
          %v2741 = vlaneseq
          %v2742 = vshrl.u32 %v2741, 7
          %v2743 = vsub.s32 3, %v2742
          %v2744 = vrot.slane %v1828, %v2743
          %v2745 = vlaneseq
          %v2746 = vshrl.u32 %v2745, 7
          %v2747 = vsub.s32 4, %v2746
          %v2748 = vrot.slane %v1828, %v2747
          %v2749 = vlaneseq
          %v2750 = vshrl.u32 %v2749, 7
          %v2751 = vsub.s32 5, %v2750
          %v2752 = vrot.slane %v1828, %v2751
          %v2753 = vlaneseq
          %v2754 = vshrl.u32 %v2753, 7
          %v2755 = vsub.s32 6, %v2754
          %v2756 = vrot.slane %v1828, %v2755
          %v2757 = vlaneseq
          %v2758 = vshrl.u32 %v2757, 7
          %v2759 = vsub.s32 7, %v2758
          %v2760 = vrot.slane %v1828, %v2759
          %v2761 = vlaneseq
          %v2762 = vshrl.u32 %v2761, 7
          %v2763 = vsub.s32 0, %v2762
          %v2764 = vrot.slane %v1829, %v2763
          %v2765 = vlaneseq
          %v2766 = vshrl.u32 %v2765, 7
          %v2767 = vsub.s32 1, %v2766
          %v2768 = vrot.slane %v1829, %v2767
          %v2769 = vlaneseq
          %v2770 = vshrl.u32 %v2769, 7
          %v2771 = vsub.s32 2, %v2770
          %v2772 = vrot.slane %v1829, %v2771
          %v2773 = vlaneseq
          %v2774 = vshrl.u32 %v2773, 7
          %v2775 = vsub.s32 3, %v2774
          %v2776 = vrot.slane %v1829, %v2775
          %v2777 = vlaneseq
          %v2778 = vshrl.u32 %v2777, 7
          %v2779 = vsub.s32 4, %v2778
          %v2780 = vrot.slane %v1829, %v2779
          %v2781 = vlaneseq
          %v2782 = vshrl.u32 %v2781, 7
          %v2783 = vsub.s32 5, %v2782
          %v2784 = vrot.slane %v1829, %v2783
          %v2785 = vlaneseq
          %v2786 = vshrl.u32 %v2785, 7
          %v2787 = vsub.s32 6, %v2786
          %v2788 = vrot.slane %v1829, %v2787
          %v2789 = vlaneseq
          %v2790 = vshrl.u32 %v2789, 7
          %v2791 = vsub.s32 7, %v2790
          %v2792 = vrot.slane %v1829, %v2791
          %v2793 = vlaneseq
          %v2794 = vshrl.u32 %v2793, 7
          %v2795 = vsub.s32 0, %v2794
          %v2796 = vrot.slane %v1830, %v2795
          %v2797 = vlaneseq
          %v2798 = vshrl.u32 %v2797, 7
          %v2799 = vsub.s32 1, %v2798
          %v2800 = vrot.slane %v1830, %v2799
          %v2801 = vlaneseq
          %v2802 = vshrl.u32 %v2801, 7
          %v2803 = vsub.s32 2, %v2802
          %v2804 = vrot.slane %v1830, %v2803
          %v2805 = vlaneseq
          %v2806 = vshrl.u32 %v2805, 7
          %v2807 = vsub.s32 3, %v2806
          %v2808 = vrot.slane %v1830, %v2807
          %v2809 = vlaneseq
          %v2810 = vshrl.u32 %v2809, 7
          %v2811 = vsub.s32 4, %v2810
          %v2812 = vrot.slane %v1830, %v2811
          %v2813 = vlaneseq
          %v2814 = vshrl.u32 %v2813, 7
          %v2815 = vsub.s32 5, %v2814
          %v2816 = vrot.slane %v1830, %v2815
          %v2817 = vlaneseq
          %v2818 = vshrl.u32 %v2817, 7
          %v2819 = vsub.s32 6, %v2818
          %v2820 = vrot.slane %v1830, %v2819
          %v2821 = vlaneseq
          %v2822 = vshrl.u32 %v2821, 7
          %v2823 = vsub.s32 7, %v2822
          %v2824 = vrot.slane %v1830, %v2823
          %v2825 = vlaneseq
          %v2826 = vshrl.u32 %v2825, 7
          %v2827 = vsub.s32 0, %v2826
          %v2828 = vrot.slane %v1831, %v2827
          %v2829 = vlaneseq
          %v2830 = vshrl.u32 %v2829, 7
          %v2831 = vsub.s32 1, %v2830
          %v2832 = vrot.slane %v1831, %v2831
          %v2833 = vlaneseq
          %v2834 = vshrl.u32 %v2833, 7
          %v2835 = vsub.s32 2, %v2834
          %v2836 = vrot.slane %v1831, %v2835
          %v2837 = vlaneseq
          %v2838 = vshrl.u32 %v2837, 7
          %v2839 = vsub.s32 3, %v2838
          %v2840 = vrot.slane %v1831, %v2839
          %v2841 = vlaneseq
          %v2842 = vshrl.u32 %v2841, 7
          %v2843 = vsub.s32 4, %v2842
          %v2844 = vrot.slane %v1831, %v2843
          %v2845 = vlaneseq
          %v2846 = vshrl.u32 %v2845, 7
          %v2847 = vsub.s32 5, %v2846
          %v2848 = vrot.slane %v1831, %v2847
          %v2849 = vlaneseq
          %v2850 = vshrl.u32 %v2849, 7
          %v2851 = vsub.s32 6, %v2850
          %v2852 = vrot.slane %v1831, %v2851
          %v2853 = vlaneseq
          %v2854 = vshrl.u32 %v2853, 7
          %v2855 = vsub.s32 7, %v2854
          %v2856 = vrot.slane %v1831, %v2855
          %v2857 = vlaneseq
          %v2858 = vshrl.u32 %v2857, 7
          %v2859 = vsub.s32 0, %v2858
          %v2860 = vrot.slane %v1832, %v2859
          %v2861 = vlaneseq
          %v2862 = vshrl.u32 %v2861, 7
          %v2863 = vsub.s32 1, %v2862
          %v2864 = vrot.slane %v1832, %v2863
          %v2865 = vlaneseq
          %v2866 = vshrl.u32 %v2865, 7
          %v2867 = vsub.s32 2, %v2866
          %v2868 = vrot.slane %v1832, %v2867
          %v2869 = vlaneseq
          %v2870 = vshrl.u32 %v2869, 7
          %v2871 = vsub.s32 3, %v2870
          %v2872 = vrot.slane %v1832, %v2871
          %v2873 = vlaneseq
          %v2874 = vshrl.u32 %v2873, 7
          %v2875 = vsub.s32 4, %v2874
          %v2876 = vrot.slane %v1832, %v2875
          %v2877 = vlaneseq
          %v2878 = vshrl.u32 %v2877, 7
          %v2879 = vsub.s32 5, %v2878
          %v2880 = vrot.slane %v1832, %v2879
          %v2881 = vlaneseq
          %v2882 = vshrl.u32 %v2881, 7
          %v2883 = vsub.s32 6, %v2882
          %v2884 = vrot.slane %v1832, %v2883
          %v2885 = vlaneseq
          %v2886 = vshrl.u32 %v2885, 7
          %v2887 = vsub.s32 7, %v2886
          %v2888 = vrot.slane %v1832, %v2887
          %v2889 = vcombine.low %v1868, %v1872
          %v2890 = vcombine.low %v1876, %v1880
          %v2891 = vcombine.low %v1884, %v1888
          %v2892 = vcombine.low %v1892, %v1896
          %v2894 = vunpack.c.l.s4 1966171168
          %v2895 = vunpack.c.0.s8 %v2894
          %v2896 = vlaneseq
          %v2897 = vshrl.u32 %v2896, 7
          %v2898 = vsub.s32 %v2895, %v2897
          %v2899 = vrot.slane %v2889, %v2898
          %v2901 = vunpack.c.l.s4 1966171168
          %v2902 = vunpack.c.0.s8 %v2901
          %v2903 = vlaneseq
          %v2904 = vshrl.u32 %v2903, 7
          %v2905 = vsub.s32 %v2902, %v2904
          %v2906 = vrot.slane %v2890, %v2905
          %v2908 = vunpack.c.l.s4 1966171168
          %v2909 = vunpack.c.0.s8 %v2908
          %v2910 = vlaneseq
          %v2911 = vshrl.u32 %v2910, 7
          %v2912 = vsub.s32 %v2909, %v2911
          %v2913 = vrot.slane %v2891, %v2912
          %v2915 = vunpack.c.l.s4 1966171168
          %v2916 = vunpack.c.0.s8 %v2915
          %v2917 = vlaneseq
          %v2918 = vshrl.u32 %v2917, 7
          %v2919 = vsub.s32 %v2916, %v2918
          %v2920 = vrot.slane %v2892, %v2919
          %v2921 = vcombine.low %v2899, %v2906
          %v2922 = vcombine.low %v2913, %v2920
          %v2924 = vunpack.c.l.s4 1966171168
          %v2925 = vunpack.c.0.s8 %v2924
          %v2926 = vlaneseq
          %v2927 = vshrl.u32 %v2926, 7
          %v2928 = vsub.s32 %v2925, %v2927
          %v2929 = vrot.slane %v2921, %v2928
          %v2931 = vunpack.c.l.s4 1966171168
          %v2932 = vunpack.c.0.s8 %v2931
          %v2933 = vlaneseq
          %v2934 = vshrl.u32 %v2933, 7
          %v2935 = vsub.s32 %v2932, %v2934
          %v2936 = vrot.slane %v2922, %v2935
          %v2937 = vcombine.low %v2929, %v2936
          %v2938 = vcombine.low %v1900, %v1904
          %v2939 = vcombine.low %v1908, %v1912
          %v2940 = vcombine.low %v1916, %v1920
          %v2941 = vcombine.low %v1924, %v1928
          %v2943 = vunpack.c.l.s4 1966171168
          %v2944 = vunpack.c.0.s8 %v2943
          %v2945 = vlaneseq
          %v2946 = vshrl.u32 %v2945, 7
          %v2947 = vsub.s32 %v2944, %v2946
          %v2948 = vrot.slane %v2938, %v2947
          %v2950 = vunpack.c.l.s4 1966171168
          %v2951 = vunpack.c.0.s8 %v2950
          %v2952 = vlaneseq
          %v2953 = vshrl.u32 %v2952, 7
          %v2954 = vsub.s32 %v2951, %v2953
          %v2955 = vrot.slane %v2939, %v2954
          %v2957 = vunpack.c.l.s4 1966171168
          %v2958 = vunpack.c.0.s8 %v2957
          %v2959 = vlaneseq
          %v2960 = vshrl.u32 %v2959, 7
          %v2961 = vsub.s32 %v2958, %v2960
          %v2962 = vrot.slane %v2940, %v2961
          %v2964 = vunpack.c.l.s4 1966171168
          %v2965 = vunpack.c.0.s8 %v2964
          %v2966 = vlaneseq
          %v2967 = vshrl.u32 %v2966, 7
          %v2968 = vsub.s32 %v2965, %v2967
          %v2969 = vrot.slane %v2941, %v2968
          %v2970 = vcombine.low %v2948, %v2955
          %v2971 = vcombine.low %v2962, %v2969
          %v2973 = vunpack.c.l.s4 1966171168
          %v2974 = vunpack.c.0.s8 %v2973
          %v2975 = vlaneseq
          %v2976 = vshrl.u32 %v2975, 7
          %v2977 = vsub.s32 %v2974, %v2976
          %v2978 = vrot.slane %v2970, %v2977
          %v2980 = vunpack.c.l.s4 1966171168
          %v2981 = vunpack.c.0.s8 %v2980
          %v2982 = vlaneseq
          %v2983 = vshrl.u32 %v2982, 7
          %v2984 = vsub.s32 %v2981, %v2983
          %v2985 = vrot.slane %v2971, %v2984
          %v2986 = vcombine.low %v2978, %v2985
          %v2987 = vcombine.low %v1932, %v1936
          %v2988 = vcombine.low %v1940, %v1944
          %v2989 = vcombine.low %v1948, %v1952
          %v2990 = vcombine.low %v1956, %v1960
          %v2992 = vunpack.c.l.s4 1966171168
          %v2993 = vunpack.c.0.s8 %v2992
          %v2994 = vlaneseq
          %v2995 = vshrl.u32 %v2994, 7
          %v2996 = vsub.s32 %v2993, %v2995
          %v2997 = vrot.slane %v2987, %v2996
          %v2999 = vunpack.c.l.s4 1966171168
          %v3000 = vunpack.c.0.s8 %v2999
          %v3001 = vlaneseq
          %v3002 = vshrl.u32 %v3001, 7
          %v3003 = vsub.s32 %v3000, %v3002
          %v3004 = vrot.slane %v2988, %v3003
          %v3006 = vunpack.c.l.s4 1966171168
          %v3007 = vunpack.c.0.s8 %v3006
          %v3008 = vlaneseq
          %v3009 = vshrl.u32 %v3008, 7
          %v3010 = vsub.s32 %v3007, %v3009
          %v3011 = vrot.slane %v2989, %v3010
          %v3013 = vunpack.c.l.s4 1966171168
          %v3014 = vunpack.c.0.s8 %v3013
          %v3015 = vlaneseq
          %v3016 = vshrl.u32 %v3015, 7
          %v3017 = vsub.s32 %v3014, %v3016
          %v3018 = vrot.slane %v2990, %v3017
          %v3019 = vcombine.low %v2997, %v3004
          %v3020 = vcombine.low %v3011, %v3018
          %v3022 = vunpack.c.l.s4 1966171168
          %v3023 = vunpack.c.0.s8 %v3022
          %v3024 = vlaneseq
          %v3025 = vshrl.u32 %v3024, 7
          %v3026 = vsub.s32 %v3023, %v3025
          %v3027 = vrot.slane %v3019, %v3026
          %v3029 = vunpack.c.l.s4 1966171168
          %v3030 = vunpack.c.0.s8 %v3029
          %v3031 = vlaneseq
          %v3032 = vshrl.u32 %v3031, 7
          %v3033 = vsub.s32 %v3030, %v3032
          %v3034 = vrot.slane %v3020, %v3033
          %v3035 = vcombine.low %v3027, %v3034
          %v3036 = vcombine.low %v1964, %v1968
          %v3037 = vcombine.low %v1972, %v1976
          %v3038 = vcombine.low %v1980, %v1984
          %v3039 = vcombine.low %v1988, %v1992
          %v3041 = vunpack.c.l.s4 1966171168
          %v3042 = vunpack.c.0.s8 %v3041
          %v3043 = vlaneseq
          %v3044 = vshrl.u32 %v3043, 7
          %v3045 = vsub.s32 %v3042, %v3044
          %v3046 = vrot.slane %v3036, %v3045
          %v3048 = vunpack.c.l.s4 1966171168
          %v3049 = vunpack.c.0.s8 %v3048
          %v3050 = vlaneseq
          %v3051 = vshrl.u32 %v3050, 7
          %v3052 = vsub.s32 %v3049, %v3051
          %v3053 = vrot.slane %v3037, %v3052
          %v3055 = vunpack.c.l.s4 1966171168
          %v3056 = vunpack.c.0.s8 %v3055
          %v3057 = vlaneseq
          %v3058 = vshrl.u32 %v3057, 7
          %v3059 = vsub.s32 %v3056, %v3058
          %v3060 = vrot.slane %v3038, %v3059
          %v3062 = vunpack.c.l.s4 1966171168
          %v3063 = vunpack.c.0.s8 %v3062
          %v3064 = vlaneseq
          %v3065 = vshrl.u32 %v3064, 7
          %v3066 = vsub.s32 %v3063, %v3065
          %v3067 = vrot.slane %v3039, %v3066
          %v3068 = vcombine.low %v3046, %v3053
          %v3069 = vcombine.low %v3060, %v3067
          %v3071 = vunpack.c.l.s4 1966171168
          %v3072 = vunpack.c.0.s8 %v3071
          %v3073 = vlaneseq
          %v3074 = vshrl.u32 %v3073, 7
          %v3075 = vsub.s32 %v3072, %v3074
          %v3076 = vrot.slane %v3068, %v3075
          %v3078 = vunpack.c.l.s4 1966171168
          %v3079 = vunpack.c.0.s8 %v3078
          %v3080 = vlaneseq
          %v3081 = vshrl.u32 %v3080, 7
          %v3082 = vsub.s32 %v3079, %v3081
          %v3083 = vrot.slane %v3069, %v3082
          %v3084 = vcombine.low %v3076, %v3083
          %v3085 = vcombine.low %v1996, %v2000
          %v3086 = vcombine.low %v2004, %v2008
          %v3087 = vcombine.low %v2012, %v2016
          %v3088 = vcombine.low %v2020, %v2024
          %v3090 = vunpack.c.l.s4 1966171168
          %v3091 = vunpack.c.0.s8 %v3090
          %v3092 = vlaneseq
          %v3093 = vshrl.u32 %v3092, 7
          %v3094 = vsub.s32 %v3091, %v3093
          %v3095 = vrot.slane %v3085, %v3094
          %v3097 = vunpack.c.l.s4 1966171168
          %v3098 = vunpack.c.0.s8 %v3097
          %v3099 = vlaneseq
          %v3100 = vshrl.u32 %v3099, 7
          %v3101 = vsub.s32 %v3098, %v3100
          %v3102 = vrot.slane %v3086, %v3101
          %v3104 = vunpack.c.l.s4 1966171168
          %v3105 = vunpack.c.0.s8 %v3104
          %v3106 = vlaneseq
          %v3107 = vshrl.u32 %v3106, 7
          %v3108 = vsub.s32 %v3105, %v3107
          %v3109 = vrot.slane %v3087, %v3108
          %v3111 = vunpack.c.l.s4 1966171168
          %v3112 = vunpack.c.0.s8 %v3111
          %v3113 = vlaneseq
          %v3114 = vshrl.u32 %v3113, 7
          %v3115 = vsub.s32 %v3112, %v3114
          %v3116 = vrot.slane %v3088, %v3115
          %v3117 = vcombine.low %v3095, %v3102
          %v3118 = vcombine.low %v3109, %v3116
          %v3120 = vunpack.c.l.s4 1966171168
          %v3121 = vunpack.c.0.s8 %v3120
          %v3122 = vlaneseq
          %v3123 = vshrl.u32 %v3122, 7
          %v3124 = vsub.s32 %v3121, %v3123
          %v3125 = vrot.slane %v3117, %v3124
          %v3127 = vunpack.c.l.s4 1966171168
          %v3128 = vunpack.c.0.s8 %v3127
          %v3129 = vlaneseq
          %v3130 = vshrl.u32 %v3129, 7
          %v3131 = vsub.s32 %v3128, %v3130
          %v3132 = vrot.slane %v3118, %v3131
          %v3133 = vcombine.low %v3125, %v3132
          %v3134 = vcombine.low %v2028, %v2032
          %v3135 = vcombine.low %v2036, %v2040
          %v3136 = vcombine.low %v2044, %v2048
          %v3137 = vcombine.low %v2052, %v2056
          %v3139 = vunpack.c.l.s4 1966171168
          %v3140 = vunpack.c.0.s8 %v3139
          %v3141 = vlaneseq
          %v3142 = vshrl.u32 %v3141, 7
          %v3143 = vsub.s32 %v3140, %v3142
          %v3144 = vrot.slane %v3134, %v3143
          %v3146 = vunpack.c.l.s4 1966171168
          %v3147 = vunpack.c.0.s8 %v3146
          %v3148 = vlaneseq
          %v3149 = vshrl.u32 %v3148, 7
          %v3150 = vsub.s32 %v3147, %v3149
          %v3151 = vrot.slane %v3135, %v3150
          %v3153 = vunpack.c.l.s4 1966171168
          %v3154 = vunpack.c.0.s8 %v3153
          %v3155 = vlaneseq
          %v3156 = vshrl.u32 %v3155, 7
          %v3157 = vsub.s32 %v3154, %v3156
          %v3158 = vrot.slane %v3136, %v3157
          %v3160 = vunpack.c.l.s4 1966171168
          %v3161 = vunpack.c.0.s8 %v3160
          %v3162 = vlaneseq
          %v3163 = vshrl.u32 %v3162, 7
          %v3164 = vsub.s32 %v3161, %v3163
          %v3165 = vrot.slane %v3137, %v3164
          %v3166 = vcombine.low %v3144, %v3151
          %v3167 = vcombine.low %v3158, %v3165
          %v3169 = vunpack.c.l.s4 1966171168
          %v3170 = vunpack.c.0.s8 %v3169
          %v3171 = vlaneseq
          %v3172 = vshrl.u32 %v3171, 7
          %v3173 = vsub.s32 %v3170, %v3172
          %v3174 = vrot.slane %v3166, %v3173
          %v3176 = vunpack.c.l.s4 1966171168
          %v3177 = vunpack.c.0.s8 %v3176
          %v3178 = vlaneseq
          %v3179 = vshrl.u32 %v3178, 7
          %v3180 = vsub.s32 %v3177, %v3179
          %v3181 = vrot.slane %v3167, %v3180
          %v3182 = vcombine.low %v3174, %v3181
          %v3183 = vcombine.low %v2060, %v2064
          %v3184 = vcombine.low %v2068, %v2072
          %v3185 = vcombine.low %v2076, %v2080
          %v3186 = vcombine.low %v2084, %v2088
          %v3188 = vunpack.c.l.s4 1966171168
          %v3189 = vunpack.c.0.s8 %v3188
          %v3190 = vlaneseq
          %v3191 = vshrl.u32 %v3190, 7
          %v3192 = vsub.s32 %v3189, %v3191
          %v3193 = vrot.slane %v3183, %v3192
          %v3195 = vunpack.c.l.s4 1966171168
          %v3196 = vunpack.c.0.s8 %v3195
          %v3197 = vlaneseq
          %v3198 = vshrl.u32 %v3197, 7
          %v3199 = vsub.s32 %v3196, %v3198
          %v3200 = vrot.slane %v3184, %v3199
          %v3202 = vunpack.c.l.s4 1966171168
          %v3203 = vunpack.c.0.s8 %v3202
          %v3204 = vlaneseq
          %v3205 = vshrl.u32 %v3204, 7
          %v3206 = vsub.s32 %v3203, %v3205
          %v3207 = vrot.slane %v3185, %v3206
          %v3209 = vunpack.c.l.s4 1966171168
          %v3210 = vunpack.c.0.s8 %v3209
          %v3211 = vlaneseq
          %v3212 = vshrl.u32 %v3211, 7
          %v3213 = vsub.s32 %v3210, %v3212
          %v3214 = vrot.slane %v3186, %v3213
          %v3215 = vcombine.low %v3193, %v3200
          %v3216 = vcombine.low %v3207, %v3214
          %v3218 = vunpack.c.l.s4 1966171168
          %v3219 = vunpack.c.0.s8 %v3218
          %v3220 = vlaneseq
          %v3221 = vshrl.u32 %v3220, 7
          %v3222 = vsub.s32 %v3219, %v3221
          %v3223 = vrot.slane %v3215, %v3222
          %v3225 = vunpack.c.l.s4 1966171168
          %v3226 = vunpack.c.0.s8 %v3225
          %v3227 = vlaneseq
          %v3228 = vshrl.u32 %v3227, 7
          %v3229 = vsub.s32 %v3226, %v3228
          %v3230 = vrot.slane %v3216, %v3229
          %v3231 = vcombine.low %v3223, %v3230
          %v3232 = vcombine.low %v2092, %v2096
          %v3233 = vcombine.low %v2100, %v2104
          %v3234 = vcombine.low %v2108, %v2112
          %v3235 = vcombine.low %v2116, %v2120
          %v3237 = vunpack.c.l.s4 1966171168
          %v3238 = vunpack.c.0.s8 %v3237
          %v3239 = vlaneseq
          %v3240 = vshrl.u32 %v3239, 7
          %v3241 = vsub.s32 %v3238, %v3240
          %v3242 = vrot.slane %v3232, %v3241
          %v3244 = vunpack.c.l.s4 1966171168
          %v3245 = vunpack.c.0.s8 %v3244
          %v3246 = vlaneseq
          %v3247 = vshrl.u32 %v3246, 7
          %v3248 = vsub.s32 %v3245, %v3247
          %v3249 = vrot.slane %v3233, %v3248
          %v3251 = vunpack.c.l.s4 1966171168
          %v3252 = vunpack.c.0.s8 %v3251
          %v3253 = vlaneseq
          %v3254 = vshrl.u32 %v3253, 7
          %v3255 = vsub.s32 %v3252, %v3254
          %v3256 = vrot.slane %v3234, %v3255
          %v3258 = vunpack.c.l.s4 1966171168
          %v3259 = vunpack.c.0.s8 %v3258
          %v3260 = vlaneseq
          %v3261 = vshrl.u32 %v3260, 7
          %v3262 = vsub.s32 %v3259, %v3261
          %v3263 = vrot.slane %v3235, %v3262
          %v3264 = vcombine.low %v3242, %v3249
          %v3265 = vcombine.low %v3256, %v3263
          %v3267 = vunpack.c.l.s4 1966171168
          %v3268 = vunpack.c.0.s8 %v3267
          %v3269 = vlaneseq
          %v3270 = vshrl.u32 %v3269, 7
          %v3271 = vsub.s32 %v3268, %v3270
          %v3272 = vrot.slane %v3264, %v3271
          %v3274 = vunpack.c.l.s4 1966171168
          %v3275 = vunpack.c.0.s8 %v3274
          %v3276 = vlaneseq
          %v3277 = vshrl.u32 %v3276, 7
          %v3278 = vsub.s32 %v3275, %v3277
          %v3279 = vrot.slane %v3265, %v3278
          %v3280 = vcombine.low %v3272, %v3279
          %v3281 = vcombine.low %v2124, %v2128
          %v3282 = vcombine.low %v2132, %v2136
          %v3283 = vcombine.low %v2140, %v2144
          %v3284 = vcombine.low %v2148, %v2152
          %v3286 = vunpack.c.l.s4 1966171168
          %v3287 = vunpack.c.0.s8 %v3286
          %v3288 = vlaneseq
          %v3289 = vshrl.u32 %v3288, 7
          %v3290 = vsub.s32 %v3287, %v3289
          %v3291 = vrot.slane %v3281, %v3290
          %v3293 = vunpack.c.l.s4 1966171168
          %v3294 = vunpack.c.0.s8 %v3293
          %v3295 = vlaneseq
          %v3296 = vshrl.u32 %v3295, 7
          %v3297 = vsub.s32 %v3294, %v3296
          %v3298 = vrot.slane %v3282, %v3297
          %v3300 = vunpack.c.l.s4 1966171168
          %v3301 = vunpack.c.0.s8 %v3300
          %v3302 = vlaneseq
          %v3303 = vshrl.u32 %v3302, 7
          %v3304 = vsub.s32 %v3301, %v3303
          %v3305 = vrot.slane %v3283, %v3304
          %v3307 = vunpack.c.l.s4 1966171168
          %v3308 = vunpack.c.0.s8 %v3307
          %v3309 = vlaneseq
          %v3310 = vshrl.u32 %v3309, 7
          %v3311 = vsub.s32 %v3308, %v3310
          %v3312 = vrot.slane %v3284, %v3311
          %v3313 = vcombine.low %v3291, %v3298
          %v3314 = vcombine.low %v3305, %v3312
          %v3316 = vunpack.c.l.s4 1966171168
          %v3317 = vunpack.c.0.s8 %v3316
          %v3318 = vlaneseq
          %v3319 = vshrl.u32 %v3318, 7
          %v3320 = vsub.s32 %v3317, %v3319
          %v3321 = vrot.slane %v3313, %v3320
          %v3323 = vunpack.c.l.s4 1966171168
          %v3324 = vunpack.c.0.s8 %v3323
          %v3325 = vlaneseq
          %v3326 = vshrl.u32 %v3325, 7
          %v3327 = vsub.s32 %v3324, %v3326
          %v3328 = vrot.slane %v3314, %v3327
          %v3329 = vcombine.low %v3321, %v3328
          %v3330 = vcombine.low %v2156, %v2160
          %v3331 = vcombine.low %v2164, %v2168
          %v3332 = vcombine.low %v2172, %v2176
          %v3333 = vcombine.low %v2180, %v2184
          %v3335 = vunpack.c.l.s4 1966171168
          %v3336 = vunpack.c.0.s8 %v3335
          %v3337 = vlaneseq
          %v3338 = vshrl.u32 %v3337, 7
          %v3339 = vsub.s32 %v3336, %v3338
          %v3340 = vrot.slane %v3330, %v3339
          %v3342 = vunpack.c.l.s4 1966171168
          %v3343 = vunpack.c.0.s8 %v3342
          %v3344 = vlaneseq
          %v3345 = vshrl.u32 %v3344, 7
          %v3346 = vsub.s32 %v3343, %v3345
          %v3347 = vrot.slane %v3331, %v3346
          %v3349 = vunpack.c.l.s4 1966171168
          %v3350 = vunpack.c.0.s8 %v3349
          %v3351 = vlaneseq
          %v3352 = vshrl.u32 %v3351, 7
          %v3353 = vsub.s32 %v3350, %v3352
          %v3354 = vrot.slane %v3332, %v3353
          %v3356 = vunpack.c.l.s4 1966171168
          %v3357 = vunpack.c.0.s8 %v3356
          %v3358 = vlaneseq
          %v3359 = vshrl.u32 %v3358, 7
          %v3360 = vsub.s32 %v3357, %v3359
          %v3361 = vrot.slane %v3333, %v3360
          %v3362 = vcombine.low %v3340, %v3347
          %v3363 = vcombine.low %v3354, %v3361
          %v3365 = vunpack.c.l.s4 1966171168
          %v3366 = vunpack.c.0.s8 %v3365
          %v3367 = vlaneseq
          %v3368 = vshrl.u32 %v3367, 7
          %v3369 = vsub.s32 %v3366, %v3368
          %v3370 = vrot.slane %v3362, %v3369
          %v3372 = vunpack.c.l.s4 1966171168
          %v3373 = vunpack.c.0.s8 %v3372
          %v3374 = vlaneseq
          %v3375 = vshrl.u32 %v3374, 7
          %v3376 = vsub.s32 %v3373, %v3375
          %v3377 = vrot.slane %v3363, %v3376
          %v3378 = vcombine.low %v3370, %v3377
          %v3379 = vcombine.low %v2188, %v2192
          %v3380 = vcombine.low %v2196, %v2200
          %v3381 = vcombine.low %v2204, %v2208
          %v3382 = vcombine.low %v2212, %v2216
          %v3384 = vunpack.c.l.s4 1966171168
          %v3385 = vunpack.c.0.s8 %v3384
          %v3386 = vlaneseq
          %v3387 = vshrl.u32 %v3386, 7
          %v3388 = vsub.s32 %v3385, %v3387
          %v3389 = vrot.slane %v3379, %v3388
          %v3391 = vunpack.c.l.s4 1966171168
          %v3392 = vunpack.c.0.s8 %v3391
          %v3393 = vlaneseq
          %v3394 = vshrl.u32 %v3393, 7
          %v3395 = vsub.s32 %v3392, %v3394
          %v3396 = vrot.slane %v3380, %v3395
          %v3398 = vunpack.c.l.s4 1966171168
          %v3399 = vunpack.c.0.s8 %v3398
          %v3400 = vlaneseq
          %v3401 = vshrl.u32 %v3400, 7
          %v3402 = vsub.s32 %v3399, %v3401
          %v3403 = vrot.slane %v3381, %v3402
          %v3405 = vunpack.c.l.s4 1966171168
          %v3406 = vunpack.c.0.s8 %v3405
          %v3407 = vlaneseq
          %v3408 = vshrl.u32 %v3407, 7
          %v3409 = vsub.s32 %v3406, %v3408
          %v3410 = vrot.slane %v3382, %v3409
          %v3411 = vcombine.low %v3389, %v3396
          %v3412 = vcombine.low %v3403, %v3410
          %v3414 = vunpack.c.l.s4 1966171168
          %v3415 = vunpack.c.0.s8 %v3414
          %v3416 = vlaneseq
          %v3417 = vshrl.u32 %v3416, 7
          %v3418 = vsub.s32 %v3415, %v3417
          %v3419 = vrot.slane %v3411, %v3418
          %v3421 = vunpack.c.l.s4 1966171168
          %v3422 = vunpack.c.0.s8 %v3421
          %v3423 = vlaneseq
          %v3424 = vshrl.u32 %v3423, 7
          %v3425 = vsub.s32 %v3422, %v3424
          %v3426 = vrot.slane %v3412, %v3425
          %v3427 = vcombine.low %v3419, %v3426
          %v3428 = vcombine.low %v2220, %v2224
          %v3429 = vcombine.low %v2228, %v2232
          %v3430 = vcombine.low %v2236, %v2240
          %v3431 = vcombine.low %v2244, %v2248
          %v3433 = vunpack.c.l.s4 1966171168
          %v3434 = vunpack.c.0.s8 %v3433
          %v3435 = vlaneseq
          %v3436 = vshrl.u32 %v3435, 7
          %v3437 = vsub.s32 %v3434, %v3436
          %v3438 = vrot.slane %v3428, %v3437
          %v3440 = vunpack.c.l.s4 1966171168
          %v3441 = vunpack.c.0.s8 %v3440
          %v3442 = vlaneseq
          %v3443 = vshrl.u32 %v3442, 7
          %v3444 = vsub.s32 %v3441, %v3443
          %v3445 = vrot.slane %v3429, %v3444
          %v3447 = vunpack.c.l.s4 1966171168
          %v3448 = vunpack.c.0.s8 %v3447
          %v3449 = vlaneseq
          %v3450 = vshrl.u32 %v3449, 7
          %v3451 = vsub.s32 %v3448, %v3450
          %v3452 = vrot.slane %v3430, %v3451
          %v3454 = vunpack.c.l.s4 1966171168
          %v3455 = vunpack.c.0.s8 %v3454
          %v3456 = vlaneseq
          %v3457 = vshrl.u32 %v3456, 7
          %v3458 = vsub.s32 %v3455, %v3457
          %v3459 = vrot.slane %v3431, %v3458
          %v3460 = vcombine.low %v3438, %v3445
          %v3461 = vcombine.low %v3452, %v3459
          %v3463 = vunpack.c.l.s4 1966171168
          %v3464 = vunpack.c.0.s8 %v3463
          %v3465 = vlaneseq
          %v3466 = vshrl.u32 %v3465, 7
          %v3467 = vsub.s32 %v3464, %v3466
          %v3468 = vrot.slane %v3460, %v3467
          %v3470 = vunpack.c.l.s4 1966171168
          %v3471 = vunpack.c.0.s8 %v3470
          %v3472 = vlaneseq
          %v3473 = vshrl.u32 %v3472, 7
          %v3474 = vsub.s32 %v3471, %v3473
          %v3475 = vrot.slane %v3461, %v3474
          %v3476 = vcombine.low %v3468, %v3475
          %v3477 = vcombine.low %v2252, %v2256
          %v3478 = vcombine.low %v2260, %v2264
          %v3479 = vcombine.low %v2268, %v2272
          %v3480 = vcombine.low %v2276, %v2280
          %v3482 = vunpack.c.l.s4 1966171168
          %v3483 = vunpack.c.0.s8 %v3482
          %v3484 = vlaneseq
          %v3485 = vshrl.u32 %v3484, 7
          %v3486 = vsub.s32 %v3483, %v3485
          %v3487 = vrot.slane %v3477, %v3486
          %v3489 = vunpack.c.l.s4 1966171168
          %v3490 = vunpack.c.0.s8 %v3489
          %v3491 = vlaneseq
          %v3492 = vshrl.u32 %v3491, 7
          %v3493 = vsub.s32 %v3490, %v3492
          %v3494 = vrot.slane %v3478, %v3493
          %v3496 = vunpack.c.l.s4 1966171168
          %v3497 = vunpack.c.0.s8 %v3496
          %v3498 = vlaneseq
          %v3499 = vshrl.u32 %v3498, 7
          %v3500 = vsub.s32 %v3497, %v3499
          %v3501 = vrot.slane %v3479, %v3500
          %v3503 = vunpack.c.l.s4 1966171168
          %v3504 = vunpack.c.0.s8 %v3503
          %v3505 = vlaneseq
          %v3506 = vshrl.u32 %v3505, 7
          %v3507 = vsub.s32 %v3504, %v3506
          %v3508 = vrot.slane %v3480, %v3507
          %v3509 = vcombine.low %v3487, %v3494
          %v3510 = vcombine.low %v3501, %v3508
          %v3512 = vunpack.c.l.s4 1966171168
          %v3513 = vunpack.c.0.s8 %v3512
          %v3514 = vlaneseq
          %v3515 = vshrl.u32 %v3514, 7
          %v3516 = vsub.s32 %v3513, %v3515
          %v3517 = vrot.slane %v3509, %v3516
          %v3519 = vunpack.c.l.s4 1966171168
          %v3520 = vunpack.c.0.s8 %v3519
          %v3521 = vlaneseq
          %v3522 = vshrl.u32 %v3521, 7
          %v3523 = vsub.s32 %v3520, %v3522
          %v3524 = vrot.slane %v3510, %v3523
          %v3525 = vcombine.low %v3517, %v3524
          %v3526 = vcombine.low %v2284, %v2288
          %v3527 = vcombine.low %v2292, %v2296
          %v3528 = vcombine.low %v2300, %v2304
          %v3529 = vcombine.low %v2308, %v2312
          %v3531 = vunpack.c.l.s4 1966171168
          %v3532 = vunpack.c.0.s8 %v3531
          %v3533 = vlaneseq
          %v3534 = vshrl.u32 %v3533, 7
          %v3535 = vsub.s32 %v3532, %v3534
          %v3536 = vrot.slane %v3526, %v3535
          %v3538 = vunpack.c.l.s4 1966171168
          %v3539 = vunpack.c.0.s8 %v3538
          %v3540 = vlaneseq
          %v3541 = vshrl.u32 %v3540, 7
          %v3542 = vsub.s32 %v3539, %v3541
          %v3543 = vrot.slane %v3527, %v3542
          %v3545 = vunpack.c.l.s4 1966171168
          %v3546 = vunpack.c.0.s8 %v3545
          %v3547 = vlaneseq
          %v3548 = vshrl.u32 %v3547, 7
          %v3549 = vsub.s32 %v3546, %v3548
          %v3550 = vrot.slane %v3528, %v3549
          %v3552 = vunpack.c.l.s4 1966171168
          %v3553 = vunpack.c.0.s8 %v3552
          %v3554 = vlaneseq
          %v3555 = vshrl.u32 %v3554, 7
          %v3556 = vsub.s32 %v3553, %v3555
          %v3557 = vrot.slane %v3529, %v3556
          %v3558 = vcombine.low %v3536, %v3543
          %v3559 = vcombine.low %v3550, %v3557
          %v3561 = vunpack.c.l.s4 1966171168
          %v3562 = vunpack.c.0.s8 %v3561
          %v3563 = vlaneseq
          %v3564 = vshrl.u32 %v3563, 7
          %v3565 = vsub.s32 %v3562, %v3564
          %v3566 = vrot.slane %v3558, %v3565
          %v3568 = vunpack.c.l.s4 1966171168
          %v3569 = vunpack.c.0.s8 %v3568
          %v3570 = vlaneseq
          %v3571 = vshrl.u32 %v3570, 7
          %v3572 = vsub.s32 %v3569, %v3571
          %v3573 = vrot.slane %v3559, %v3572
          %v3574 = vcombine.low %v3566, %v3573
          %v3575 = vcombine.low %v2316, %v2320
          %v3576 = vcombine.low %v2324, %v2328
          %v3577 = vcombine.low %v2332, %v2336
          %v3578 = vcombine.low %v2340, %v2344
          %v3580 = vunpack.c.l.s4 1966171168
          %v3581 = vunpack.c.0.s8 %v3580
          %v3582 = vlaneseq
          %v3583 = vshrl.u32 %v3582, 7
          %v3584 = vsub.s32 %v3581, %v3583
          %v3585 = vrot.slane %v3575, %v3584
          %v3587 = vunpack.c.l.s4 1966171168
          %v3588 = vunpack.c.0.s8 %v3587
          %v3589 = vlaneseq
          %v3590 = vshrl.u32 %v3589, 7
          %v3591 = vsub.s32 %v3588, %v3590
          %v3592 = vrot.slane %v3576, %v3591
          %v3594 = vunpack.c.l.s4 1966171168
          %v3595 = vunpack.c.0.s8 %v3594
          %v3596 = vlaneseq
          %v3597 = vshrl.u32 %v3596, 7
          %v3598 = vsub.s32 %v3595, %v3597
          %v3599 = vrot.slane %v3577, %v3598
          %v3601 = vunpack.c.l.s4 1966171168
          %v3602 = vunpack.c.0.s8 %v3601
          %v3603 = vlaneseq
          %v3604 = vshrl.u32 %v3603, 7
          %v3605 = vsub.s32 %v3602, %v3604
          %v3606 = vrot.slane %v3578, %v3605
          %v3607 = vcombine.low %v3585, %v3592
          %v3608 = vcombine.low %v3599, %v3606
          %v3610 = vunpack.c.l.s4 1966171168
          %v3611 = vunpack.c.0.s8 %v3610
          %v3612 = vlaneseq
          %v3613 = vshrl.u32 %v3612, 7
          %v3614 = vsub.s32 %v3611, %v3613
          %v3615 = vrot.slane %v3607, %v3614
          %v3617 = vunpack.c.l.s4 1966171168
          %v3618 = vunpack.c.0.s8 %v3617
          %v3619 = vlaneseq
          %v3620 = vshrl.u32 %v3619, 7
          %v3621 = vsub.s32 %v3618, %v3620
          %v3622 = vrot.slane %v3608, %v3621
          %v3623 = vcombine.low %v3615, %v3622
          %v3624 = vcombine.low %v2348, %v2352
          %v3625 = vcombine.low %v2356, %v2360
          %v3626 = vcombine.low %v2364, %v2368
          %v3627 = vcombine.low %v2372, %v2376
          %v3629 = vunpack.c.l.s4 1966171168
          %v3630 = vunpack.c.0.s8 %v3629
          %v3631 = vlaneseq
          %v3632 = vshrl.u32 %v3631, 7
          %v3633 = vsub.s32 %v3630, %v3632
          %v3634 = vrot.slane %v3624, %v3633
          %v3636 = vunpack.c.l.s4 1966171168
          %v3637 = vunpack.c.0.s8 %v3636
          %v3638 = vlaneseq
          %v3639 = vshrl.u32 %v3638, 7
          %v3640 = vsub.s32 %v3637, %v3639
          %v3641 = vrot.slane %v3625, %v3640
          %v3643 = vunpack.c.l.s4 1966171168
          %v3644 = vunpack.c.0.s8 %v3643
          %v3645 = vlaneseq
          %v3646 = vshrl.u32 %v3645, 7
          %v3647 = vsub.s32 %v3644, %v3646
          %v3648 = vrot.slane %v3626, %v3647
          %v3650 = vunpack.c.l.s4 1966171168
          %v3651 = vunpack.c.0.s8 %v3650
          %v3652 = vlaneseq
          %v3653 = vshrl.u32 %v3652, 7
          %v3654 = vsub.s32 %v3651, %v3653
          %v3655 = vrot.slane %v3627, %v3654
          %v3656 = vcombine.low %v3634, %v3641
          %v3657 = vcombine.low %v3648, %v3655
          %v3659 = vunpack.c.l.s4 1966171168
          %v3660 = vunpack.c.0.s8 %v3659
          %v3661 = vlaneseq
          %v3662 = vshrl.u32 %v3661, 7
          %v3663 = vsub.s32 %v3660, %v3662
          %v3664 = vrot.slane %v3656, %v3663
          %v3666 = vunpack.c.l.s4 1966171168
          %v3667 = vunpack.c.0.s8 %v3666
          %v3668 = vlaneseq
          %v3669 = vshrl.u32 %v3668, 7
          %v3670 = vsub.s32 %v3667, %v3669
          %v3671 = vrot.slane %v3657, %v3670
          %v3672 = vcombine.low %v3664, %v3671
          %v3673 = vcombine.low %v2380, %v2384
          %v3674 = vcombine.low %v2388, %v2392
          %v3675 = vcombine.low %v2396, %v2400
          %v3676 = vcombine.low %v2404, %v2408
          %v3678 = vunpack.c.l.s4 1966171168
          %v3679 = vunpack.c.0.s8 %v3678
          %v3680 = vlaneseq
          %v3681 = vshrl.u32 %v3680, 7
          %v3682 = vsub.s32 %v3679, %v3681
          %v3683 = vrot.slane %v3673, %v3682
          %v3685 = vunpack.c.l.s4 1966171168
          %v3686 = vunpack.c.0.s8 %v3685
          %v3687 = vlaneseq
          %v3688 = vshrl.u32 %v3687, 7
          %v3689 = vsub.s32 %v3686, %v3688
          %v3690 = vrot.slane %v3674, %v3689
          %v3692 = vunpack.c.l.s4 1966171168
          %v3693 = vunpack.c.0.s8 %v3692
          %v3694 = vlaneseq
          %v3695 = vshrl.u32 %v3694, 7
          %v3696 = vsub.s32 %v3693, %v3695
          %v3697 = vrot.slane %v3675, %v3696
          %v3699 = vunpack.c.l.s4 1966171168
          %v3700 = vunpack.c.0.s8 %v3699
          %v3701 = vlaneseq
          %v3702 = vshrl.u32 %v3701, 7
          %v3703 = vsub.s32 %v3700, %v3702
          %v3704 = vrot.slane %v3676, %v3703
          %v3705 = vcombine.low %v3683, %v3690
          %v3706 = vcombine.low %v3697, %v3704
          %v3708 = vunpack.c.l.s4 1966171168
          %v3709 = vunpack.c.0.s8 %v3708
          %v3710 = vlaneseq
          %v3711 = vshrl.u32 %v3710, 7
          %v3712 = vsub.s32 %v3709, %v3711
          %v3713 = vrot.slane %v3705, %v3712
          %v3715 = vunpack.c.l.s4 1966171168
          %v3716 = vunpack.c.0.s8 %v3715
          %v3717 = vlaneseq
          %v3718 = vshrl.u32 %v3717, 7
          %v3719 = vsub.s32 %v3716, %v3718
          %v3720 = vrot.slane %v3706, %v3719
          %v3721 = vcombine.low %v3713, %v3720
          %v3722 = vcombine.low %v2412, %v2416
          %v3723 = vcombine.low %v2420, %v2424
          %v3724 = vcombine.low %v2428, %v2432
          %v3725 = vcombine.low %v2436, %v2440
          %v3727 = vunpack.c.l.s4 1966171168
          %v3728 = vunpack.c.0.s8 %v3727
          %v3729 = vlaneseq
          %v3730 = vshrl.u32 %v3729, 7
          %v3731 = vsub.s32 %v3728, %v3730
          %v3732 = vrot.slane %v3722, %v3731
          %v3734 = vunpack.c.l.s4 1966171168
          %v3735 = vunpack.c.0.s8 %v3734
          %v3736 = vlaneseq
          %v3737 = vshrl.u32 %v3736, 7
          %v3738 = vsub.s32 %v3735, %v3737
          %v3739 = vrot.slane %v3723, %v3738
          %v3741 = vunpack.c.l.s4 1966171168
          %v3742 = vunpack.c.0.s8 %v3741
          %v3743 = vlaneseq
          %v3744 = vshrl.u32 %v3743, 7
          %v3745 = vsub.s32 %v3742, %v3744
          %v3746 = vrot.slane %v3724, %v3745
          %v3748 = vunpack.c.l.s4 1966171168
          %v3749 = vunpack.c.0.s8 %v3748
          %v3750 = vlaneseq
          %v3751 = vshrl.u32 %v3750, 7
          %v3752 = vsub.s32 %v3749, %v3751
          %v3753 = vrot.slane %v3725, %v3752
          %v3754 = vcombine.low %v3732, %v3739
          %v3755 = vcombine.low %v3746, %v3753
          %v3757 = vunpack.c.l.s4 1966171168
          %v3758 = vunpack.c.0.s8 %v3757
          %v3759 = vlaneseq
          %v3760 = vshrl.u32 %v3759, 7
          %v3761 = vsub.s32 %v3758, %v3760
          %v3762 = vrot.slane %v3754, %v3761
          %v3764 = vunpack.c.l.s4 1966171168
          %v3765 = vunpack.c.0.s8 %v3764
          %v3766 = vlaneseq
          %v3767 = vshrl.u32 %v3766, 7
          %v3768 = vsub.s32 %v3765, %v3767
          %v3769 = vrot.slane %v3755, %v3768
          %v3770 = vcombine.low %v3762, %v3769
          %v3771 = vcombine.low %v2444, %v2448
          %v3772 = vcombine.low %v2452, %v2456
          %v3773 = vcombine.low %v2460, %v2464
          %v3774 = vcombine.low %v2468, %v2472
          %v3776 = vunpack.c.l.s4 1966171168
          %v3777 = vunpack.c.0.s8 %v3776
          %v3778 = vlaneseq
          %v3779 = vshrl.u32 %v3778, 7
          %v3780 = vsub.s32 %v3777, %v3779
          %v3781 = vrot.slane %v3771, %v3780
          %v3783 = vunpack.c.l.s4 1966171168
          %v3784 = vunpack.c.0.s8 %v3783
          %v3785 = vlaneseq
          %v3786 = vshrl.u32 %v3785, 7
          %v3787 = vsub.s32 %v3784, %v3786
          %v3788 = vrot.slane %v3772, %v3787
          %v3790 = vunpack.c.l.s4 1966171168
          %v3791 = vunpack.c.0.s8 %v3790
          %v3792 = vlaneseq
          %v3793 = vshrl.u32 %v3792, 7
          %v3794 = vsub.s32 %v3791, %v3793
          %v3795 = vrot.slane %v3773, %v3794
          %v3797 = vunpack.c.l.s4 1966171168
          %v3798 = vunpack.c.0.s8 %v3797
          %v3799 = vlaneseq
          %v3800 = vshrl.u32 %v3799, 7
          %v3801 = vsub.s32 %v3798, %v3800
          %v3802 = vrot.slane %v3774, %v3801
          %v3803 = vcombine.low %v3781, %v3788
          %v3804 = vcombine.low %v3795, %v3802
          %v3806 = vunpack.c.l.s4 1966171168
          %v3807 = vunpack.c.0.s8 %v3806
          %v3808 = vlaneseq
          %v3809 = vshrl.u32 %v3808, 7
          %v3810 = vsub.s32 %v3807, %v3809
          %v3811 = vrot.slane %v3803, %v3810
          %v3813 = vunpack.c.l.s4 1966171168
          %v3814 = vunpack.c.0.s8 %v3813
          %v3815 = vlaneseq
          %v3816 = vshrl.u32 %v3815, 7
          %v3817 = vsub.s32 %v3814, %v3816
          %v3818 = vrot.slane %v3804, %v3817
          %v3819 = vcombine.low %v3811, %v3818
          %v3820 = vcombine.low %v2476, %v2480
          %v3821 = vcombine.low %v2484, %v2488
          %v3822 = vcombine.low %v2492, %v2496
          %v3823 = vcombine.low %v2500, %v2504
          %v3825 = vunpack.c.l.s4 1966171168
          %v3826 = vunpack.c.0.s8 %v3825
          %v3827 = vlaneseq
          %v3828 = vshrl.u32 %v3827, 7
          %v3829 = vsub.s32 %v3826, %v3828
          %v3830 = vrot.slane %v3820, %v3829
          %v3832 = vunpack.c.l.s4 1966171168
          %v3833 = vunpack.c.0.s8 %v3832
          %v3834 = vlaneseq
          %v3835 = vshrl.u32 %v3834, 7
          %v3836 = vsub.s32 %v3833, %v3835
          %v3837 = vrot.slane %v3821, %v3836
          %v3839 = vunpack.c.l.s4 1966171168
          %v3840 = vunpack.c.0.s8 %v3839
          %v3841 = vlaneseq
          %v3842 = vshrl.u32 %v3841, 7
          %v3843 = vsub.s32 %v3840, %v3842
          %v3844 = vrot.slane %v3822, %v3843
          %v3846 = vunpack.c.l.s4 1966171168
          %v3847 = vunpack.c.0.s8 %v3846
          %v3848 = vlaneseq
          %v3849 = vshrl.u32 %v3848, 7
          %v3850 = vsub.s32 %v3847, %v3849
          %v3851 = vrot.slane %v3823, %v3850
          %v3852 = vcombine.low %v3830, %v3837
          %v3853 = vcombine.low %v3844, %v3851
          %v3855 = vunpack.c.l.s4 1966171168
          %v3856 = vunpack.c.0.s8 %v3855
          %v3857 = vlaneseq
          %v3858 = vshrl.u32 %v3857, 7
          %v3859 = vsub.s32 %v3856, %v3858
          %v3860 = vrot.slane %v3852, %v3859
          %v3862 = vunpack.c.l.s4 1966171168
          %v3863 = vunpack.c.0.s8 %v3862
          %v3864 = vlaneseq
          %v3865 = vshrl.u32 %v3864, 7
          %v3866 = vsub.s32 %v3863, %v3865
          %v3867 = vrot.slane %v3853, %v3866
          %v3868 = vcombine.low %v3860, %v3867
          %v3869 = vcombine.low %v2508, %v2512
          %v3870 = vcombine.low %v2516, %v2520
          %v3871 = vcombine.low %v2524, %v2528
          %v3872 = vcombine.low %v2532, %v2536
          %v3874 = vunpack.c.l.s4 1966171168
          %v3875 = vunpack.c.0.s8 %v3874
          %v3876 = vlaneseq
          %v3877 = vshrl.u32 %v3876, 7
          %v3878 = vsub.s32 %v3875, %v3877
          %v3879 = vrot.slane %v3869, %v3878
          %v3881 = vunpack.c.l.s4 1966171168
          %v3882 = vunpack.c.0.s8 %v3881
          %v3883 = vlaneseq
          %v3884 = vshrl.u32 %v3883, 7
          %v3885 = vsub.s32 %v3882, %v3884
          %v3886 = vrot.slane %v3870, %v3885
          %v3888 = vunpack.c.l.s4 1966171168
          %v3889 = vunpack.c.0.s8 %v3888
          %v3890 = vlaneseq
          %v3891 = vshrl.u32 %v3890, 7
          %v3892 = vsub.s32 %v3889, %v3891
          %v3893 = vrot.slane %v3871, %v3892
          %v3895 = vunpack.c.l.s4 1966171168
          %v3896 = vunpack.c.0.s8 %v3895
          %v3897 = vlaneseq
          %v3898 = vshrl.u32 %v3897, 7
          %v3899 = vsub.s32 %v3896, %v3898
          %v3900 = vrot.slane %v3872, %v3899
          %v3901 = vcombine.low %v3879, %v3886
          %v3902 = vcombine.low %v3893, %v3900
          %v3904 = vunpack.c.l.s4 1966171168
          %v3905 = vunpack.c.0.s8 %v3904
          %v3906 = vlaneseq
          %v3907 = vshrl.u32 %v3906, 7
          %v3908 = vsub.s32 %v3905, %v3907
          %v3909 = vrot.slane %v3901, %v3908
          %v3911 = vunpack.c.l.s4 1966171168
          %v3912 = vunpack.c.0.s8 %v3911
          %v3913 = vlaneseq
          %v3914 = vshrl.u32 %v3913, 7
          %v3915 = vsub.s32 %v3912, %v3914
          %v3916 = vrot.slane %v3902, %v3915
          %v3917 = vcombine.low %v3909, %v3916
          %v3918 = vcombine.low %v2540, %v2544
          %v3919 = vcombine.low %v2548, %v2552
          %v3920 = vcombine.low %v2556, %v2560
          %v3921 = vcombine.low %v2564, %v2568
          %v3923 = vunpack.c.l.s4 1966171168
          %v3924 = vunpack.c.0.s8 %v3923
          %v3925 = vlaneseq
          %v3926 = vshrl.u32 %v3925, 7
          %v3927 = vsub.s32 %v3924, %v3926
          %v3928 = vrot.slane %v3918, %v3927
          %v3930 = vunpack.c.l.s4 1966171168
          %v3931 = vunpack.c.0.s8 %v3930
          %v3932 = vlaneseq
          %v3933 = vshrl.u32 %v3932, 7
          %v3934 = vsub.s32 %v3931, %v3933
          %v3935 = vrot.slane %v3919, %v3934
          %v3937 = vunpack.c.l.s4 1966171168
          %v3938 = vunpack.c.0.s8 %v3937
          %v3939 = vlaneseq
          %v3940 = vshrl.u32 %v3939, 7
          %v3941 = vsub.s32 %v3938, %v3940
          %v3942 = vrot.slane %v3920, %v3941
          %v3944 = vunpack.c.l.s4 1966171168
          %v3945 = vunpack.c.0.s8 %v3944
          %v3946 = vlaneseq
          %v3947 = vshrl.u32 %v3946, 7
          %v3948 = vsub.s32 %v3945, %v3947
          %v3949 = vrot.slane %v3921, %v3948
          %v3950 = vcombine.low %v3928, %v3935
          %v3951 = vcombine.low %v3942, %v3949
          %v3953 = vunpack.c.l.s4 1966171168
          %v3954 = vunpack.c.0.s8 %v3953
          %v3955 = vlaneseq
          %v3956 = vshrl.u32 %v3955, 7
          %v3957 = vsub.s32 %v3954, %v3956
          %v3958 = vrot.slane %v3950, %v3957
          %v3960 = vunpack.c.l.s4 1966171168
          %v3961 = vunpack.c.0.s8 %v3960
          %v3962 = vlaneseq
          %v3963 = vshrl.u32 %v3962, 7
          %v3964 = vsub.s32 %v3961, %v3963
          %v3965 = vrot.slane %v3951, %v3964
          %v3966 = vcombine.low %v3958, %v3965
          %v3967 = vcombine.low %v2572, %v2576
          %v3968 = vcombine.low %v2580, %v2584
          %v3969 = vcombine.low %v2588, %v2592
          %v3970 = vcombine.low %v2596, %v2600
          %v3972 = vunpack.c.l.s4 1966171168
          %v3973 = vunpack.c.0.s8 %v3972
          %v3974 = vlaneseq
          %v3975 = vshrl.u32 %v3974, 7
          %v3976 = vsub.s32 %v3973, %v3975
          %v3977 = vrot.slane %v3967, %v3976
          %v3979 = vunpack.c.l.s4 1966171168
          %v3980 = vunpack.c.0.s8 %v3979
          %v3981 = vlaneseq
          %v3982 = vshrl.u32 %v3981, 7
          %v3983 = vsub.s32 %v3980, %v3982
          %v3984 = vrot.slane %v3968, %v3983
          %v3986 = vunpack.c.l.s4 1966171168
          %v3987 = vunpack.c.0.s8 %v3986
          %v3988 = vlaneseq
          %v3989 = vshrl.u32 %v3988, 7
          %v3990 = vsub.s32 %v3987, %v3989
          %v3991 = vrot.slane %v3969, %v3990
          %v3993 = vunpack.c.l.s4 1966171168
          %v3994 = vunpack.c.0.s8 %v3993
          %v3995 = vlaneseq
          %v3996 = vshrl.u32 %v3995, 7
          %v3997 = vsub.s32 %v3994, %v3996
          %v3998 = vrot.slane %v3970, %v3997
          %v3999 = vcombine.low %v3977, %v3984
          %v4000 = vcombine.low %v3991, %v3998
          %v4002 = vunpack.c.l.s4 1966171168
          %v4003 = vunpack.c.0.s8 %v4002
          %v4004 = vlaneseq
          %v4005 = vshrl.u32 %v4004, 7
          %v4006 = vsub.s32 %v4003, %v4005
          %v4007 = vrot.slane %v3999, %v4006
          %v4009 = vunpack.c.l.s4 1966171168
          %v4010 = vunpack.c.0.s8 %v4009
          %v4011 = vlaneseq
          %v4012 = vshrl.u32 %v4011, 7
          %v4013 = vsub.s32 %v4010, %v4012
          %v4014 = vrot.slane %v4000, %v4013
          %v4015 = vcombine.low %v4007, %v4014
          %v4016 = vcombine.low %v2604, %v2608
          %v4017 = vcombine.low %v2612, %v2616
          %v4018 = vcombine.low %v2620, %v2624
          %v4019 = vcombine.low %v2628, %v2632
          %v4021 = vunpack.c.l.s4 1966171168
          %v4022 = vunpack.c.0.s8 %v4021
          %v4023 = vlaneseq
          %v4024 = vshrl.u32 %v4023, 7
          %v4025 = vsub.s32 %v4022, %v4024
          %v4026 = vrot.slane %v4016, %v4025
          %v4028 = vunpack.c.l.s4 1966171168
          %v4029 = vunpack.c.0.s8 %v4028
          %v4030 = vlaneseq
          %v4031 = vshrl.u32 %v4030, 7
          %v4032 = vsub.s32 %v4029, %v4031
          %v4033 = vrot.slane %v4017, %v4032
          %v4035 = vunpack.c.l.s4 1966171168
          %v4036 = vunpack.c.0.s8 %v4035
          %v4037 = vlaneseq
          %v4038 = vshrl.u32 %v4037, 7
          %v4039 = vsub.s32 %v4036, %v4038
          %v4040 = vrot.slane %v4018, %v4039
          %v4042 = vunpack.c.l.s4 1966171168
          %v4043 = vunpack.c.0.s8 %v4042
          %v4044 = vlaneseq
          %v4045 = vshrl.u32 %v4044, 7
          %v4046 = vsub.s32 %v4043, %v4045
          %v4047 = vrot.slane %v4019, %v4046
          %v4048 = vcombine.low %v4026, %v4033
          %v4049 = vcombine.low %v4040, %v4047
          %v4051 = vunpack.c.l.s4 1966171168
          %v4052 = vunpack.c.0.s8 %v4051
          %v4053 = vlaneseq
          %v4054 = vshrl.u32 %v4053, 7
          %v4055 = vsub.s32 %v4052, %v4054
          %v4056 = vrot.slane %v4048, %v4055
          %v4058 = vunpack.c.l.s4 1966171168
          %v4059 = vunpack.c.0.s8 %v4058
          %v4060 = vlaneseq
          %v4061 = vshrl.u32 %v4060, 7
          %v4062 = vsub.s32 %v4059, %v4061
          %v4063 = vrot.slane %v4049, %v4062
          %v4064 = vcombine.low %v4056, %v4063
          %v4065 = vcombine.low %v2636, %v2640
          %v4066 = vcombine.low %v2644, %v2648
          %v4067 = vcombine.low %v2652, %v2656
          %v4068 = vcombine.low %v2660, %v2664
          %v4070 = vunpack.c.l.s4 1966171168
          %v4071 = vunpack.c.0.s8 %v4070
          %v4072 = vlaneseq
          %v4073 = vshrl.u32 %v4072, 7
          %v4074 = vsub.s32 %v4071, %v4073
          %v4075 = vrot.slane %v4065, %v4074
          %v4077 = vunpack.c.l.s4 1966171168
          %v4078 = vunpack.c.0.s8 %v4077
          %v4079 = vlaneseq
          %v4080 = vshrl.u32 %v4079, 7
          %v4081 = vsub.s32 %v4078, %v4080
          %v4082 = vrot.slane %v4066, %v4081
          %v4084 = vunpack.c.l.s4 1966171168
          %v4085 = vunpack.c.0.s8 %v4084
          %v4086 = vlaneseq
          %v4087 = vshrl.u32 %v4086, 7
          %v4088 = vsub.s32 %v4085, %v4087
          %v4089 = vrot.slane %v4067, %v4088
          %v4091 = vunpack.c.l.s4 1966171168
          %v4092 = vunpack.c.0.s8 %v4091
          %v4093 = vlaneseq
          %v4094 = vshrl.u32 %v4093, 7
          %v4095 = vsub.s32 %v4092, %v4094
          %v4096 = vrot.slane %v4068, %v4095
          %v4097 = vcombine.low %v4075, %v4082
          %v4098 = vcombine.low %v4089, %v4096
          %v4100 = vunpack.c.l.s4 1966171168
          %v4101 = vunpack.c.0.s8 %v4100
          %v4102 = vlaneseq
          %v4103 = vshrl.u32 %v4102, 7
          %v4104 = vsub.s32 %v4101, %v4103
          %v4105 = vrot.slane %v4097, %v4104
          %v4107 = vunpack.c.l.s4 1966171168
          %v4108 = vunpack.c.0.s8 %v4107
          %v4109 = vlaneseq
          %v4110 = vshrl.u32 %v4109, 7
          %v4111 = vsub.s32 %v4108, %v4110
          %v4112 = vrot.slane %v4098, %v4111
          %v4113 = vcombine.low %v4105, %v4112
          %v4114 = vcombine.low %v2668, %v2672
          %v4115 = vcombine.low %v2676, %v2680
          %v4116 = vcombine.low %v2684, %v2688
          %v4117 = vcombine.low %v2692, %v2696
          %v4119 = vunpack.c.l.s4 1966171168
          %v4120 = vunpack.c.0.s8 %v4119
          %v4121 = vlaneseq
          %v4122 = vshrl.u32 %v4121, 7
          %v4123 = vsub.s32 %v4120, %v4122
          %v4124 = vrot.slane %v4114, %v4123
          %v4126 = vunpack.c.l.s4 1966171168
          %v4127 = vunpack.c.0.s8 %v4126
          %v4128 = vlaneseq
          %v4129 = vshrl.u32 %v4128, 7
          %v4130 = vsub.s32 %v4127, %v4129
          %v4131 = vrot.slane %v4115, %v4130
          %v4133 = vunpack.c.l.s4 1966171168
          %v4134 = vunpack.c.0.s8 %v4133
          %v4135 = vlaneseq
          %v4136 = vshrl.u32 %v4135, 7
          %v4137 = vsub.s32 %v4134, %v4136
          %v4138 = vrot.slane %v4116, %v4137
          %v4140 = vunpack.c.l.s4 1966171168
          %v4141 = vunpack.c.0.s8 %v4140
          %v4142 = vlaneseq
          %v4143 = vshrl.u32 %v4142, 7
          %v4144 = vsub.s32 %v4141, %v4143
          %v4145 = vrot.slane %v4117, %v4144
          %v4146 = vcombine.low %v4124, %v4131
          %v4147 = vcombine.low %v4138, %v4145
          %v4149 = vunpack.c.l.s4 1966171168
          %v4150 = vunpack.c.0.s8 %v4149
          %v4151 = vlaneseq
          %v4152 = vshrl.u32 %v4151, 7
          %v4153 = vsub.s32 %v4150, %v4152
          %v4154 = vrot.slane %v4146, %v4153
          %v4156 = vunpack.c.l.s4 1966171168
          %v4157 = vunpack.c.0.s8 %v4156
          %v4158 = vlaneseq
          %v4159 = vshrl.u32 %v4158, 7
          %v4160 = vsub.s32 %v4157, %v4159
          %v4161 = vrot.slane %v4147, %v4160
          %v4162 = vcombine.low %v4154, %v4161
          %v4163 = vcombine.low %v2700, %v2704
          %v4164 = vcombine.low %v2708, %v2712
          %v4165 = vcombine.low %v2716, %v2720
          %v4166 = vcombine.low %v2724, %v2728
          %v4168 = vunpack.c.l.s4 1966171168
          %v4169 = vunpack.c.0.s8 %v4168
          %v4170 = vlaneseq
          %v4171 = vshrl.u32 %v4170, 7
          %v4172 = vsub.s32 %v4169, %v4171
          %v4173 = vrot.slane %v4163, %v4172
          %v4175 = vunpack.c.l.s4 1966171168
          %v4176 = vunpack.c.0.s8 %v4175
          %v4177 = vlaneseq
          %v4178 = vshrl.u32 %v4177, 7
          %v4179 = vsub.s32 %v4176, %v4178
          %v4180 = vrot.slane %v4164, %v4179
          %v4182 = vunpack.c.l.s4 1966171168
          %v4183 = vunpack.c.0.s8 %v4182
          %v4184 = vlaneseq
          %v4185 = vshrl.u32 %v4184, 7
          %v4186 = vsub.s32 %v4183, %v4185
          %v4187 = vrot.slane %v4165, %v4186
          %v4189 = vunpack.c.l.s4 1966171168
          %v4190 = vunpack.c.0.s8 %v4189
          %v4191 = vlaneseq
          %v4192 = vshrl.u32 %v4191, 7
          %v4193 = vsub.s32 %v4190, %v4192
          %v4194 = vrot.slane %v4166, %v4193
          %v4195 = vcombine.low %v4173, %v4180
          %v4196 = vcombine.low %v4187, %v4194
          %v4198 = vunpack.c.l.s4 1966171168
          %v4199 = vunpack.c.0.s8 %v4198
          %v4200 = vlaneseq
          %v4201 = vshrl.u32 %v4200, 7
          %v4202 = vsub.s32 %v4199, %v4201
          %v4203 = vrot.slane %v4195, %v4202
          %v4205 = vunpack.c.l.s4 1966171168
          %v4206 = vunpack.c.0.s8 %v4205
          %v4207 = vlaneseq
          %v4208 = vshrl.u32 %v4207, 7
          %v4209 = vsub.s32 %v4206, %v4208
          %v4210 = vrot.slane %v4196, %v4209
          %v4211 = vcombine.low %v4203, %v4210
          %v4212 = vcombine.low %v2732, %v2736
          %v4213 = vcombine.low %v2740, %v2744
          %v4214 = vcombine.low %v2748, %v2752
          %v4215 = vcombine.low %v2756, %v2760
          %v4217 = vunpack.c.l.s4 1966171168
          %v4218 = vunpack.c.0.s8 %v4217
          %v4219 = vlaneseq
          %v4220 = vshrl.u32 %v4219, 7
          %v4221 = vsub.s32 %v4218, %v4220
          %v4222 = vrot.slane %v4212, %v4221
          %v4224 = vunpack.c.l.s4 1966171168
          %v4225 = vunpack.c.0.s8 %v4224
          %v4226 = vlaneseq
          %v4227 = vshrl.u32 %v4226, 7
          %v4228 = vsub.s32 %v4225, %v4227
          %v4229 = vrot.slane %v4213, %v4228
          %v4231 = vunpack.c.l.s4 1966171168
          %v4232 = vunpack.c.0.s8 %v4231
          %v4233 = vlaneseq
          %v4234 = vshrl.u32 %v4233, 7
          %v4235 = vsub.s32 %v4232, %v4234
          %v4236 = vrot.slane %v4214, %v4235
          %v4238 = vunpack.c.l.s4 1966171168
          %v4239 = vunpack.c.0.s8 %v4238
          %v4240 = vlaneseq
          %v4241 = vshrl.u32 %v4240, 7
          %v4242 = vsub.s32 %v4239, %v4241
          %v4243 = vrot.slane %v4215, %v4242
          %v4244 = vcombine.low %v4222, %v4229
          %v4245 = vcombine.low %v4236, %v4243
          %v4247 = vunpack.c.l.s4 1966171168
          %v4248 = vunpack.c.0.s8 %v4247
          %v4249 = vlaneseq
          %v4250 = vshrl.u32 %v4249, 7
          %v4251 = vsub.s32 %v4248, %v4250
          %v4252 = vrot.slane %v4244, %v4251
          %v4254 = vunpack.c.l.s4 1966171168
          %v4255 = vunpack.c.0.s8 %v4254
          %v4256 = vlaneseq
          %v4257 = vshrl.u32 %v4256, 7
          %v4258 = vsub.s32 %v4255, %v4257
          %v4259 = vrot.slane %v4245, %v4258
          %v4260 = vcombine.low %v4252, %v4259
          %v4261 = vcombine.low %v2764, %v2768
          %v4262 = vcombine.low %v2772, %v2776
          %v4263 = vcombine.low %v2780, %v2784
          %v4264 = vcombine.low %v2788, %v2792
          %v4266 = vunpack.c.l.s4 1966171168
          %v4267 = vunpack.c.0.s8 %v4266
          %v4268 = vlaneseq
          %v4269 = vshrl.u32 %v4268, 7
          %v4270 = vsub.s32 %v4267, %v4269
          %v4271 = vrot.slane %v4261, %v4270
          %v4273 = vunpack.c.l.s4 1966171168
          %v4274 = vunpack.c.0.s8 %v4273
          %v4275 = vlaneseq
          %v4276 = vshrl.u32 %v4275, 7
          %v4277 = vsub.s32 %v4274, %v4276
          %v4278 = vrot.slane %v4262, %v4277
          %v4280 = vunpack.c.l.s4 1966171168
          %v4281 = vunpack.c.0.s8 %v4280
          %v4282 = vlaneseq
          %v4283 = vshrl.u32 %v4282, 7
          %v4284 = vsub.s32 %v4281, %v4283
          %v4285 = vrot.slane %v4263, %v4284
          %v4287 = vunpack.c.l.s4 1966171168
          %v4288 = vunpack.c.0.s8 %v4287
          %v4289 = vlaneseq
          %v4290 = vshrl.u32 %v4289, 7
          %v4291 = vsub.s32 %v4288, %v4290
          %v4292 = vrot.slane %v4264, %v4291
          %v4293 = vcombine.low %v4271, %v4278
          %v4294 = vcombine.low %v4285, %v4292
          %v4296 = vunpack.c.l.s4 1966171168
          %v4297 = vunpack.c.0.s8 %v4296
          %v4298 = vlaneseq
          %v4299 = vshrl.u32 %v4298, 7
          %v4300 = vsub.s32 %v4297, %v4299
          %v4301 = vrot.slane %v4293, %v4300
          %v4303 = vunpack.c.l.s4 1966171168
          %v4304 = vunpack.c.0.s8 %v4303
          %v4305 = vlaneseq
          %v4306 = vshrl.u32 %v4305, 7
          %v4307 = vsub.s32 %v4304, %v4306
          %v4308 = vrot.slane %v4294, %v4307
          %v4309 = vcombine.low %v4301, %v4308
          %v4310 = vcombine.low %v2796, %v2800
          %v4311 = vcombine.low %v2804, %v2808
          %v4312 = vcombine.low %v2812, %v2816
          %v4313 = vcombine.low %v2820, %v2824
          %v4315 = vunpack.c.l.s4 1966171168
          %v4316 = vunpack.c.0.s8 %v4315
          %v4317 = vlaneseq
          %v4318 = vshrl.u32 %v4317, 7
          %v4319 = vsub.s32 %v4316, %v4318
          %v4320 = vrot.slane %v4310, %v4319
          %v4322 = vunpack.c.l.s4 1966171168
          %v4323 = vunpack.c.0.s8 %v4322
          %v4324 = vlaneseq
          %v4325 = vshrl.u32 %v4324, 7
          %v4326 = vsub.s32 %v4323, %v4325
          %v4327 = vrot.slane %v4311, %v4326
          %v4329 = vunpack.c.l.s4 1966171168
          %v4330 = vunpack.c.0.s8 %v4329
          %v4331 = vlaneseq
          %v4332 = vshrl.u32 %v4331, 7
          %v4333 = vsub.s32 %v4330, %v4332
          %v4334 = vrot.slane %v4312, %v4333
          %v4336 = vunpack.c.l.s4 1966171168
          %v4337 = vunpack.c.0.s8 %v4336
          %v4338 = vlaneseq
          %v4339 = vshrl.u32 %v4338, 7
          %v4340 = vsub.s32 %v4337, %v4339
          %v4341 = vrot.slane %v4313, %v4340
          %v4342 = vcombine.low %v4320, %v4327
          %v4343 = vcombine.low %v4334, %v4341
          %v4345 = vunpack.c.l.s4 1966171168
          %v4346 = vunpack.c.0.s8 %v4345
          %v4347 = vlaneseq
          %v4348 = vshrl.u32 %v4347, 7
          %v4349 = vsub.s32 %v4346, %v4348
          %v4350 = vrot.slane %v4342, %v4349
          %v4352 = vunpack.c.l.s4 1966171168
          %v4353 = vunpack.c.0.s8 %v4352
          %v4354 = vlaneseq
          %v4355 = vshrl.u32 %v4354, 7
          %v4356 = vsub.s32 %v4353, %v4355
          %v4357 = vrot.slane %v4343, %v4356
          %v4358 = vcombine.low %v4350, %v4357
          %v4359 = vcombine.low %v2828, %v2832
          %v4360 = vcombine.low %v2836, %v2840
          %v4361 = vcombine.low %v2844, %v2848
          %v4362 = vcombine.low %v2852, %v2856
          %v4364 = vunpack.c.l.s4 1966171168
          %v4365 = vunpack.c.0.s8 %v4364
          %v4366 = vlaneseq
          %v4367 = vshrl.u32 %v4366, 7
          %v4368 = vsub.s32 %v4365, %v4367
          %v4369 = vrot.slane %v4359, %v4368
          %v4371 = vunpack.c.l.s4 1966171168
          %v4372 = vunpack.c.0.s8 %v4371
          %v4373 = vlaneseq
          %v4374 = vshrl.u32 %v4373, 7
          %v4375 = vsub.s32 %v4372, %v4374
          %v4376 = vrot.slane %v4360, %v4375
          %v4378 = vunpack.c.l.s4 1966171168
          %v4379 = vunpack.c.0.s8 %v4378
          %v4380 = vlaneseq
          %v4381 = vshrl.u32 %v4380, 7
          %v4382 = vsub.s32 %v4379, %v4381
          %v4383 = vrot.slane %v4361, %v4382
          %v4385 = vunpack.c.l.s4 1966171168
          %v4386 = vunpack.c.0.s8 %v4385
          %v4387 = vlaneseq
          %v4388 = vshrl.u32 %v4387, 7
          %v4389 = vsub.s32 %v4386, %v4388
          %v4390 = vrot.slane %v4362, %v4389
          %v4391 = vcombine.low %v4369, %v4376
          %v4392 = vcombine.low %v4383, %v4390
          %v4394 = vunpack.c.l.s4 1966171168
          %v4395 = vunpack.c.0.s8 %v4394
          %v4396 = vlaneseq
          %v4397 = vshrl.u32 %v4396, 7
          %v4398 = vsub.s32 %v4395, %v4397
          %v4399 = vrot.slane %v4391, %v4398
          %v4401 = vunpack.c.l.s4 1966171168
          %v4402 = vunpack.c.0.s8 %v4401
          %v4403 = vlaneseq
          %v4404 = vshrl.u32 %v4403, 7
          %v4405 = vsub.s32 %v4402, %v4404
          %v4406 = vrot.slane %v4392, %v4405
          %v4407 = vcombine.low %v4399, %v4406
          %v4408 = vcombine.low %v2860, %v2864
          %v4409 = vcombine.low %v2868, %v2872
          %v4410 = vcombine.low %v2876, %v2880
          %v4411 = vcombine.low %v2884, %v2888
          %v4413 = vunpack.c.l.s4 1966171168
          %v4414 = vunpack.c.0.s8 %v4413
          %v4415 = vlaneseq
          %v4416 = vshrl.u32 %v4415, 7
          %v4417 = vsub.s32 %v4414, %v4416
          %v4418 = vrot.slane %v4408, %v4417
          %v4420 = vunpack.c.l.s4 1966171168
          %v4421 = vunpack.c.0.s8 %v4420
          %v4422 = vlaneseq
          %v4423 = vshrl.u32 %v4422, 7
          %v4424 = vsub.s32 %v4421, %v4423
          %v4425 = vrot.slane %v4409, %v4424
          %v4427 = vunpack.c.l.s4 1966171168
          %v4428 = vunpack.c.0.s8 %v4427
          %v4429 = vlaneseq
          %v4430 = vshrl.u32 %v4429, 7
          %v4431 = vsub.s32 %v4428, %v4430
          %v4432 = vrot.slane %v4410, %v4431
          %v4434 = vunpack.c.l.s4 1966171168
          %v4435 = vunpack.c.0.s8 %v4434
          %v4436 = vlaneseq
          %v4437 = vshrl.u32 %v4436, 7
          %v4438 = vsub.s32 %v4435, %v4437
          %v4439 = vrot.slane %v4411, %v4438
          %v4440 = vcombine.low %v4418, %v4425
          %v4441 = vcombine.low %v4432, %v4439
          %v4443 = vunpack.c.l.s4 1966171168
          %v4444 = vunpack.c.0.s8 %v4443
          %v4445 = vlaneseq
          %v4446 = vshrl.u32 %v4445, 7
          %v4447 = vsub.s32 %v4444, %v4446
          %v4448 = vrot.slane %v4440, %v4447
          %v4450 = vunpack.c.l.s4 1966171168
          %v4451 = vunpack.c.0.s8 %v4450
          %v4452 = vlaneseq
          %v4453 = vshrl.u32 %v4452, 7
          %v4454 = vsub.s32 %v4451, %v4453
          %v4455 = vrot.slane %v4441, %v4454
          %v4456 = vcombine.low %v4448, %v4455
          %4457 = vset.pattern.permute.xlu0 0
          %4458 = vperm.xlu0 %4457, %v2937
          %v4459 = vpop.permute.xlu0 %4458
          %4460 = vset.pattern.permute.xlu0 0
          %4461 = vperm.xlu0 %4460, %v2986
          %v4462 = vpop.permute.xlu0 %4461
          %4463 = vset.pattern.permute.xlu0 0
          %4464 = vperm.xlu0 %4463, %v3035
          %v4465 = vpop.permute.xlu0 %4464
          %4466 = vset.pattern.permute.xlu0 0
          %4467 = vperm.xlu0 %4466, %v3084
          %v4468 = vpop.permute.xlu0 %4467
          %4469 = vset.pattern.permute.xlu0 0
          %4470 = vperm.xlu0 %4469, %v3133
          %v4471 = vpop.permute.xlu0 %4470
          %4472 = vset.pattern.permute.xlu0 0
          %4473 = vperm.xlu0 %4472, %v3182
          %v4474 = vpop.permute.xlu0 %4473
          %4475 = vset.pattern.permute.xlu0 0
          %4476 = vperm.xlu0 %4475, %v3231
          %v4477 = vpop.permute.xlu0 %4476
          %4478 = vset.pattern.permute.xlu0 0
          %4479 = vperm.xlu0 %4478, %v3280
          %v4480 = vpop.permute.xlu0 %4479
          %4481 = vset.pattern.permute.xlu0 0
          %4482 = vperm.xlu0 %4481, %v3329
          %v4483 = vpop.permute.xlu0 %4482
          %4484 = vset.pattern.permute.xlu0 0
          %4485 = vperm.xlu0 %4484, %v3378
          %v4486 = vpop.permute.xlu0 %4485
          %4487 = vset.pattern.permute.xlu0 0
          %4488 = vperm.xlu0 %4487, %v3427
          %v4489 = vpop.permute.xlu0 %4488
          %4490 = vset.pattern.permute.xlu0 0
          %4491 = vperm.xlu0 %4490, %v3476
          %v4492 = vpop.permute.xlu0 %4491
          %4493 = vset.pattern.permute.xlu0 0
          %4494 = vperm.xlu0 %4493, %v3525
          %v4495 = vpop.permute.xlu0 %4494
          %4496 = vset.pattern.permute.xlu0 0
          %4497 = vperm.xlu0 %4496, %v3574
          %v4498 = vpop.permute.xlu0 %4497
          %4499 = vset.pattern.permute.xlu0 0
          %4500 = vperm.xlu0 %4499, %v3623
          %v4501 = vpop.permute.xlu0 %4500
          %4502 = vset.pattern.permute.xlu0 0
          %4503 = vperm.xlu0 %4502, %v3672
          %v4504 = vpop.permute.xlu0 %4503
          %4505 = vset.pattern.permute.xlu0 0
          %4506 = vperm.xlu0 %4505, %v3721
          %v4507 = vpop.permute.xlu0 %4506
          %4508 = vset.pattern.permute.xlu0 0
          %4509 = vperm.xlu0 %4508, %v3770
          %v4510 = vpop.permute.xlu0 %4509
          %4511 = vset.pattern.permute.xlu0 0
          %4512 = vperm.xlu0 %4511, %v3819
          %v4513 = vpop.permute.xlu0 %4512
          %4514 = vset.pattern.permute.xlu0 0
          %4515 = vperm.xlu0 %4514, %v3868
          %v4516 = vpop.permute.xlu0 %4515
          %4517 = vset.pattern.permute.xlu0 0
          %4518 = vperm.xlu0 %4517, %v3917
          %v4519 = vpop.permute.xlu0 %4518
          %4520 = vset.pattern.permute.xlu0 0
          %4521 = vperm.xlu0 %4520, %v3966
          %v4522 = vpop.permute.xlu0 %4521
          %4523 = vset.pattern.permute.xlu0 0
          %4524 = vperm.xlu0 %4523, %v4015
          %v4525 = vpop.permute.xlu0 %4524
          %4526 = vset.pattern.permute.xlu0 0
          %4527 = vperm.xlu0 %4526, %v4064
          %v4528 = vpop.permute.xlu0 %4527
          %4529 = vset.pattern.permute.xlu0 0
          %4530 = vperm.xlu0 %4529, %v4113
          %v4531 = vpop.permute.xlu0 %4530
          %4532 = vset.pattern.permute.xlu0 0
          %4533 = vperm.xlu0 %4532, %v4162
          %v4534 = vpop.permute.xlu0 %4533
          %4535 = vset.pattern.permute.xlu0 0
          %4536 = vperm.xlu0 %4535, %v4211
          %v4537 = vpop.permute.xlu0 %4536
          %4538 = vset.pattern.permute.xlu0 0
          %4539 = vperm.xlu0 %4538, %v4260
          %v4540 = vpop.permute.xlu0 %4539
          %4541 = vset.pattern.permute.xlu0 0
          %4542 = vperm.xlu0 %4541, %v4309
          %v4543 = vpop.permute.xlu0 %4542
          %4544 = vset.pattern.permute.xlu0 0
          %4545 = vperm.xlu0 %4544, %v4358
          %v4546 = vpop.permute.xlu0 %4545
          %4547 = vset.pattern.permute.xlu0 0
          %4548 = vperm.xlu0 %4547, %v4407
          %v4549 = vpop.permute.xlu0 %4548
          %4550 = vset.pattern.permute.xlu0 0
          %4551 = vperm.xlu0 %4550, %v4456
          %v4552 = vpop.permute.xlu0 %4551
          %v4553 = vlaneseq
          %v4554 = vand.u32 %v4553, 127
          %v4555 = vlaneseq
          %v4556 = vshrl.u32 %v4555, 7
          %v4557 = vsub.s32 %v4554, %v4556
          %v4558 = vrot.slane %v4459, %v4557
          %v4559 = vadd.s32 %v4554, 4294967288
          %v4560 = vlaneseq
          %v4561 = vshrl.u32 %v4560, 7
          %v4562 = vsub.s32 %v4559, %v4561
          %v4563 = vrot.slane %v4462, %v4562
          %vm4564 = vcmask 130112
          %v4565 = vsel %vm4564, %v4563, %v4558
          %v4566 = vadd.s32 %v4554, 4294967280
          %v4567 = vlaneseq
          %v4568 = vshrl.u32 %v4567, 7
          %v4569 = vsub.s32 %v4566, %v4568
          %v4570 = vrot.slane %v4465, %v4569
          %vm4571 = vcmask 195712
          %v4572 = vsel %vm4571, %v4570, %v4565
          %v4573 = vadd.s32 %v4554, 4294967272
          %v4574 = vlaneseq
          %v4575 = vshrl.u32 %v4574, 7
          %v4576 = vsub.s32 %v4573, %v4575
          %v4577 = vrot.slane %v4468, %v4576
          %vm4578 = vcmask 261312
          %v4579 = vsel %vm4578, %v4577, %v4572
          %v4580 = vadd.s32 %v4554, 4294967264
          %v4581 = vlaneseq
          %v4582 = vshrl.u32 %v4581, 7
          %v4583 = vsub.s32 %v4580, %v4582
          %v4584 = vrot.slane %v4471, %v4583
          %vm4585 = vcmask 326912
          %v4586 = vsel %vm4585, %v4584, %v4579
          %v4587 = vadd.s32 %v4554, 4294967256
          %v4588 = vlaneseq
          %v4589 = vshrl.u32 %v4588, 7
          %v4590 = vsub.s32 %v4587, %v4589
          %v4591 = vrot.slane %v4474, %v4590
          %vm4592 = vcmask 392512
          %v4593 = vsel %vm4592, %v4591, %v4586
          %v4594 = vadd.s32 %v4554, 4294967248
          %v4595 = vlaneseq
          %v4596 = vshrl.u32 %v4595, 7
          %v4597 = vsub.s32 %v4594, %v4596
          %v4598 = vrot.slane %v4477, %v4597
          %vm4599 = vcmask 458112
          %v4600 = vsel %vm4599, %v4598, %v4593
          %v4601 = vadd.s32 %v4554, 4294967240
          %v4602 = vlaneseq
          %v4603 = vshrl.u32 %v4602, 7
          %v4604 = vsub.s32 %v4601, %v4603
          %v4605 = vrot.slane %v4480, %v4604
          %vm4606 = vcmask 523712
          %v4607 = vsel %vm4606, %v4605, %v4600
          %v4608 = vadd.s32 %v4554, 4294967232
          %v4609 = vlaneseq
          %v4610 = vshrl.u32 %v4609, 7
          %v4611 = vsub.s32 %v4608, %v4610
          %v4612 = vrot.slane %v4483, %v4611
          %vm4613 = vcmask 589312
          %v4614 = vsel %vm4613, %v4612, %v4607
          %v4615 = vadd.s32 %v4554, 4294967224
          %v4616 = vlaneseq
          %v4617 = vshrl.u32 %v4616, 7
          %v4618 = vsub.s32 %v4615, %v4617
          %v4619 = vrot.slane %v4486, %v4618
          %vm4620 = vcmask 654912
          %v4621 = vsel %vm4620, %v4619, %v4614
          %v4622 = vadd.s32 %v4554, 4294967216
          %v4623 = vlaneseq
          %v4624 = vshrl.u32 %v4623, 7
          %v4625 = vsub.s32 %v4622, %v4624
          %v4626 = vrot.slane %v4489, %v4625
          %vm4627 = vcmask 720512
          %v4628 = vsel %vm4627, %v4626, %v4621
          %v4629 = vadd.s32 %v4554, 4294967208
          %v4630 = vlaneseq
          %v4631 = vshrl.u32 %v4630, 7
          %v4632 = vsub.s32 %v4629, %v4631
          %v4633 = vrot.slane %v4492, %v4632
          %vm4634 = vcmask 786112
          %v4635 = vsel %vm4634, %v4633, %v4628
          %v4636 = vadd.s32 %v4554, 4294967200
          %v4637 = vlaneseq
          %v4638 = vshrl.u32 %v4637, 7
          %v4639 = vsub.s32 %v4636, %v4638
          %v4640 = vrot.slane %v4495, %v4639
          %vm4641 = vcmask 851712
          %v4642 = vsel %vm4641, %v4640, %v4635
          %v4643 = vadd.s32 %v4554, 4294967192
          %v4644 = vlaneseq
          %v4645 = vshrl.u32 %v4644, 7
          %v4646 = vsub.s32 %v4643, %v4645
          %v4647 = vrot.slane %v4498, %v4646
          %vm4648 = vcmask 917312
          %v4649 = vsel %vm4648, %v4647, %v4642
          %v4650 = vadd.s32 %v4554, 4294967184
          %v4651 = vlaneseq
          %v4652 = vshrl.u32 %v4651, 7
          %v4653 = vsub.s32 %v4650, %v4652
          %v4654 = vrot.slane %v4501, %v4653
          %vm4655 = vcmask 982912
          %v4656 = vsel %vm4655, %v4654, %v4649
          %v4657 = vadd.s32 %v4554, 4294967176
          %v4658 = vlaneseq
          %v4659 = vshrl.u32 %v4658, 7
          %v4660 = vsub.s32 %v4657, %v4659
          %v4661 = vrot.slane %v4504, %v4660
          %vm4662 = vcmask 1048512
          %v4663 = vsel %vm4662, %v4661, %v4656
          %v4664 = vlaneseq
          %v4665 = vshrl.u32 %v4664, 7
          %v4666 = vsub.s32 %v4554, %v4665
          %v4667 = vrot.slane %v4507, %v4666
          %v4668 = vlaneseq
          %v4669 = vshrl.u32 %v4668, 7
          %v4670 = vsub.s32 %v4559, %v4669
          %v4671 = vrot.slane %v4510, %v4670
          %v4672 = vsel %vm4564, %v4671, %v4667
          %v4673 = vlaneseq
          %v4674 = vshrl.u32 %v4673, 7
          %v4675 = vsub.s32 %v4566, %v4674
          %v4676 = vrot.slane %v4513, %v4675
          %v4677 = vsel %vm4571, %v4676, %v4672
          %v4678 = vlaneseq
          %v4679 = vshrl.u32 %v4678, 7
          %v4680 = vsub.s32 %v4573, %v4679
          %v4681 = vrot.slane %v4516, %v4680
          %v4682 = vsel %vm4578, %v4681, %v4677
          %v4683 = vlaneseq
          %v4684 = vshrl.u32 %v4683, 7
          %v4685 = vsub.s32 %v4580, %v4684
          %v4686 = vrot.slane %v4519, %v4685
          %v4687 = vsel %vm4585, %v4686, %v4682
          %v4688 = vlaneseq
          %v4689 = vshrl.u32 %v4688, 7
          %v4690 = vsub.s32 %v4587, %v4689
          %v4691 = vrot.slane %v4522, %v4690
          %v4692 = vsel %vm4592, %v4691, %v4687
          %v4693 = vlaneseq
          %v4694 = vshrl.u32 %v4693, 7
          %v4695 = vsub.s32 %v4594, %v4694
          %v4696 = vrot.slane %v4525, %v4695
          %v4697 = vsel %vm4599, %v4696, %v4692
          %v4698 = vlaneseq
          %v4699 = vshrl.u32 %v4698, 7
          %v4700 = vsub.s32 %v4601, %v4699
          %v4701 = vrot.slane %v4528, %v4700
          %v4702 = vsel %vm4606, %v4701, %v4697
          %v4703 = vlaneseq
          %v4704 = vshrl.u32 %v4703, 7
          %v4705 = vsub.s32 %v4608, %v4704
          %v4706 = vrot.slane %v4531, %v4705
          %v4707 = vsel %vm4613, %v4706, %v4702
          %v4708 = vlaneseq
          %v4709 = vshrl.u32 %v4708, 7
          %v4710 = vsub.s32 %v4615, %v4709
          %v4711 = vrot.slane %v4534, %v4710
          %v4712 = vsel %vm4620, %v4711, %v4707
          %v4713 = vlaneseq
          %v4714 = vshrl.u32 %v4713, 7
          %v4715 = vsub.s32 %v4622, %v4714
          %v4716 = vrot.slane %v4537, %v4715
          %v4717 = vsel %vm4627, %v4716, %v4712
          %v4718 = vlaneseq
          %v4719 = vshrl.u32 %v4718, 7
          %v4720 = vsub.s32 %v4629, %v4719
          %v4721 = vrot.slane %v4540, %v4720
          %v4722 = vsel %vm4634, %v4721, %v4717
          %v4723 = vlaneseq
          %v4724 = vshrl.u32 %v4723, 7
          %v4725 = vsub.s32 %v4636, %v4724
          %v4726 = vrot.slane %v4543, %v4725
          %v4727 = vsel %vm4641, %v4726, %v4722
          %v4728 = vlaneseq
          %v4729 = vshrl.u32 %v4728, 7
          %v4730 = vsub.s32 %v4643, %v4729
          %v4731 = vrot.slane %v4546, %v4730
          %v4732 = vsel %vm4648, %v4731, %v4727
          %v4733 = vlaneseq
          %v4734 = vshrl.u32 %v4733, 7
          %v4735 = vsub.s32 %v4650, %v4734
          %v4736 = vrot.slane %v4549, %v4735
          %v4737 = vsel %vm4655, %v4736, %v4732
          %v4738 = vlaneseq
          %v4739 = vshrl.u32 %v4738, 7
          %v4740 = vsub.s32 %v4657, %v4739
          %v4741 = vrot.slane %v4552, %v4740
          %v4742 = vsel %vm4662, %v4741, %v4737
          %v4743 = vcombine.low %v4663, %v4742
          %v4745 = vunpack.c.l.s4 1966171168
          %v4746 = vunpack.c.0.s8 %v4745
          %v4747 = vlaneseq
          %v4748 = vshrl.u32 %v4747, 7
          %v4749 = vsub.s32 %v4746, %v4748
          %v4750 = vrot.slane %v4743, %v4749
          %v4752 = vunpack.c.l.s4 1966171168
          %v4753 = vunpack.c.0.s8 %v4752
          %v4754 = vlaneseq
          %v4755 = vshrl.u32 %v4754, 7
          %v4756 = vsub.s32 %v4753, %v4755
          %v4757 = vrot.slane %v4750, %v4756
          %v4759 = vlaneseq
          %vm4760 = vcmp.ge.s32.totalorder %v4759, 0
          %vm4761 = vcmp.lt.s32.totalorder %v4759, 256
          %vm4762 = vmand %vm4760, %vm4761
          %4763 = vst.msk [vmem:[%s508] sm:$0x3] %vm4762, %v4757
        $region99: #{tpu_custom_call.1} parent=74 // pred_fallthru
          _
        %s4764 = sand.u32 %s261, 1
        %s4765 = scalar_lea.sflag [#allocation7], %s4764
        %s4766 = sand.u32 %s261, 1
        %s4767 = smul.addr %s4766, 2
        %s4768 = scalar_lea.vmem [#allocation11], %s4767
        // Predicated region
        $region100: #{tpu_custom_call.1} parent=74 // pred_check
          %p4769 = pneg %p271
        $region101: #{tpu_custom_call.1} parent=74 // pred_check_branch
          %4771 = sbr.rel (%p4769) target = $region103
        $region102: #{tpu_custom_call.1} parent=74 // pred_region
          %s4773 = ssub.s32 32, 32
          %4774 = vsyncadd %s4765, %s4773
          %s4775 = smul.addr %s34, 2
          %s4776 = smul.addr %s4775, 16
          %s4777 = scalar_lea.hbm %s9, %s4776
          %s4779 = sshll.u32 %s4768, 4
          %s4780 = int_to_ptr.vmem [resolvable:$true] %s4779
          %4782 = dma.vmem_to_hbm [thread:$0]  %s4780, 32, %s4777, %s4765
        $region103: #{tpu_custom_call.1} parent=74 // pred_fallthru
          _
      $region75: #{tpu_custom_call.1} parent=5 // pred_fallthru
        _
      %p4783 = scmp.le.s32.totalorder 2, %s25
      // Predicated region
      $region104: #{tpu_custom_call.1} parent=5 // pred_check
        %p4784 = pneg %p4783
      $region105: #{tpu_custom_call.1} parent=5 // pred_check_branch
        %4786 = sbr.rel (%p4784) target = $region107
      $region106: #{tpu_custom_call.1} parent=5 // pred_region
        %s4787 = ssub.s32 %s25, 2
        // Predicated region
        $region108: #{tpu_custom_call.1} parent=106 // pred_check
          %p4788 = pneg %p277
        $region109: #{tpu_custom_call.1} parent=106 // pred_check_branch
          %4790 = sbr.rel (%p4788) target = $region111
        $region110: #{tpu_custom_call.1} parent=106 // pred_region
          %s4791 = sand.u32 %s262, 1
          %s4792 = scalar_lea.sflag [#allocation7], %s4791
          %s4793 = sand.u32 %s262, 1
          %s4794 = smul.addr %s4793, 2
          %s4795 = scalar_lea.vmem [#allocation11], %s4794
          %4796 = dma.done %s4792, 32
        $region111: #{tpu_custom_call.1} parent=106 // pred_fallthru
          _
      $region107: #{tpu_custom_call.1} parent=5 // pred_fallthru
        _
    $region6: #{tpu_custom_call.1} parent=1 // loop_footer
      %s29 = sadd.s32 1, %s25
    $region7: #{tpu_custom_call.1} parent=1 // loop_footer_branch
      %24 = sbr.rel target = $region3
    $region8: #{tpu_custom_call.1} parent=1 // loop_exit
      _
    %4797 = vsyncpa [#allocation6], 1
    %s4798 = scalar_lea.sflag [#allocation6], 1
    %4799 = vsyncpa %s4798, 1
    %4800 = vsyncpa [#allocation9], 1
    %s4801 = scalar_lea.sflag [#allocation9], 1
    %4802 = vsyncpa %s4801, 1
    %4803 = vsyncpa [#allocation7], 1
    %s4804 = scalar_lea.sflag [#allocation7], 1
    %4805 = vsyncpa %s4804, 1

</llo_original>
